<compile_context>
chip_gen: v6e
topology: v6e:2x2x1
jax: 0.10.0
libtpu: 0.0.40
codegen_flags: <defaults>
</compile_context>

<pallas_src>
import jax
import jax.numpy as jnp
from jax.experimental import pallas as pl
from jax.experimental.pallas import tpu as pltpu

LEAKY_SLOPE = 0.01
LN_EPS = 1e-5


def _layernorm(h):
    # One-pass LayerNorm (elementwise_affine=False): single reduction pair
    # instead of mean followed by mean((h - mu)**2).
    mu = jnp.mean(h, axis=-1, keepdims=True)
    ms = jnp.mean(h * h, axis=-1, keepdims=True)
    var = jnp.maximum(ms - mu * mu, 0.0)
    return (h - mu) * jax.lax.rsqrt(var + LN_EPS)


def _leaky_relu(h):
    return jnp.where(h > 0, h, LEAKY_SLOPE * h)


def acc_decoder_kernel(z_ref, w1_ref, b1_ref, w2_ref, b2_ref, w3_ref, b3_ref,
                       o_ref):
    # ---- FCLayers layer 0: Linear -> LayerNorm -> LeakyReLU ----
    # bf16 MXU operands, f32 accumulation.
    h = jnp.dot(z_ref[...].astype(jnp.bfloat16), w1_ref[...],
                preferred_element_type=jnp.float32) + b1_ref[...]
    h = _leaky_relu(_layernorm(h))

    # ---- FCLayers layer 1: Linear -> LayerNorm -> LeakyReLU ----
    h = jnp.dot(h.astype(jnp.bfloat16), w2_ref[...],
                preferred_element_type=jnp.float32) + b2_ref[...]
    h = _leaky_relu(_layernorm(h))

    # ---- Output head: Linear -> Sigmoid ----
    logits = jnp.dot(h.astype(jnp.bfloat16), w3_ref[...],
                     preferred_element_type=jnp.float32) + b3_ref[...]
    o_ref[...] = jax.nn.sigmoid(logits).astype(o_ref.dtype)


def acc_decoder(z, params, *, tile_b=512):
    """Fused AccDecoder forward.

    z: (B, n_input) float32.  Weights are stored pre-transposed as
    (in_features, out_features) bfloat16; biases are (1, out_features) f32.
    """
    w1, b1, w2, b2, w3, b3 = params
    B, n_in = z.shape
    n_hidden = w1.shape[1]
    n_out = w3.shape[1]
    # NOTE: keep n_hidden / n_out multiples of 128 for lane-dense (unmasked)
    # vector stores; pad + slice in the wrapper if a config violates this.

    # Pad the batch up to a multiple of tile_b so the MXU-friendly tile size is
    # independent of the user batch size (ragged batches handled here).
    b_pad = pl.cdiv(B, tile_b) * tile_b
    if b_pad != B:
        z = jnp.pad(z, ((0, b_pad - B), (0, 0)))

    grid = (b_pad // tile_b,)
    full = lambda i: (0, 0)  # whole-array block (weights/biases, resident)

    out = pl.pallas_call(
        acc_decoder_kernel,
        out_shape=jax.ShapeDtypeStruct((b_pad, n_out), jnp.float32),
        grid_spec=pltpu.PrefetchScalarGridSpec(
            num_scalar_prefetch=0,
            grid=grid,
            in_specs=[
                pl.BlockSpec((tile_b, n_in), lambda i: (i, 0)),     # z tile
                pl.BlockSpec((n_in, n_hidden), full),               # W1 (bf16)
                pl.BlockSpec((1, n_hidden), full),                  # b1
                pl.BlockSpec((n_hidden, n_hidden), full),           # W2 (bf16)
                pl.BlockSpec((1, n_hidden), full),                  # b2
                pl.BlockSpec((n_hidden, n_out), full),              # W3 (bf16)
                pl.BlockSpec((1, n_out), full),                     # b3
            ],
            out_specs=pl.BlockSpec((tile_b, n_out), lambda i: (i, 0)),
        ),
        compiler_params=pltpu.CompilerParams(
            dimension_semantics=("parallel",)),  # batch sharded across TCs on v7x
    )(z, w1, b1, w2, b2, w3, b3)

    return out[:B] if b_pad != B else out


def init_params(key, n_input, n_hidden, n_output):
    """Deterministic synthetic weights.

    Weights are stored as (in, out) = W^T in bfloat16 (halves HBM->VMEM DMA
    and feeds the MXU its native dtype); biases stay float32.
    """
    ks = jax.random.split(key, 6)
    s1 = 1.0 / jnp.sqrt(n_input)
    s2 = 1.0 / jnp.sqrt(n_hidden)
    w1 = jax.random.uniform(ks[0], (n_input, n_hidden), jnp.float32, -s1, s1)
    b1 = jax.random.uniform(ks[1], (1, n_hidden), jnp.float32, -s1, s1)
    w2 = jax.random.uniform(ks[2], (n_hidden, n_hidden), jnp.float32, -s2, s2)
    b2 = jax.random.uniform(ks[3], (1, n_hidden), jnp.float32, -s2, s2)
    w3 = jax.random.uniform(ks[4], (n_hidden, n_output), jnp.float32, -s2, s2)
    b3 = jax.random.uniform(ks[5], (1, n_output), jnp.float32, -s2, s2)
    return (w1.astype(jnp.bfloat16), b1,
            w2.astype(jnp.bfloat16), b2,
            w3.astype(jnp.bfloat16), b3)


def acc_decoder_ref(z, params):
    """Pure-JAX f32 reference (weights upcast to f32) for validation."""
    w1, b1, w2, b2, w3, b3 = params
    w1 = w1.astype(jnp.float32)
    w2 = w2.astype(jnp.float32)
    w3 = w3.astype(jnp.float32)
    h = _leaky_relu(_layernorm(z @ w1 + b1))
    h = _leaky_relu(_layernorm(h @ w2 + b2))
    return jax.nn.sigmoid(h @ w3 + b3)


if __name__ == "__main__":
    # Small shapes consistent with the module: latent -> hidden -> output.
    batch, n_input, n_hidden, n_output = 8, 32, 128, 256

    key = jax.random.PRNGKey(0)
    kz, kp = jax.random.split(key)
    z = jax.random.normal(kz, (batch, n_input), jnp.float32)
    params = init_params(kp, n_input, n_hidden, n_output)

    out = acc_decoder(z, params)          # batch=8 is padded to one 512-row tile
    out = jax.block_until_ready(out)

    ref = acc_decoder_ref(z, params)
    assert out.shape == (batch, n_output)
    # bf16 MXU operands (f32 accumulate) => looser tolerance than pure-f32.
    assert jnp.allclose(out, ref, atol=3e-2), float(jnp.max(jnp.abs(out - ref)))

    print("KERNEL_OK")
</pallas_src>

<mosaic_0001>
module attributes {stable_mosaic.version = 11 : i64} {
  func.func @acc_decoder_kernel(%arg0: i32, %arg1: memref<512x32xf32, #tpu.memory_space<vmem>>, %arg2: memref<32x128xbf16, #tpu.memory_space<vmem>>, %arg3: memref<1x128xf32, #tpu.memory_space<vmem>>, %arg4: memref<128x128xbf16, #tpu.memory_space<vmem>>, %arg5: memref<1x128xf32, #tpu.memory_space<vmem>>, %arg6: memref<128x256xbf16, #tpu.memory_space<vmem>>, %arg7: memref<1x256xf32, #tpu.memory_space<vmem>>, %arg8: memref<512x256xf32, #tpu.memory_space<vmem>>) attributes {dimension_semantics = [#tpu.dimension_semantics<parallel>], iteration_bounds = array<i64: 1>, scalar_prefetch = 0 : i64, scratch_operands = 0 : i64, tpu.core_type = #tpu.core_type<tc>, window_params = [{transform_indices = @transform_0, window_bounds = array<i64: 512, 32>}, {pipeline_mode = #tpu.pipeline_mode<synchronous>, transform_indices = @transform_1, window_bounds = array<i64: 32, 128>}, {pipeline_mode = #tpu.pipeline_mode<synchronous>, transform_indices = @transform_2, window_bounds = array<i64: 1, 128>}, {pipeline_mode = #tpu.pipeline_mode<synchronous>, transform_indices = @transform_3, window_bounds = array<i64: 128, 128>}, {pipeline_mode = #tpu.pipeline_mode<synchronous>, transform_indices = @transform_4, window_bounds = array<i64: 1, 128>}, {pipeline_mode = #tpu.pipeline_mode<synchronous>, transform_indices = @transform_5, window_bounds = array<i64: 128, 256>}, {pipeline_mode = #tpu.pipeline_mode<synchronous>, transform_indices = @transform_6, window_bounds = array<i64: 1, 256>}, {transform_indices = @transform_7, window_bounds = array<i64: 512, 256>}]} {
    %c0 = arith.constant 0 : index
    %c0_0 = arith.constant 0 : index
    %0 = vector.load %arg1[%c0, %c0_0] : memref<512x32xf32, #tpu.memory_space<vmem>>, vector<512x32xf32>
    %1 = arith.truncf %0 : vector<512x32xf32> to vector<512x32xbf16>
    %c0_1 = arith.constant 0 : index
    %c0_2 = arith.constant 0 : index
    %2 = vector.load %arg2[%c0_1, %c0_2] : memref<32x128xbf16, #tpu.memory_space<vmem>>, vector<32x128xbf16>
    %cst = arith.constant dense<0.000000e+00> : vector<512x128xf32>
    %3 = tpu.matmul %1, %2, %cst {dimension_numbers = #tpu.dot_dimension_numbers<[1], [0], [0], [1], [0, 0, 1, 1], [], []>} : vector<512x32xbf16>, vector<32x128xbf16>, vector<512x128xf32> -> vector<512x128xf32>
    %c0_3 = arith.constant 0 : index
    %c0_4 = arith.constant 0 : index
    %4 = vector.load %arg3[%c0_3, %c0_4] : memref<1x128xf32, #tpu.memory_space<vmem>>, vector<1x128xf32>
    %5 = vector.broadcast %4 : vector<1x128xf32> to vector<512x128xf32>
    %6 = arith.addf %3, %5 : vector<512x128xf32>
    %cst_5 = arith.constant dense<0.000000e+00> : vector<512xf32>
    %7 = vector.multi_reduction <add>, %6, %cst_5 [1] : vector<512x128xf32> to vector<512xf32>
    %8 = vector.shape_cast %7 : vector<512xf32> to vector<512x1xf32>
    %cst_6 = arith.constant 1.280000e+02 : f32
    %9 = vector.broadcast %cst_6 : f32 to vector<512x1xf32>
    %10 = arith.divf %8, %9 : vector<512x1xf32>
    %11 = arith.mulf %6, %6 : vector<512x128xf32>
    %cst_7 = arith.constant dense<0.000000e+00> : vector<512xf32>
    %12 = vector.multi_reduction <add>, %11, %cst_7 [1] : vector<512x128xf32> to vector<512xf32>
    %13 = vector.shape_cast %12 : vector<512xf32> to vector<512x1xf32>
    %cst_8 = arith.constant 1.280000e+02 : f32
    %14 = vector.broadcast %cst_8 : f32 to vector<512x1xf32>
    %15 = arith.divf %13, %14 : vector<512x1xf32>
    %16 = arith.mulf %10, %10 : vector<512x1xf32>
    %17 = arith.subf %15, %16 : vector<512x1xf32>
    %cst_9 = arith.constant 0.000000e+00 : f32
    %18 = vector.broadcast %cst_9 : f32 to vector<512x1xf32>
    %19 = arith.maximumf %17, %18 : vector<512x1xf32>
    %20 = vector.broadcast %10 : vector<512x1xf32> to vector<512x128xf32>
    %21 = arith.subf %6, %20 : vector<512x128xf32>
    %cst_10 = arith.constant 9.99999974E-6 : f32
    %22 = vector.broadcast %cst_10 : f32 to vector<512x1xf32>
    %23 = arith.addf %19, %22 : vector<512x1xf32>
    %24 = math.rsqrt %23 : vector<512x1xf32>
    %25 = vector.broadcast %24 : vector<512x1xf32> to vector<512x128xf32>
    %26 = arith.mulf %21, %25 : vector<512x128xf32>
    %cst_11 = arith.constant 0.000000e+00 : f32
    %27 = vector.broadcast %cst_11 : f32 to vector<512x128xf32>
    %28 = arith.cmpf ogt, %26, %27 : vector<512x128xf32>
    %cst_12 = arith.constant 0.00999999977 : f32
    %29 = vector.broadcast %cst_12 : f32 to vector<512x128xf32>
    %30 = arith.mulf %29, %26 : vector<512x128xf32>
    %31 = arith.select %28, %26, %30 : vector<512x128xi1>, vector<512x128xf32>
    %32 = arith.truncf %31 : vector<512x128xf32> to vector<512x128xbf16>
    %c0_13 = arith.constant 0 : index
    %c0_14 = arith.constant 0 : index
    %33 = vector.load %arg4[%c0_13, %c0_14] : memref<128x128xbf16, #tpu.memory_space<vmem>>, vector<128x128xbf16>
    %cst_15 = arith.constant dense<0.000000e+00> : vector<512x128xf32>
    %34 = tpu.matmul %32, %33, %cst_15 {dimension_numbers = #tpu.dot_dimension_numbers<[1], [0], [0], [1], [0, 0, 1, 1], [], []>} : vector<512x128xbf16>, vector<128x128xbf16>, vector<512x128xf32> -> vector<512x128xf32>
    %c0_16 = arith.constant 0 : index
    %c0_17 = arith.constant 0 : index
    %35 = vector.load %arg5[%c0_16, %c0_17] : memref<1x128xf32, #tpu.memory_space<vmem>>, vector<1x128xf32>
    %36 = vector.broadcast %35 : vector<1x128xf32> to vector<512x128xf32>
    %37 = arith.addf %34, %36 : vector<512x128xf32>
    %cst_18 = arith.constant dense<0.000000e+00> : vector<512xf32>
    %38 = vector.multi_reduction <add>, %37, %cst_18 [1] : vector<512x128xf32> to vector<512xf32>
    %39 = vector.shape_cast %38 : vector<512xf32> to vector<512x1xf32>
    %cst_19 = arith.constant 1.280000e+02 : f32
    %40 = vector.broadcast %cst_19 : f32 to vector<512x1xf32>
    %41 = arith.divf %39, %40 : vector<512x1xf32>
    %42 = arith.mulf %37, %37 : vector<512x128xf32>
    %cst_20 = arith.constant dense<0.000000e+00> : vector<512xf32>
    %43 = vector.multi_reduction <add>, %42, %cst_20 [1] : vector<512x128xf32> to vector<512xf32>
    %44 = vector.shape_cast %43 : vector<512xf32> to vector<512x1xf32>
    %cst_21 = arith.constant 1.280000e+02 : f32
    %45 = vector.broadcast %cst_21 : f32 to vector<512x1xf32>
    %46 = arith.divf %44, %45 : vector<512x1xf32>
    %47 = arith.mulf %41, %41 : vector<512x1xf32>
    %48 = arith.subf %46, %47 : vector<512x1xf32>
    %cst_22 = arith.constant 0.000000e+00 : f32
    %49 = vector.broadcast %cst_22 : f32 to vector<512x1xf32>
    %50 = arith.maximumf %48, %49 : vector<512x1xf32>
    %51 = vector.broadcast %41 : vector<512x1xf32> to vector<512x128xf32>
    %52 = arith.subf %37, %51 : vector<512x128xf32>
    %cst_23 = arith.constant 9.99999974E-6 : f32
    %53 = vector.broadcast %cst_23 : f32 to vector<512x1xf32>
    %54 = arith.addf %50, %53 : vector<512x1xf32>
    %55 = math.rsqrt %54 : vector<512x1xf32>
    %56 = vector.broadcast %55 : vector<512x1xf32> to vector<512x128xf32>
    %57 = arith.mulf %52, %56 : vector<512x128xf32>
    %cst_24 = arith.constant 0.000000e+00 : f32
    %58 = vector.broadcast %cst_24 : f32 to vector<512x128xf32>
    %59 = arith.cmpf ogt, %57, %58 : vector<512x128xf32>
    %cst_25 = arith.constant 0.00999999977 : f32
    %60 = vector.broadcast %cst_25 : f32 to vector<512x128xf32>
    %61 = arith.mulf %60, %57 : vector<512x128xf32>
    %62 = arith.select %59, %57, %61 : vector<512x128xi1>, vector<512x128xf32>
    %63 = arith.truncf %62 : vector<512x128xf32> to vector<512x128xbf16>
    %c0_26 = arith.constant 0 : index
    %c0_27 = arith.constant 0 : index
    %64 = vector.load %arg6[%c0_26, %c0_27] : memref<128x256xbf16, #tpu.memory_space<vmem>>, vector<128x256xbf16>
    %cst_28 = arith.constant dense<0.000000e+00> : vector<512x256xf32>
    %65 = tpu.matmul %63, %64, %cst_28 {dimension_numbers = #tpu.dot_dimension_numbers<[1], [0], [0], [1], [0, 0, 1, 1], [], []>} : vector<512x128xbf16>, vector<128x256xbf16>, vector<512x256xf32> -> vector<512x256xf32>
    %c0_29 = arith.constant 0 : index
    %c0_30 = arith.constant 0 : index
    %66 = vector.load %arg7[%c0_29, %c0_30] : memref<1x256xf32, #tpu.memory_space<vmem>>, vector<1x256xf32>
    %67 = vector.broadcast %66 : vector<1x256xf32> to vector<512x256xf32>
    %68 = arith.addf %65, %67 : vector<512x256xf32>
    %69 = arith.negf %68 : vector<512x256xf32>
    %70 = math.exp %69 : vector<512x256xf32>
    %cst_31 = arith.constant 1.000000e+00 : f32
    %71 = vector.broadcast %cst_31 : f32 to vector<512x256xf32>
    %72 = arith.addf %71, %70 : vector<512x256xf32>
    %73 = arith.divf %71, %72 : vector<512x256xf32>
    %c0_32 = arith.constant 0 : index
    %c0_33 = arith.constant 0 : index
    %74 = vector.load %arg8[%c0_32, %c0_33] : memref<512x256xf32, #tpu.memory_space<vmem>>, vector<512x256xf32>
    tpu.vector_store %arg8[%c0_32, %c0_33], %73 {strides = array<i32>} : memref<512x256xf32, #tpu.memory_space<vmem>>, vector<512x256xf32>,
    return
  }
  func.func @transform_0(%arg0: i32) -> (i32, i32) {
    %c0_i32 = arith.constant 0 : i32
    %c0_i32_0 = arith.constant 0 : i32
    return %arg0, %c0_i32 : i32, i32
  }
  func.func @transform_1(%arg0: i32) -> (i32, i32) {
    %c0_i32 = arith.constant 0 : i32
    %c0_i32_0 = arith.constant 0 : i32
    %c0_i32_1 = arith.constant 0 : i32
    return %c0_i32, %c0_i32_0 : i32, i32
  }
  func.func @transform_2(%arg0: i32) -> (i32, i32) {
    %c0_i32 = arith.constant 0 : i32
    %c0_i32_0 = arith.constant 0 : i32
    %c0_i32_1 = arith.constant 0 : i32
    return %c0_i32, %c0_i32_0 : i32, i32
  }
  func.func @transform_3(%arg0: i32) -> (i32, i32) {
    %c0_i32 = arith.constant 0 : i32
    %c0_i32_0 = arith.constant 0 : i32
    %c0_i32_1 = arith.constant 0 : i32
    return %c0_i32, %c0_i32_0 : i32, i32
  }
  func.func @transform_4(%arg0: i32) -> (i32, i32) {
    %c0_i32 = arith.constant 0 : i32
    %c0_i32_0 = arith.constant 0 : i32
    %c0_i32_1 = arith.constant 0 : i32
    return %c0_i32, %c0_i32_0 : i32, i32
  }
  func.func @transform_5(%arg0: i32) -> (i32, i32) {
    %c0_i32 = arith.constant 0 : i32
    %c0_i32_0 = arith.constant 0 : i32
    %c0_i32_1 = arith.constant 0 : i32
    return %c0_i32, %c0_i32_0 : i32, i32
  }
  func.func @transform_6(%arg0: i32) -> (i32, i32) {
    %c0_i32 = arith.constant 0 : i32
    %c0_i32_0 = arith.constant 0 : i32
    %c0_i32_1 = arith.constant 0 : i32
    return %c0_i32, %c0_i32_0 : i32, i32
  }
  func.func @transform_7(%arg0: i32) -> (i32, i32) {
    %c0_i32 = arith.constant 0 : i32
    %c0_i32_0 = arith.constant 0 : i32
    return %arg0, %c0_i32 : i32, i32
  }
}

</mosaic_0001>

<llo_original>
// kernel: tpu_custom_call.1
$region0: #{tpu_custom_call.1}
  #allocation0 [shape = 'u32[]', space=smem, size = 0x4, offset = 0x4, fixed_abs, tag = 'smem constant byte address 0x4 - core index']
  #allocation1 [shape = 'u32[144,128]{1,0:T(1,128)}', space=vmem, size = 0x12000, scoped, tag = 'internal scratch']
  %s0 = inlined_call_operand.vmem [shape: f32[512,32], index: 0, kind: input, shape index: {}]
  %s1 = inlined_call_operand.vmem [shape: bf16[32,128], index: 1, kind: input, shape index: {}]
  %s2 = inlined_call_operand.vmem [shape: f32[1,128], index: 2, kind: input, shape index: {}]
  %s3 = inlined_call_operand.vmem [shape: bf16[128,128], index: 3, kind: input, shape index: {}]
  %s4 = inlined_call_operand.vmem [shape: f32[1,128], index: 4, kind: input, shape index: {}]
  %s5 = inlined_call_operand.vmem [shape: bf16[128,256], index: 5, kind: input, shape index: {}]
  %s6 = inlined_call_operand.vmem [shape: f32[1,256], index: 6, kind: input, shape index: {}]
  %s7 = inlined_call_operand.hbm [shape: f32[512,256], index: 7, kind: output, shape index: {}]
  %s8 = sld [smem:[#allocation0]]
  $region38: #{tpu_custom_call.1} parent=0
    _
  %s10 = ssub.s32 1, %s8
  %s11 = scalar_select 0, %s10, %s8
  $region1: #{tpu_custom_call.1} parent=0
    #allocation2 [shape = 'u8[524288]{0}', space=vmem, size = 0x80000, scoped, tag = 'output window, operand 0, single buffered']
    #allocation3 [shape = 's32[1]{0}', space=sflag, size = 0x4, scoped, tag = 'scoped memory for tpu_custom_call.1']
    %12 = vsyncpa [#allocation3], 0
    // Predicated region
    $region2: #{tpu_custom_call.1} parent=1 // pred_check
      _
    $region3: #{tpu_custom_call.1} parent=1 // pred_check_branch
      %14 = sbr.rel (0) target = $region5
    $region4: #{tpu_custom_call.1} parent=1 // pred_region
      _
    $region5: #{tpu_custom_call.1} parent=1 // pred_fallthru
      _
    // Predicated region
    $region6: #{tpu_custom_call.1} parent=1 // pred_check
      _
    $region7: #{tpu_custom_call.1} parent=1 // pred_check_branch
      %16 = sbr.rel (0) target = $region9
    $region8: #{tpu_custom_call.1} parent=1 // pred_region
      _
    $region9: #{tpu_custom_call.1} parent=1 // pred_fallthru
      _
    // Predicated region
    $region10: #{tpu_custom_call.1} parent=1 // pred_check
      _
    $region11: #{tpu_custom_call.1} parent=1 // pred_check_branch
      %18 = sbr.rel (0) target = $region13
    $region12: #{tpu_custom_call.1} parent=1 // pred_region
      _
    $region13: #{tpu_custom_call.1} parent=1 // pred_fallthru
      _
    // Predicated region
    $region14: #{tpu_custom_call.1} parent=1 // pred_check
      _
    $region15: #{tpu_custom_call.1} parent=1 // pred_check_branch
      %20 = sbr.rel (0) target = $region17
    $region16: #{tpu_custom_call.1} parent=1 // pred_region
      _
    $region17: #{tpu_custom_call.1} parent=1 // pred_fallthru
      _
    // Predicated region
    $region18: #{tpu_custom_call.1} parent=1 // pred_check
      _
    $region19: #{tpu_custom_call.1} parent=1 // pred_check_branch
      %22 = sbr.rel (0) target = $region21
    $region20: #{tpu_custom_call.1} parent=1 // pred_region
      _
    $region21: #{tpu_custom_call.1} parent=1 // pred_fallthru
      _
    // Predicated region
    $region22: #{tpu_custom_call.1} parent=1 // pred_check
      _
    $region23: #{tpu_custom_call.1} parent=1 // pred_check_branch
      %24 = sbr.rel (0) target = $region25
    $region24: #{tpu_custom_call.1} parent=1 // pred_region
      _
    $region25: #{tpu_custom_call.1} parent=1 // pred_fallthru
      _
    // Predicated region
    $region26: #{tpu_custom_call.1} parent=1 // pred_check
      _
    $region27: #{tpu_custom_call.1} parent=1 // pred_check_branch
      %26 = sbr.rel (0) target = $region29
    $region28: #{tpu_custom_call.1} parent=1 // pred_region
      _
    $region29: #{tpu_custom_call.1} parent=1 // pred_fallthru
      _
    %v28 = vld [vmem:[%s0] sm:$0xff]
    %v29 = vld [vmem:[%s0 + $0x8] sm:$0xff]
    %v30 = vld [vmem:[%s0 + $0x10] sm:$0xff]
    %v31 = vld [vmem:[%s0 + $0x18] sm:$0xff]
    %v32 = vld [vmem:[%s0 + $0x20] sm:$0xff]
    %v33 = vld [vmem:[%s0 + $0x28] sm:$0xff]
    %v34 = vld [vmem:[%s0 + $0x30] sm:$0xff]
    %v35 = vld [vmem:[%s0 + $0x38] sm:$0xff]
    %v36 = vld [vmem:[%s0 + $0x40] sm:$0xff]
    %v37 = vld [vmem:[%s0 + $0x48] sm:$0xff]
    %v38 = vld [vmem:[%s0 + $0x50] sm:$0xff]
    %v39 = vld [vmem:[%s0 + $0x58] sm:$0xff]
    %v40 = vld [vmem:[%s0 + $0x60] sm:$0xff]
    %v41 = vld [vmem:[%s0 + $0x68] sm:$0xff]
    %v42 = vld [vmem:[%s0 + $0x70] sm:$0xff]
    %v43 = vld [vmem:[%s0 + $0x78] sm:$0xff]
    %v44 = vld [vmem:[%s0 + $0x80] sm:$0xff]
    %v45 = vld [vmem:[%s0 + $0x88] sm:$0xff]
    %v46 = vld [vmem:[%s0 + $0x90] sm:$0xff]
    %v47 = vld [vmem:[%s0 + $0x98] sm:$0xff]
    %v48 = vld [vmem:[%s0 + $0xa0] sm:$0xff]
    %v49 = vld [vmem:[%s0 + $0xa8] sm:$0xff]
    %v50 = vld [vmem:[%s0 + $0xb0] sm:$0xff]
    %v51 = vld [vmem:[%s0 + $0xb8] sm:$0xff]
    %v52 = vld [vmem:[%s0 + $0xc0] sm:$0xff]
    %v53 = vld [vmem:[%s0 + $0xc8] sm:$0xff]
    %v54 = vld [vmem:[%s0 + $0xd0] sm:$0xff]
    %v55 = vld [vmem:[%s0 + $0xd8] sm:$0xff]
    %v56 = vld [vmem:[%s0 + $0xe0] sm:$0xff]
    %v57 = vld [vmem:[%s0 + $0xe8] sm:$0xff]
    %v58 = vld [vmem:[%s0 + $0xf0] sm:$0xff]
    %v59 = vld [vmem:[%s0 + $0xf8] sm:$0xff]
    %v60 = vld [vmem:[%s0 + $0x100] sm:$0xff]
    %v61 = vld [vmem:[%s0 + $0x108] sm:$0xff]
    %v62 = vld [vmem:[%s0 + $0x110] sm:$0xff]
    %v63 = vld [vmem:[%s0 + $0x118] sm:$0xff]
    %v64 = vld [vmem:[%s0 + $0x120] sm:$0xff]
    %v65 = vld [vmem:[%s0 + $0x128] sm:$0xff]
    %v66 = vld [vmem:[%s0 + $0x130] sm:$0xff]
    %v67 = vld [vmem:[%s0 + $0x138] sm:$0xff]
    %v68 = vld [vmem:[%s0 + $0x140] sm:$0xff]
    %v69 = vld [vmem:[%s0 + $0x148] sm:$0xff]
    %v70 = vld [vmem:[%s0 + $0x150] sm:$0xff]
    %v71 = vld [vmem:[%s0 + $0x158] sm:$0xff]
    %v72 = vld [vmem:[%s0 + $0x160] sm:$0xff]
    %v73 = vld [vmem:[%s0 + $0x168] sm:$0xff]
    %v74 = vld [vmem:[%s0 + $0x170] sm:$0xff]
    %v75 = vld [vmem:[%s0 + $0x178] sm:$0xff]
    %v76 = vld [vmem:[%s0 + $0x180] sm:$0xff]
    %v77 = vld [vmem:[%s0 + $0x188] sm:$0xff]
    %v78 = vld [vmem:[%s0 + $0x190] sm:$0xff]
    %v79 = vld [vmem:[%s0 + $0x198] sm:$0xff]
    %v80 = vld [vmem:[%s0 + $0x1a0] sm:$0xff]
    %v81 = vld [vmem:[%s0 + $0x1a8] sm:$0xff]
    %v82 = vld [vmem:[%s0 + $0x1b0] sm:$0xff]
    %v83 = vld [vmem:[%s0 + $0x1b8] sm:$0xff]
    %v84 = vld [vmem:[%s0 + $0x1c0] sm:$0xff]
    %v85 = vld [vmem:[%s0 + $0x1c8] sm:$0xff]
    %v86 = vld [vmem:[%s0 + $0x1d0] sm:$0xff]
    %v87 = vld [vmem:[%s0 + $0x1d8] sm:$0xff]
    %v88 = vld [vmem:[%s0 + $0x1e0] sm:$0xff]
    %v89 = vld [vmem:[%s0 + $0x1e8] sm:$0xff]
    %v90 = vld [vmem:[%s0 + $0x1f0] sm:$0xff]
    %v91 = vld [vmem:[%s0 + $0x1f8] sm:$0xff]
    %v92 = vpack.c.bf16 %v29, %v28
    %v93 = vpack.c.bf16 %v31, %v30
    %v94 = vpack.c.bf16 %v33, %v32
    %v95 = vpack.c.bf16 %v35, %v34
    %v96 = vpack.c.bf16 %v37, %v36
    %v97 = vpack.c.bf16 %v39, %v38
    %v98 = vpack.c.bf16 %v41, %v40
    %v99 = vpack.c.bf16 %v43, %v42
    %v100 = vpack.c.bf16 %v45, %v44
    %v101 = vpack.c.bf16 %v47, %v46
    %v102 = vpack.c.bf16 %v49, %v48
    %v103 = vpack.c.bf16 %v51, %v50
    %v104 = vpack.c.bf16 %v53, %v52
    %v105 = vpack.c.bf16 %v55, %v54
    %v106 = vpack.c.bf16 %v57, %v56
    %v107 = vpack.c.bf16 %v59, %v58
    %v108 = vpack.c.bf16 %v61, %v60
    %v109 = vpack.c.bf16 %v63, %v62
    %v110 = vpack.c.bf16 %v65, %v64
    %v111 = vpack.c.bf16 %v67, %v66
    %v112 = vpack.c.bf16 %v69, %v68
    %v113 = vpack.c.bf16 %v71, %v70
    %v114 = vpack.c.bf16 %v73, %v72
    %v115 = vpack.c.bf16 %v75, %v74
    %v116 = vpack.c.bf16 %v77, %v76
    %v117 = vpack.c.bf16 %v79, %v78
    %v118 = vpack.c.bf16 %v81, %v80
    %v119 = vpack.c.bf16 %v83, %v82
    %v120 = vpack.c.bf16 %v85, %v84
    %v121 = vpack.c.bf16 %v87, %v86
    %v122 = vpack.c.bf16 %v89, %v88
    %v123 = vpack.c.bf16 %v91, %v90
    %v124 = vld [vmem:[%s1] sm:$0xf]
    %v125 = vld [vmem:[%s1 + $0x4] sm:$0xf]
    %v126 = vld [vmem:[%s1 + $0x8] sm:$0xf]
    %v127 = vld [vmem:[%s1 + $0xc] sm:$0xf]
    %v128 = vld [vmem:[%s2] sm:$0x1]
    %v130 = vlaneseq
    %v131 = vshrl.u32 %v130, 7
    %v132 = vsub.s32 0, %v131
    %v133 = vrot.slane %v128, %v132
    %v139 = vunpack.c.l.b16 %v124
    %v140 = vunpack.c.l.b16 %v125
    %v141 = vunpack.c.l.b16 %v126
    %v142 = vunpack.c.l.b16 %v127
    %v143 = vpack.c.b16 %v140, %v139
    %v144 = vpack.c.b16 %v142, %v141
    %vm147 = vcmask 261120
    %v149 = vsel %vm147, %v92, 0
    %v152 = vsel %vm147, %v93, 0
    %v155 = vsel %vm147, %v94, 0
    %v158 = vsel %vm147, %v95, 0
    %v161 = vsel %vm147, %v96, 0
    %v164 = vsel %vm147, %v97, 0
    %v167 = vsel %vm147, %v98, 0
    %v170 = vsel %vm147, %v99, 0
    %v173 = vsel %vm147, %v100, 0
    %v176 = vsel %vm147, %v101, 0
    %v179 = vsel %vm147, %v102, 0
    %v182 = vsel %vm147, %v103, 0
    %v185 = vsel %vm147, %v104, 0
    %v188 = vsel %vm147, %v105, 0
    %v191 = vsel %vm147, %v106, 0
    %v194 = vsel %vm147, %v107, 0
    %v197 = vsel %vm147, %v108, 0
    %v200 = vsel %vm147, %v109, 0
    %v203 = vsel %vm147, %v110, 0
    %v206 = vsel %vm147, %v111, 0
    %v209 = vsel %vm147, %v112, 0
    %v212 = vsel %vm147, %v113, 0
    %v215 = vsel %vm147, %v114, 0
    %v218 = vsel %vm147, %v115, 0
    %v221 = vsel %vm147, %v116, 0
    %v224 = vsel %vm147, %v117, 0
    %v227 = vsel %vm147, %v118, 0
    %v230 = vsel %vm147, %v119, 0
    %v233 = vsel %vm147, %v120, 0
    %v236 = vsel %vm147, %v121, 0
    %v239 = vsel %vm147, %v122, 0
    %v242 = vsel %vm147, %v123, 0
    %244 = vmatprep.subr.bf16.mxu0 0
    %245 = vmatpush1.bf16.msra.mxu0 0
    %246 = vmatprep.subr.bf16.mxu0 0
    %247 = vmatpush1.bf16.msra.mxu0 0
    %248 = vmatprep.subr.bf16.mxu0 0
    %249 = vmatpush1.bf16.msra.mxu0 0
    %250 = vmatprep.subr.bf16.mxu0 0
    %251 = vmatpush1.bf16.msra.mxu0 0
    %252 = vmatprep.subr.bf16.mxu0 0
    %253 = vmatpush1.bf16.msra.mxu0 0
    %254 = vmatprep.subr.bf16.mxu0 0
    %255 = vmatpush1.bf16.msra.mxu0 0
    %256 = vmatprep.subr.bf16.mxu0 0
    %257 = vmatpush1.bf16.msra.mxu0 %v144
    %258 = vmatprep.subr.bf16.mxu0 0
    %259 = vmatpush1.bf16.msra.mxu0 %v143
    %260 = vmatprep.subr.bf16.mxu0 0
    %261 = vmatpush2.bf16.msra.mxu0 0
    %262 = vmatprep.subr.bf16.mxu0 0
    %263 = vmatpush2.bf16.msra.mxu0 0
    %264 = vmatprep.subr.bf16.mxu0 0
    %265 = vmatpush2.bf16.msra.mxu0 0
    %266 = vmatprep.subr.bf16.mxu0 0
    %267 = vmatpush2.bf16.msra.mxu0 0
    %268 = vmatprep.subr.bf16.mxu0 0
    %269 = vmatpush2.bf16.msra.mxu0 0
    %270 = vmatprep.subr.bf16.mxu0 0
    %271 = vmatpush2.bf16.msra.mxu0 0
    %272 = vmatprep.subr.bf16.mxu0 0
    %273 = vmatpush2.bf16.msra.mxu0 0
    %274 = vmatprep.subr.bf16.mxu0 0
    %275 = vmatpush2.bf16.msra.mxu0 0
    %276 = vmatprep.mubr.bf16.mxu0 0
    %277 = vmatmul.mubr.bf16.gmra.mxu0 %v149
    %v278 = vpop.f32.mrf.mxu0
    %v279 = vadd.f32 %v133, %v278
    %v280 = vpop.f32.mrf.mxu0
    %v281 = vpop.f32.mrf.mxu0
    %v282 = vadd.f32 %v133, %v281
    %v283 = vpop.f32.mrf.mxu0
    %284 = vmatprep.mubr.bf16.mxu0 0
    %285 = vmatmul.mubr.bf16.gmra.mxu0 %v152
    %v286 = vpop.f32.mrf.mxu0
    %v287 = vadd.f32 %v133, %v286
    %v288 = vpop.f32.mrf.mxu0
    %v289 = vpop.f32.mrf.mxu0
    %v290 = vadd.f32 %v133, %v289
    %v291 = vpop.f32.mrf.mxu0
    %292 = vmatprep.mubr.bf16.mxu0 0
    %293 = vmatmul.mubr.bf16.gmra.mxu0 %v155
    %v294 = vpop.f32.mrf.mxu0
    %v295 = vadd.f32 %v133, %v294
    %v296 = vpop.f32.mrf.mxu0
    %v297 = vpop.f32.mrf.mxu0
    %v298 = vadd.f32 %v133, %v297
    %v299 = vpop.f32.mrf.mxu0
    %300 = vmatprep.mubr.bf16.mxu0 0
    %301 = vmatmul.mubr.bf16.gmra.mxu0 %v158
    %v302 = vpop.f32.mrf.mxu0
    %v303 = vadd.f32 %v133, %v302
    %v304 = vpop.f32.mrf.mxu0
    %v305 = vpop.f32.mrf.mxu0
    %v306 = vadd.f32 %v133, %v305
    %v307 = vpop.f32.mrf.mxu0
    %308 = vmatprep.mubr.bf16.mxu0 0
    %309 = vmatmul.mubr.bf16.gmra.mxu0 %v161
    %v310 = vpop.f32.mrf.mxu0
    %v311 = vadd.f32 %v133, %v310
    %v312 = vpop.f32.mrf.mxu0
    %v313 = vpop.f32.mrf.mxu0
    %v314 = vadd.f32 %v133, %v313
    %v315 = vpop.f32.mrf.mxu0
    %316 = vmatprep.mubr.bf16.mxu0 0
    %317 = vmatmul.mubr.bf16.gmra.mxu0 %v164
    %v318 = vpop.f32.mrf.mxu0
    %v319 = vadd.f32 %v133, %v318
    %v320 = vpop.f32.mrf.mxu0
    %v321 = vpop.f32.mrf.mxu0
    %v322 = vadd.f32 %v133, %v321
    %v323 = vpop.f32.mrf.mxu0
    %324 = vmatprep.mubr.bf16.mxu0 0
    %325 = vmatmul.mubr.bf16.gmra.mxu0 %v167
    %v326 = vpop.f32.mrf.mxu0
    %v327 = vadd.f32 %v133, %v326
    %v328 = vpop.f32.mrf.mxu0
    %v329 = vpop.f32.mrf.mxu0
    %v330 = vadd.f32 %v133, %v329
    %v331 = vpop.f32.mrf.mxu0
    %332 = vmatprep.mubr.bf16.mxu0 0
    %333 = vmatmul.mubr.bf16.gmra.mxu0 %v170
    %v334 = vpop.f32.mrf.mxu0
    %v335 = vadd.f32 %v133, %v334
    %v336 = vpop.f32.mrf.mxu0
    %v337 = vpop.f32.mrf.mxu0
    %v338 = vadd.f32 %v133, %v337
    %v339 = vpop.f32.mrf.mxu0
    %340 = vmatprep.mubr.bf16.mxu0 0
    %341 = vmatmul.mubr.bf16.gmra.mxu0 %v173
    %v342 = vpop.f32.mrf.mxu0
    %v343 = vadd.f32 %v133, %v342
    %v344 = vpop.f32.mrf.mxu0
    %v345 = vpop.f32.mrf.mxu0
    %v346 = vadd.f32 %v133, %v345
    %v347 = vpop.f32.mrf.mxu0
    %348 = vmatprep.mubr.bf16.mxu0 0
    %349 = vmatmul.mubr.bf16.gmra.mxu0 %v176
    %v350 = vpop.f32.mrf.mxu0
    %v351 = vadd.f32 %v133, %v350
    %v352 = vpop.f32.mrf.mxu0
    %v353 = vpop.f32.mrf.mxu0
    %v354 = vadd.f32 %v133, %v353
    %v355 = vpop.f32.mrf.mxu0
    %356 = vmatprep.mubr.bf16.mxu0 0
    %357 = vmatmul.mubr.bf16.gmra.mxu0 %v179
    %v358 = vpop.f32.mrf.mxu0
    %v359 = vadd.f32 %v133, %v358
    %v360 = vpop.f32.mrf.mxu0
    %v361 = vpop.f32.mrf.mxu0
    %v362 = vadd.f32 %v133, %v361
    %v363 = vpop.f32.mrf.mxu0
    %364 = vmatprep.mubr.bf16.mxu0 0
    %365 = vmatmul.mubr.bf16.gmra.mxu0 %v182
    %v366 = vpop.f32.mrf.mxu0
    %v367 = vadd.f32 %v133, %v366
    %v368 = vpop.f32.mrf.mxu0
    %v369 = vpop.f32.mrf.mxu0
    %v370 = vadd.f32 %v133, %v369
    %v371 = vpop.f32.mrf.mxu0
    %372 = vmatprep.mubr.bf16.mxu0 0
    %373 = vmatmul.mubr.bf16.gmra.mxu0 %v185
    %v374 = vpop.f32.mrf.mxu0
    %v375 = vadd.f32 %v133, %v374
    %v376 = vpop.f32.mrf.mxu0
    %v377 = vpop.f32.mrf.mxu0
    %v378 = vadd.f32 %v133, %v377
    %v379 = vpop.f32.mrf.mxu0
    %380 = vmatprep.mubr.bf16.mxu0 0
    %381 = vmatmul.mubr.bf16.gmra.mxu0 %v188
    %v382 = vpop.f32.mrf.mxu0
    %v383 = vadd.f32 %v133, %v382
    %v384 = vpop.f32.mrf.mxu0
    %v385 = vpop.f32.mrf.mxu0
    %v386 = vadd.f32 %v133, %v385
    %v387 = vpop.f32.mrf.mxu0
    %388 = vmatprep.mubr.bf16.mxu0 0
    %389 = vmatmul.mubr.bf16.gmra.mxu0 %v191
    %v390 = vpop.f32.mrf.mxu0
    %v391 = vadd.f32 %v133, %v390
    %v392 = vpop.f32.mrf.mxu0
    %v393 = vpop.f32.mrf.mxu0
    %v394 = vadd.f32 %v133, %v393
    %v395 = vpop.f32.mrf.mxu0
    %396 = vmatprep.mubr.bf16.mxu0 0
    %397 = vmatmul.mubr.bf16.gmra.mxu0 %v194
    %v398 = vpop.f32.mrf.mxu0
    %v399 = vadd.f32 %v133, %v398
    %v400 = vpop.f32.mrf.mxu0
    %v401 = vpop.f32.mrf.mxu0
    %v402 = vadd.f32 %v133, %v401
    %v403 = vpop.f32.mrf.mxu0
    %404 = vmatprep.mubr.bf16.mxu0 0
    %405 = vmatmul.mubr.bf16.gmra.mxu0 %v197
    %v406 = vpop.f32.mrf.mxu0
    %v407 = vadd.f32 %v133, %v406
    %v408 = vpop.f32.mrf.mxu0
    %v409 = vpop.f32.mrf.mxu0
    %v410 = vadd.f32 %v133, %v409
    %v411 = vpop.f32.mrf.mxu0
    %412 = vmatprep.mubr.bf16.mxu0 0
    %413 = vmatmul.mubr.bf16.gmra.mxu0 %v200
    %v414 = vpop.f32.mrf.mxu0
    %v415 = vadd.f32 %v133, %v414
    %v416 = vpop.f32.mrf.mxu0
    %v417 = vpop.f32.mrf.mxu0
    %v418 = vadd.f32 %v133, %v417
    %v419 = vpop.f32.mrf.mxu0
    %420 = vmatprep.mubr.bf16.mxu0 0
    %421 = vmatmul.mubr.bf16.gmra.mxu0 %v203
    %v422 = vpop.f32.mrf.mxu0
    %v423 = vadd.f32 %v133, %v422
    %v424 = vpop.f32.mrf.mxu0
    %v425 = vpop.f32.mrf.mxu0
    %v426 = vadd.f32 %v133, %v425
    %v427 = vpop.f32.mrf.mxu0
    %428 = vmatprep.mubr.bf16.mxu0 0
    %429 = vmatmul.mubr.bf16.gmra.mxu0 %v206
    %v430 = vpop.f32.mrf.mxu0
    %v431 = vadd.f32 %v133, %v430
    %v432 = vpop.f32.mrf.mxu0
    %v433 = vpop.f32.mrf.mxu0
    %v434 = vadd.f32 %v133, %v433
    %v435 = vpop.f32.mrf.mxu0
    %436 = vmatprep.mubr.bf16.mxu0 0
    %437 = vmatmul.mubr.bf16.gmra.mxu0 %v209
    %v438 = vpop.f32.mrf.mxu0
    %v439 = vadd.f32 %v133, %v438
    %v440 = vpop.f32.mrf.mxu0
    %v441 = vpop.f32.mrf.mxu0
    %v442 = vadd.f32 %v133, %v441
    %v443 = vpop.f32.mrf.mxu0
    %444 = vmatprep.mubr.bf16.mxu0 0
    %445 = vmatmul.mubr.bf16.gmra.mxu0 %v212
    %v446 = vpop.f32.mrf.mxu0
    %v447 = vadd.f32 %v133, %v446
    %v448 = vpop.f32.mrf.mxu0
    %v449 = vpop.f32.mrf.mxu0
    %v450 = vadd.f32 %v133, %v449
    %v451 = vpop.f32.mrf.mxu0
    %452 = vmatprep.mubr.bf16.mxu0 0
    %453 = vmatmul.mubr.bf16.gmra.mxu0 %v215
    %v454 = vpop.f32.mrf.mxu0
    %v455 = vadd.f32 %v133, %v454
    %v456 = vpop.f32.mrf.mxu0
    %v457 = vpop.f32.mrf.mxu0
    %v458 = vadd.f32 %v133, %v457
    %v459 = vpop.f32.mrf.mxu0
    %460 = vmatprep.mubr.bf16.mxu0 0
    %461 = vmatmul.mubr.bf16.gmra.mxu0 %v218
    %v462 = vpop.f32.mrf.mxu0
    %v463 = vadd.f32 %v133, %v462
    %v464 = vpop.f32.mrf.mxu0
    %v465 = vpop.f32.mrf.mxu0
    %v466 = vadd.f32 %v133, %v465
    %v467 = vpop.f32.mrf.mxu0
    %468 = vmatprep.mubr.bf16.mxu0 0
    %469 = vmatmul.mubr.bf16.gmra.mxu0 %v221
    %v470 = vpop.f32.mrf.mxu0
    %v471 = vadd.f32 %v133, %v470
    %v472 = vpop.f32.mrf.mxu0
    %v473 = vpop.f32.mrf.mxu0
    %v474 = vadd.f32 %v133, %v473
    %v475 = vpop.f32.mrf.mxu0
    %476 = vmatprep.mubr.bf16.mxu0 0
    %477 = vmatmul.mubr.bf16.gmra.mxu0 %v224
    %v478 = vpop.f32.mrf.mxu0
    %v479 = vadd.f32 %v133, %v478
    %v480 = vpop.f32.mrf.mxu0
    %v481 = vpop.f32.mrf.mxu0
    %v482 = vadd.f32 %v133, %v481
    %v483 = vpop.f32.mrf.mxu0
    %484 = vmatprep.mubr.bf16.mxu0 0
    %485 = vmatmul.mubr.bf16.gmra.mxu0 %v227
    %v486 = vpop.f32.mrf.mxu0
    %v487 = vadd.f32 %v133, %v486
    %v488 = vpop.f32.mrf.mxu0
    %v489 = vpop.f32.mrf.mxu0
    %v490 = vadd.f32 %v133, %v489
    %v491 = vpop.f32.mrf.mxu0
    %492 = vmatprep.mubr.bf16.mxu0 0
    %493 = vmatmul.mubr.bf16.gmra.mxu0 %v230
    %v494 = vpop.f32.mrf.mxu0
    %v495 = vadd.f32 %v133, %v494
    %v496 = vpop.f32.mrf.mxu0
    %v497 = vpop.f32.mrf.mxu0
    %v498 = vadd.f32 %v133, %v497
    %v499 = vpop.f32.mrf.mxu0
    %500 = vmatprep.mubr.bf16.mxu0 0
    %501 = vmatmul.mubr.bf16.gmra.mxu0 %v233
    %v502 = vpop.f32.mrf.mxu0
    %v503 = vadd.f32 %v133, %v502
    %v504 = vpop.f32.mrf.mxu0
    %v505 = vpop.f32.mrf.mxu0
    %v506 = vadd.f32 %v133, %v505
    %v507 = vpop.f32.mrf.mxu0
    %508 = vmatprep.mubr.bf16.mxu0 0
    %509 = vmatmul.mubr.bf16.gmra.mxu0 %v236
    %v510 = vpop.f32.mrf.mxu0
    %v511 = vadd.f32 %v133, %v510
    %v512 = vpop.f32.mrf.mxu0
    %v513 = vpop.f32.mrf.mxu0
    %v514 = vadd.f32 %v133, %v513
    %v515 = vpop.f32.mrf.mxu0
    %516 = vmatprep.mubr.bf16.mxu0 0
    %517 = vmatmul.mubr.bf16.gmra.mxu0 %v239
    %v518 = vpop.f32.mrf.mxu0
    %v519 = vadd.f32 %v133, %v518
    %v520 = vpop.f32.mrf.mxu0
    %v521 = vpop.f32.mrf.mxu0
    %v522 = vadd.f32 %v133, %v521
    %v523 = vpop.f32.mrf.mxu0
    %524 = vmatprep.mubr.bf16.mxu0 0
    %525 = vmatmul.mubr.bf16.gmra.mxu0 %v242
    %v526 = vpop.f32.mrf.mxu0
    %v527 = vadd.f32 %v133, %v526
    %v528 = vpop.f32.mrf.mxu0
    %v529 = vpop.f32.mrf.mxu0
    %v530 = vadd.f32 %v133, %v529
    %v531 = vpop.f32.mrf.mxu0
    %532 = vdwg.mxu0
    %533 = vadd.xlane.f32.xlu0 %v279
    %v534 = vpop.xlane.xlu0 %533
    %535 = vadd.xlane.f32.xlu0 %v282
    %v536 = vpop.xlane.xlu0 %535
    %537 = vadd.xlane.f32.xlu0 %v287
    %v538 = vpop.xlane.xlu0 %537
    %539 = vadd.xlane.f32.xlu0 %v290
    %v540 = vpop.xlane.xlu0 %539
    %541 = vadd.xlane.f32.xlu0 %v295
    %v542 = vpop.xlane.xlu0 %541
    %543 = vadd.xlane.f32.xlu0 %v298
    %v544 = vpop.xlane.xlu0 %543
    %545 = vadd.xlane.f32.xlu0 %v303
    %v546 = vpop.xlane.xlu0 %545
    %547 = vadd.xlane.f32.xlu0 %v306
    %v548 = vpop.xlane.xlu0 %547
    %549 = vadd.xlane.f32.xlu0 %v311
    %v550 = vpop.xlane.xlu0 %549
    %551 = vadd.xlane.f32.xlu0 %v314
    %v552 = vpop.xlane.xlu0 %551
    %553 = vadd.xlane.f32.xlu0 %v319
    %v554 = vpop.xlane.xlu0 %553
    %555 = vadd.xlane.f32.xlu0 %v322
    %v556 = vpop.xlane.xlu0 %555
    %557 = vadd.xlane.f32.xlu0 %v327
    %v558 = vpop.xlane.xlu0 %557
    %559 = vadd.xlane.f32.xlu0 %v330
    %v560 = vpop.xlane.xlu0 %559
    %561 = vadd.xlane.f32.xlu0 %v335
    %v562 = vpop.xlane.xlu0 %561
    %563 = vadd.xlane.f32.xlu0 %v338
    %v564 = vpop.xlane.xlu0 %563
    %565 = vadd.xlane.f32.xlu0 %v343
    %v566 = vpop.xlane.xlu0 %565
    %567 = vadd.xlane.f32.xlu0 %v346
    %v568 = vpop.xlane.xlu0 %567
    %569 = vadd.xlane.f32.xlu0 %v351
    %v570 = vpop.xlane.xlu0 %569
    %571 = vadd.xlane.f32.xlu0 %v354
    %v572 = vpop.xlane.xlu0 %571
    %573 = vadd.xlane.f32.xlu0 %v359
    %v574 = vpop.xlane.xlu0 %573
    %575 = vadd.xlane.f32.xlu0 %v362
    %v576 = vpop.xlane.xlu0 %575
    %577 = vadd.xlane.f32.xlu0 %v367
    %v578 = vpop.xlane.xlu0 %577
    %579 = vadd.xlane.f32.xlu0 %v370
    %v580 = vpop.xlane.xlu0 %579
    %581 = vadd.xlane.f32.xlu0 %v375
    %v582 = vpop.xlane.xlu0 %581
    %583 = vadd.xlane.f32.xlu0 %v378
    %v584 = vpop.xlane.xlu0 %583
    %585 = vadd.xlane.f32.xlu0 %v383
    %v586 = vpop.xlane.xlu0 %585
    %587 = vadd.xlane.f32.xlu0 %v386
    %v588 = vpop.xlane.xlu0 %587
    %589 = vadd.xlane.f32.xlu0 %v391
    %v590 = vpop.xlane.xlu0 %589
    %591 = vadd.xlane.f32.xlu0 %v394
    %v592 = vpop.xlane.xlu0 %591
    %593 = vadd.xlane.f32.xlu0 %v399
    %v594 = vpop.xlane.xlu0 %593
    %595 = vadd.xlane.f32.xlu0 %v402
    %v596 = vpop.xlane.xlu0 %595
    %597 = vadd.xlane.f32.xlu0 %v407
    %v598 = vpop.xlane.xlu0 %597
    %599 = vadd.xlane.f32.xlu0 %v410
    %v600 = vpop.xlane.xlu0 %599
    %601 = vadd.xlane.f32.xlu0 %v415
    %v602 = vpop.xlane.xlu0 %601
    %603 = vadd.xlane.f32.xlu0 %v418
    %v604 = vpop.xlane.xlu0 %603
    %605 = vadd.xlane.f32.xlu0 %v423
    %v606 = vpop.xlane.xlu0 %605
    %607 = vadd.xlane.f32.xlu0 %v426
    %v608 = vpop.xlane.xlu0 %607
    %609 = vadd.xlane.f32.xlu0 %v431
    %v610 = vpop.xlane.xlu0 %609
    %611 = vadd.xlane.f32.xlu0 %v434
    %v612 = vpop.xlane.xlu0 %611
    %613 = vadd.xlane.f32.xlu0 %v439
    %v614 = vpop.xlane.xlu0 %613
    %615 = vadd.xlane.f32.xlu0 %v442
    %v616 = vpop.xlane.xlu0 %615
    %617 = vadd.xlane.f32.xlu0 %v447
    %v618 = vpop.xlane.xlu0 %617
    %619 = vadd.xlane.f32.xlu0 %v450
    %v620 = vpop.xlane.xlu0 %619
    %621 = vadd.xlane.f32.xlu0 %v455
    %v622 = vpop.xlane.xlu0 %621
    %623 = vadd.xlane.f32.xlu0 %v458
    %v624 = vpop.xlane.xlu0 %623
    %625 = vadd.xlane.f32.xlu0 %v463
    %v626 = vpop.xlane.xlu0 %625
    %627 = vadd.xlane.f32.xlu0 %v466
    %v628 = vpop.xlane.xlu0 %627
    %629 = vadd.xlane.f32.xlu0 %v471
    %v630 = vpop.xlane.xlu0 %629
    %631 = vadd.xlane.f32.xlu0 %v474
    %v632 = vpop.xlane.xlu0 %631
    %633 = vadd.xlane.f32.xlu0 %v479
    %v634 = vpop.xlane.xlu0 %633
    %635 = vadd.xlane.f32.xlu0 %v482
    %v636 = vpop.xlane.xlu0 %635
    %637 = vadd.xlane.f32.xlu0 %v487
    %v638 = vpop.xlane.xlu0 %637
    %639 = vadd.xlane.f32.xlu0 %v490
    %v640 = vpop.xlane.xlu0 %639
    %641 = vadd.xlane.f32.xlu0 %v495
    %v642 = vpop.xlane.xlu0 %641
    %643 = vadd.xlane.f32.xlu0 %v498
    %v644 = vpop.xlane.xlu0 %643
    %645 = vadd.xlane.f32.xlu0 %v503
    %v646 = vpop.xlane.xlu0 %645
    %647 = vadd.xlane.f32.xlu0 %v506
    %v648 = vpop.xlane.xlu0 %647
    %649 = vadd.xlane.f32.xlu0 %v511
    %v650 = vpop.xlane.xlu0 %649
    %651 = vadd.xlane.f32.xlu0 %v514
    %v652 = vpop.xlane.xlu0 %651
    %653 = vadd.xlane.f32.xlu0 %v519
    %v654 = vpop.xlane.xlu0 %653
    %655 = vadd.xlane.f32.xlu0 %v522
    %v656 = vpop.xlane.xlu0 %655
    %657 = vadd.xlane.f32.xlu0 %v527
    %v658 = vpop.xlane.xlu0 %657
    %659 = vadd.xlane.f32.xlu0 %v530
    %v660 = vpop.xlane.xlu0 %659
    %v661 = vrcp.pop 128.0
    %v662 = vmul.f32 %v534, %v661
    %v663 = vmul.f32 %v536, %v661
    %v664 = vmul.f32 %v538, %v661
    %v665 = vmul.f32 %v540, %v661
    %v666 = vmul.f32 %v542, %v661
    %v667 = vmul.f32 %v544, %v661
    %v668 = vmul.f32 %v546, %v661
    %v669 = vmul.f32 %v548, %v661
    %v670 = vmul.f32 %v550, %v661
    %v671 = vmul.f32 %v552, %v661
    %v672 = vmul.f32 %v554, %v661
    %v673 = vmul.f32 %v556, %v661
    %v674 = vmul.f32 %v558, %v661
    %v675 = vmul.f32 %v560, %v661
    %v676 = vmul.f32 %v562, %v661
    %v677 = vmul.f32 %v564, %v661
    %v678 = vmul.f32 %v566, %v661
    %v679 = vmul.f32 %v568, %v661
    %v680 = vmul.f32 %v570, %v661
    %v681 = vmul.f32 %v572, %v661
    %v682 = vmul.f32 %v574, %v661
    %v683 = vmul.f32 %v576, %v661
    %v684 = vmul.f32 %v578, %v661
    %v685 = vmul.f32 %v580, %v661
    %v686 = vmul.f32 %v582, %v661
    %v687 = vmul.f32 %v584, %v661
    %v688 = vmul.f32 %v586, %v661
    %v689 = vmul.f32 %v588, %v661
    %v690 = vmul.f32 %v590, %v661
    %v691 = vmul.f32 %v592, %v661
    %v692 = vmul.f32 %v594, %v661
    %v693 = vmul.f32 %v596, %v661
    %v694 = vmul.f32 %v598, %v661
    %v695 = vmul.f32 %v600, %v661
    %v696 = vmul.f32 %v602, %v661
    %v697 = vmul.f32 %v604, %v661
    %v698 = vmul.f32 %v606, %v661
    %v699 = vmul.f32 %v608, %v661
    %v700 = vmul.f32 %v610, %v661
    %v701 = vmul.f32 %v612, %v661
    %v702 = vmul.f32 %v614, %v661
    %v703 = vmul.f32 %v616, %v661
    %v704 = vmul.f32 %v618, %v661
    %v705 = vmul.f32 %v620, %v661
    %v706 = vmul.f32 %v622, %v661
    %v707 = vmul.f32 %v624, %v661
    %v708 = vmul.f32 %v626, %v661
    %v709 = vmul.f32 %v628, %v661
    %v710 = vmul.f32 %v630, %v661
    %v711 = vmul.f32 %v632, %v661
    %v712 = vmul.f32 %v634, %v661
    %v713 = vmul.f32 %v636, %v661
    %v714 = vmul.f32 %v638, %v661
    %v715 = vmul.f32 %v640, %v661
    %v716 = vmul.f32 %v642, %v661
    %v717 = vmul.f32 %v644, %v661
    %v718 = vmul.f32 %v646, %v661
    %v719 = vmul.f32 %v648, %v661
    %v720 = vmul.f32 %v650, %v661
    %v721 = vmul.f32 %v652, %v661
    %v722 = vmul.f32 %v654, %v661
    %v723 = vmul.f32 %v656, %v661
    %v724 = vmul.f32 %v658, %v661
    %v725 = vmul.f32 %v660, %v661
    %v726 = vmul.f32 %v279, %v279
    %v727 = vmul.f32 %v282, %v282
    %v728 = vmul.f32 %v287, %v287
    %v729 = vmul.f32 %v290, %v290
    %v730 = vmul.f32 %v295, %v295
    %v731 = vmul.f32 %v298, %v298
    %v732 = vmul.f32 %v303, %v303
    %v733 = vmul.f32 %v306, %v306
    %v734 = vmul.f32 %v311, %v311
    %v735 = vmul.f32 %v314, %v314
    %v736 = vmul.f32 %v319, %v319
    %v737 = vmul.f32 %v322, %v322
    %v738 = vmul.f32 %v327, %v327
    %v739 = vmul.f32 %v330, %v330
    %v740 = vmul.f32 %v335, %v335
    %v741 = vmul.f32 %v338, %v338
    %v742 = vmul.f32 %v343, %v343
    %v743 = vmul.f32 %v346, %v346
    %v744 = vmul.f32 %v351, %v351
    %v745 = vmul.f32 %v354, %v354
    %v746 = vmul.f32 %v359, %v359
    %v747 = vmul.f32 %v362, %v362
    %v748 = vmul.f32 %v367, %v367
    %v749 = vmul.f32 %v370, %v370
    %v750 = vmul.f32 %v375, %v375
    %v751 = vmul.f32 %v378, %v378
    %v752 = vmul.f32 %v383, %v383
    %v753 = vmul.f32 %v386, %v386
    %v754 = vmul.f32 %v391, %v391
    %v755 = vmul.f32 %v394, %v394
    %v756 = vmul.f32 %v399, %v399
    %v757 = vmul.f32 %v402, %v402
    %v758 = vmul.f32 %v407, %v407
    %v759 = vmul.f32 %v410, %v410
    %v760 = vmul.f32 %v415, %v415
    %v761 = vmul.f32 %v418, %v418
    %v762 = vmul.f32 %v423, %v423
    %v763 = vmul.f32 %v426, %v426
    %v764 = vmul.f32 %v431, %v431
    %v765 = vmul.f32 %v434, %v434
    %v766 = vmul.f32 %v439, %v439
    %v767 = vmul.f32 %v442, %v442
    %v768 = vmul.f32 %v447, %v447
    %v769 = vmul.f32 %v450, %v450
    %v770 = vmul.f32 %v455, %v455
    %v771 = vmul.f32 %v458, %v458
    %v772 = vmul.f32 %v463, %v463
    %v773 = vmul.f32 %v466, %v466
    %v774 = vmul.f32 %v471, %v471
    %v775 = vmul.f32 %v474, %v474
    %v776 = vmul.f32 %v479, %v479
    %v777 = vmul.f32 %v482, %v482
    %v778 = vmul.f32 %v487, %v487
    %v779 = vmul.f32 %v490, %v490
    %v780 = vmul.f32 %v495, %v495
    %v781 = vmul.f32 %v498, %v498
    %v782 = vmul.f32 %v503, %v503
    %v783 = vmul.f32 %v506, %v506
    %v784 = vmul.f32 %v511, %v511
    %v785 = vmul.f32 %v514, %v514
    %v786 = vmul.f32 %v519, %v519
    %v787 = vmul.f32 %v522, %v522
    %v788 = vmul.f32 %v527, %v527
    %v789 = vmul.f32 %v530, %v530
    %790 = vadd.xlane.f32.xlu0 %v726
    %v791 = vpop.xlane.xlu0 %790
    %792 = vadd.xlane.f32.xlu0 %v727
    %v793 = vpop.xlane.xlu0 %792
    %794 = vadd.xlane.f32.xlu0 %v728
    %v795 = vpop.xlane.xlu0 %794
    %796 = vadd.xlane.f32.xlu0 %v729
    %v797 = vpop.xlane.xlu0 %796
    %798 = vadd.xlane.f32.xlu0 %v730
    %v799 = vpop.xlane.xlu0 %798
    %800 = vadd.xlane.f32.xlu0 %v731
    %v801 = vpop.xlane.xlu0 %800
    %802 = vadd.xlane.f32.xlu0 %v732
    %v803 = vpop.xlane.xlu0 %802
    %804 = vadd.xlane.f32.xlu0 %v733
    %v805 = vpop.xlane.xlu0 %804
    %806 = vadd.xlane.f32.xlu0 %v734
    %v807 = vpop.xlane.xlu0 %806
    %808 = vadd.xlane.f32.xlu0 %v735
    %v809 = vpop.xlane.xlu0 %808
    %810 = vadd.xlane.f32.xlu0 %v736
    %v811 = vpop.xlane.xlu0 %810
    %812 = vadd.xlane.f32.xlu0 %v737
    %v813 = vpop.xlane.xlu0 %812
    %814 = vadd.xlane.f32.xlu0 %v738
    %v815 = vpop.xlane.xlu0 %814
    %816 = vadd.xlane.f32.xlu0 %v739
    %v817 = vpop.xlane.xlu0 %816
    %818 = vadd.xlane.f32.xlu0 %v740
    %v819 = vpop.xlane.xlu0 %818
    %820 = vadd.xlane.f32.xlu0 %v741
    %v821 = vpop.xlane.xlu0 %820
    %822 = vadd.xlane.f32.xlu0 %v742
    %v823 = vpop.xlane.xlu0 %822
    %824 = vadd.xlane.f32.xlu0 %v743
    %v825 = vpop.xlane.xlu0 %824
    %826 = vadd.xlane.f32.xlu0 %v744
    %v827 = vpop.xlane.xlu0 %826
    %828 = vadd.xlane.f32.xlu0 %v745
    %v829 = vpop.xlane.xlu0 %828
    %830 = vadd.xlane.f32.xlu0 %v746
    %v831 = vpop.xlane.xlu0 %830
    %832 = vadd.xlane.f32.xlu0 %v747
    %v833 = vpop.xlane.xlu0 %832
    %834 = vadd.xlane.f32.xlu0 %v748
    %v835 = vpop.xlane.xlu0 %834
    %836 = vadd.xlane.f32.xlu0 %v749
    %v837 = vpop.xlane.xlu0 %836
    %838 = vadd.xlane.f32.xlu0 %v750
    %v839 = vpop.xlane.xlu0 %838
    %840 = vadd.xlane.f32.xlu0 %v751
    %v841 = vpop.xlane.xlu0 %840
    %842 = vadd.xlane.f32.xlu0 %v752
    %v843 = vpop.xlane.xlu0 %842
    %844 = vadd.xlane.f32.xlu0 %v753
    %v845 = vpop.xlane.xlu0 %844
    %846 = vadd.xlane.f32.xlu0 %v754
    %v847 = vpop.xlane.xlu0 %846
    %848 = vadd.xlane.f32.xlu0 %v755
    %v849 = vpop.xlane.xlu0 %848
    %850 = vadd.xlane.f32.xlu0 %v756
    %v851 = vpop.xlane.xlu0 %850
    %852 = vadd.xlane.f32.xlu0 %v757
    %v853 = vpop.xlane.xlu0 %852
    %854 = vadd.xlane.f32.xlu0 %v758
    %v855 = vpop.xlane.xlu0 %854
    %856 = vadd.xlane.f32.xlu0 %v759
    %v857 = vpop.xlane.xlu0 %856
    %858 = vadd.xlane.f32.xlu0 %v760
    %v859 = vpop.xlane.xlu0 %858
    %860 = vadd.xlane.f32.xlu0 %v761
    %v861 = vpop.xlane.xlu0 %860
    %862 = vadd.xlane.f32.xlu0 %v762
    %v863 = vpop.xlane.xlu0 %862
    %864 = vadd.xlane.f32.xlu0 %v763
    %v865 = vpop.xlane.xlu0 %864
    %866 = vadd.xlane.f32.xlu0 %v764
    %v867 = vpop.xlane.xlu0 %866
    %868 = vadd.xlane.f32.xlu0 %v765
    %v869 = vpop.xlane.xlu0 %868
    %870 = vadd.xlane.f32.xlu0 %v766
    %v871 = vpop.xlane.xlu0 %870
    %872 = vadd.xlane.f32.xlu0 %v767
    %v873 = vpop.xlane.xlu0 %872
    %874 = vadd.xlane.f32.xlu0 %v768
    %v875 = vpop.xlane.xlu0 %874
    %876 = vadd.xlane.f32.xlu0 %v769
    %v877 = vpop.xlane.xlu0 %876
    %878 = vadd.xlane.f32.xlu0 %v770
    %v879 = vpop.xlane.xlu0 %878
    %880 = vadd.xlane.f32.xlu0 %v771
    %v881 = vpop.xlane.xlu0 %880
    %882 = vadd.xlane.f32.xlu0 %v772
    %v883 = vpop.xlane.xlu0 %882
    %884 = vadd.xlane.f32.xlu0 %v773
    %v885 = vpop.xlane.xlu0 %884
    %886 = vadd.xlane.f32.xlu0 %v774
    %v887 = vpop.xlane.xlu0 %886
    %888 = vadd.xlane.f32.xlu0 %v775
    %v889 = vpop.xlane.xlu0 %888
    %890 = vadd.xlane.f32.xlu0 %v776
    %v891 = vpop.xlane.xlu0 %890
    %892 = vadd.xlane.f32.xlu0 %v777
    %v893 = vpop.xlane.xlu0 %892
    %894 = vadd.xlane.f32.xlu0 %v778
    %v895 = vpop.xlane.xlu0 %894
    %896 = vadd.xlane.f32.xlu0 %v779
    %v897 = vpop.xlane.xlu0 %896
    %898 = vadd.xlane.f32.xlu0 %v780
    %v899 = vpop.xlane.xlu0 %898
    %900 = vadd.xlane.f32.xlu0 %v781
    %v901 = vpop.xlane.xlu0 %900
    %902 = vadd.xlane.f32.xlu0 %v782
    %v903 = vpop.xlane.xlu0 %902
    %904 = vadd.xlane.f32.xlu0 %v783
    %v905 = vpop.xlane.xlu0 %904
    %906 = vadd.xlane.f32.xlu0 %v784
    %v907 = vpop.xlane.xlu0 %906
    %908 = vadd.xlane.f32.xlu0 %v785
    %v909 = vpop.xlane.xlu0 %908
    %910 = vadd.xlane.f32.xlu0 %v786
    %v911 = vpop.xlane.xlu0 %910
    %912 = vadd.xlane.f32.xlu0 %v787
    %v913 = vpop.xlane.xlu0 %912
    %914 = vadd.xlane.f32.xlu0 %v788
    %v915 = vpop.xlane.xlu0 %914
    %916 = vadd.xlane.f32.xlu0 %v789
    %v917 = vpop.xlane.xlu0 %916
    %v918 = vmul.f32 %v791, %v661
    %v919 = vmul.f32 %v793, %v661
    %v920 = vmul.f32 %v795, %v661
    %v921 = vmul.f32 %v797, %v661
    %v922 = vmul.f32 %v799, %v661
    %v923 = vmul.f32 %v801, %v661
    %v924 = vmul.f32 %v803, %v661
    %v925 = vmul.f32 %v805, %v661
    %v926 = vmul.f32 %v807, %v661
    %v927 = vmul.f32 %v809, %v661
    %v928 = vmul.f32 %v811, %v661
    %v929 = vmul.f32 %v813, %v661
    %v930 = vmul.f32 %v815, %v661
    %v931 = vmul.f32 %v817, %v661
    %v932 = vmul.f32 %v819, %v661
    %v933 = vmul.f32 %v821, %v661
    %v934 = vmul.f32 %v823, %v661
    %v935 = vmul.f32 %v825, %v661
    %v936 = vmul.f32 %v827, %v661
    %v937 = vmul.f32 %v829, %v661
    %v938 = vmul.f32 %v831, %v661
    %v939 = vmul.f32 %v833, %v661
    %v940 = vmul.f32 %v835, %v661
    %v941 = vmul.f32 %v837, %v661
    %v942 = vmul.f32 %v839, %v661
    %v943 = vmul.f32 %v841, %v661
    %v944 = vmul.f32 %v843, %v661
    %v945 = vmul.f32 %v845, %v661
    %v946 = vmul.f32 %v847, %v661
    %v947 = vmul.f32 %v849, %v661
    %v948 = vmul.f32 %v851, %v661
    %v949 = vmul.f32 %v853, %v661
    %v950 = vmul.f32 %v855, %v661
    %v951 = vmul.f32 %v857, %v661
    %v952 = vmul.f32 %v859, %v661
    %v953 = vmul.f32 %v861, %v661
    %v954 = vmul.f32 %v863, %v661
    %v955 = vmul.f32 %v865, %v661
    %v956 = vmul.f32 %v867, %v661
    %v957 = vmul.f32 %v869, %v661
    %v958 = vmul.f32 %v871, %v661
    %v959 = vmul.f32 %v873, %v661
    %v960 = vmul.f32 %v875, %v661
    %v961 = vmul.f32 %v877, %v661
    %v962 = vmul.f32 %v879, %v661
    %v963 = vmul.f32 %v881, %v661
    %v964 = vmul.f32 %v883, %v661
    %v965 = vmul.f32 %v885, %v661
    %v966 = vmul.f32 %v887, %v661
    %v967 = vmul.f32 %v889, %v661
    %v968 = vmul.f32 %v891, %v661
    %v969 = vmul.f32 %v893, %v661
    %v970 = vmul.f32 %v895, %v661
    %v971 = vmul.f32 %v897, %v661
    %v972 = vmul.f32 %v899, %v661
    %v973 = vmul.f32 %v901, %v661
    %v974 = vmul.f32 %v903, %v661
    %v975 = vmul.f32 %v905, %v661
    %v976 = vmul.f32 %v907, %v661
    %v977 = vmul.f32 %v909, %v661
    %v978 = vmul.f32 %v911, %v661
    %v979 = vmul.f32 %v913, %v661
    %v980 = vmul.f32 %v915, %v661
    %v981 = vmul.f32 %v917, %v661
    %v982 = vmul.f32 %v662, %v662
    %v983 = vmul.f32 %v663, %v663
    %v984 = vmul.f32 %v664, %v664
    %v985 = vmul.f32 %v665, %v665
    %v986 = vmul.f32 %v666, %v666
    %v987 = vmul.f32 %v667, %v667
    %v988 = vmul.f32 %v668, %v668
    %v989 = vmul.f32 %v669, %v669
    %v990 = vmul.f32 %v670, %v670
    %v991 = vmul.f32 %v671, %v671
    %v992 = vmul.f32 %v672, %v672
    %v993 = vmul.f32 %v673, %v673
    %v994 = vmul.f32 %v674, %v674
    %v995 = vmul.f32 %v675, %v675
    %v996 = vmul.f32 %v676, %v676
    %v997 = vmul.f32 %v677, %v677
    %v998 = vmul.f32 %v678, %v678
    %v999 = vmul.f32 %v679, %v679
    %v1000 = vmul.f32 %v680, %v680
    %v1001 = vmul.f32 %v681, %v681
    %v1002 = vmul.f32 %v682, %v682
    %v1003 = vmul.f32 %v683, %v683
    %v1004 = vmul.f32 %v684, %v684
    %v1005 = vmul.f32 %v685, %v685
    %v1006 = vmul.f32 %v686, %v686
    %v1007 = vmul.f32 %v687, %v687
    %v1008 = vmul.f32 %v688, %v688
    %v1009 = vmul.f32 %v689, %v689
    %v1010 = vmul.f32 %v690, %v690
    %v1011 = vmul.f32 %v691, %v691
    %v1012 = vmul.f32 %v692, %v692
    %v1013 = vmul.f32 %v693, %v693
    %v1014 = vmul.f32 %v694, %v694
    %v1015 = vmul.f32 %v695, %v695
    %v1016 = vmul.f32 %v696, %v696
    %v1017 = vmul.f32 %v697, %v697
    %v1018 = vmul.f32 %v698, %v698
    %v1019 = vmul.f32 %v699, %v699
    %v1020 = vmul.f32 %v700, %v700
    %v1021 = vmul.f32 %v701, %v701
    %v1022 = vmul.f32 %v702, %v702
    %v1023 = vmul.f32 %v703, %v703
    %v1024 = vmul.f32 %v704, %v704
    %v1025 = vmul.f32 %v705, %v705
    %v1026 = vmul.f32 %v706, %v706
    %v1027 = vmul.f32 %v707, %v707
    %v1028 = vmul.f32 %v708, %v708
    %v1029 = vmul.f32 %v709, %v709
    %v1030 = vmul.f32 %v710, %v710
    %v1031 = vmul.f32 %v711, %v711
    %v1032 = vmul.f32 %v712, %v712
    %v1033 = vmul.f32 %v713, %v713
    %v1034 = vmul.f32 %v714, %v714
    %v1035 = vmul.f32 %v715, %v715
    %v1036 = vmul.f32 %v716, %v716
    %v1037 = vmul.f32 %v717, %v717
    %v1038 = vmul.f32 %v718, %v718
    %v1039 = vmul.f32 %v719, %v719
    %v1040 = vmul.f32 %v720, %v720
    %v1041 = vmul.f32 %v721, %v721
    %v1042 = vmul.f32 %v722, %v722
    %v1043 = vmul.f32 %v723, %v723
    %v1044 = vmul.f32 %v724, %v724
    %v1045 = vmul.f32 %v725, %v725
    %v1046 = vsub.f32 %v918, %v982
    %v1047 = vsub.f32 %v919, %v983
    %v1048 = vsub.f32 %v920, %v984
    %v1049 = vsub.f32 %v921, %v985
    %v1050 = vsub.f32 %v922, %v986
    %v1051 = vsub.f32 %v923, %v987
    %v1052 = vsub.f32 %v924, %v988
    %v1053 = vsub.f32 %v925, %v989
    %v1054 = vsub.f32 %v926, %v990
    %v1055 = vsub.f32 %v927, %v991
    %v1056 = vsub.f32 %v928, %v992
    %v1057 = vsub.f32 %v929, %v993
    %v1058 = vsub.f32 %v930, %v994
    %v1059 = vsub.f32 %v931, %v995
    %v1060 = vsub.f32 %v932, %v996
    %v1061 = vsub.f32 %v933, %v997
    %v1062 = vsub.f32 %v934, %v998
    %v1063 = vsub.f32 %v935, %v999
    %v1064 = vsub.f32 %v936, %v1000
    %v1065 = vsub.f32 %v937, %v1001
    %v1066 = vsub.f32 %v938, %v1002
    %v1067 = vsub.f32 %v939, %v1003
    %v1068 = vsub.f32 %v940, %v1004
    %v1069 = vsub.f32 %v941, %v1005
    %v1070 = vsub.f32 %v942, %v1006
    %v1071 = vsub.f32 %v943, %v1007
    %v1072 = vsub.f32 %v944, %v1008
    %v1073 = vsub.f32 %v945, %v1009
    %v1074 = vsub.f32 %v946, %v1010
    %v1075 = vsub.f32 %v947, %v1011
    %v1076 = vsub.f32 %v948, %v1012
    %v1077 = vsub.f32 %v949, %v1013
    %v1078 = vsub.f32 %v950, %v1014
    %v1079 = vsub.f32 %v951, %v1015
    %v1080 = vsub.f32 %v952, %v1016
    %v1081 = vsub.f32 %v953, %v1017
    %v1082 = vsub.f32 %v954, %v1018
    %v1083 = vsub.f32 %v955, %v1019
    %v1084 = vsub.f32 %v956, %v1020
    %v1085 = vsub.f32 %v957, %v1021
    %v1086 = vsub.f32 %v958, %v1022
    %v1087 = vsub.f32 %v959, %v1023
    %v1088 = vsub.f32 %v960, %v1024
    %v1089 = vsub.f32 %v961, %v1025
    %v1090 = vsub.f32 %v962, %v1026
    %v1091 = vsub.f32 %v963, %v1027
    %v1092 = vsub.f32 %v964, %v1028
    %v1093 = vsub.f32 %v965, %v1029
    %v1094 = vsub.f32 %v966, %v1030
    %v1095 = vsub.f32 %v967, %v1031
    %v1096 = vsub.f32 %v968, %v1032
    %v1097 = vsub.f32 %v969, %v1033
    %v1098 = vsub.f32 %v970, %v1034
    %v1099 = vsub.f32 %v971, %v1035
    %v1100 = vsub.f32 %v972, %v1036
    %v1101 = vsub.f32 %v973, %v1037
    %v1102 = vsub.f32 %v974, %v1038
    %v1103 = vsub.f32 %v975, %v1039
    %v1104 = vsub.f32 %v976, %v1040
    %v1105 = vsub.f32 %v977, %v1041
    %v1106 = vsub.f32 %v978, %v1042
    %v1107 = vsub.f32 %v979, %v1043
    %v1108 = vsub.f32 %v980, %v1044
    %v1109 = vsub.f32 %v981, %v1045
    %v1110 = vmax.f32 %v1046, 0.0
    %v1111 = vmax.f32 %v1047, 0.0
    %v1112 = vmax.f32 %v1048, 0.0
    %v1113 = vmax.f32 %v1049, 0.0
    %v1114 = vmax.f32 %v1050, 0.0
    %v1115 = vmax.f32 %v1051, 0.0
    %v1116 = vmax.f32 %v1052, 0.0
    %v1117 = vmax.f32 %v1053, 0.0
    %v1118 = vmax.f32 %v1054, 0.0
    %v1119 = vmax.f32 %v1055, 0.0
    %v1120 = vmax.f32 %v1056, 0.0
    %v1121 = vmax.f32 %v1057, 0.0
    %v1122 = vmax.f32 %v1058, 0.0
    %v1123 = vmax.f32 %v1059, 0.0
    %v1124 = vmax.f32 %v1060, 0.0
    %v1125 = vmax.f32 %v1061, 0.0
    %v1126 = vmax.f32 %v1062, 0.0
    %v1127 = vmax.f32 %v1063, 0.0
    %v1128 = vmax.f32 %v1064, 0.0
    %v1129 = vmax.f32 %v1065, 0.0
    %v1130 = vmax.f32 %v1066, 0.0
    %v1131 = vmax.f32 %v1067, 0.0
    %v1132 = vmax.f32 %v1068, 0.0
    %v1133 = vmax.f32 %v1069, 0.0
    %v1134 = vmax.f32 %v1070, 0.0
    %v1135 = vmax.f32 %v1071, 0.0
    %v1136 = vmax.f32 %v1072, 0.0
    %v1137 = vmax.f32 %v1073, 0.0
    %v1138 = vmax.f32 %v1074, 0.0
    %v1139 = vmax.f32 %v1075, 0.0
    %v1140 = vmax.f32 %v1076, 0.0
    %v1141 = vmax.f32 %v1077, 0.0
    %v1142 = vmax.f32 %v1078, 0.0
    %v1143 = vmax.f32 %v1079, 0.0
    %v1144 = vmax.f32 %v1080, 0.0
    %v1145 = vmax.f32 %v1081, 0.0
    %v1146 = vmax.f32 %v1082, 0.0
    %v1147 = vmax.f32 %v1083, 0.0
    %v1148 = vmax.f32 %v1084, 0.0
    %v1149 = vmax.f32 %v1085, 0.0
    %v1150 = vmax.f32 %v1086, 0.0
    %v1151 = vmax.f32 %v1087, 0.0
    %v1152 = vmax.f32 %v1088, 0.0
    %v1153 = vmax.f32 %v1089, 0.0
    %v1154 = vmax.f32 %v1090, 0.0
    %v1155 = vmax.f32 %v1091, 0.0
    %v1156 = vmax.f32 %v1092, 0.0
    %v1157 = vmax.f32 %v1093, 0.0
    %v1158 = vmax.f32 %v1094, 0.0
    %v1159 = vmax.f32 %v1095, 0.0
    %v1160 = vmax.f32 %v1096, 0.0
    %v1161 = vmax.f32 %v1097, 0.0
    %v1162 = vmax.f32 %v1098, 0.0
    %v1163 = vmax.f32 %v1099, 0.0
    %v1164 = vmax.f32 %v1100, 0.0
    %v1165 = vmax.f32 %v1101, 0.0
    %v1166 = vmax.f32 %v1102, 0.0
    %v1167 = vmax.f32 %v1103, 0.0
    %v1168 = vmax.f32 %v1104, 0.0
    %v1169 = vmax.f32 %v1105, 0.0
    %v1170 = vmax.f32 %v1106, 0.0
    %v1171 = vmax.f32 %v1107, 0.0
    %v1172 = vmax.f32 %v1108, 0.0
    %v1173 = vmax.f32 %v1109, 0.0
    %v1174 = vsub.f32 %v279, %v662
    %v1175 = vsub.f32 %v282, %v663
    %v1176 = vsub.f32 %v287, %v664
    %v1177 = vsub.f32 %v290, %v665
    %v1178 = vsub.f32 %v295, %v666
    %v1179 = vsub.f32 %v298, %v667
    %v1180 = vsub.f32 %v303, %v668
    %v1181 = vsub.f32 %v306, %v669
    %v1182 = vsub.f32 %v311, %v670
    %v1183 = vsub.f32 %v314, %v671
    %v1184 = vsub.f32 %v319, %v672
    %v1185 = vsub.f32 %v322, %v673
    %v1186 = vsub.f32 %v327, %v674
    %v1187 = vsub.f32 %v330, %v675
    %v1188 = vsub.f32 %v335, %v676
    %v1189 = vsub.f32 %v338, %v677
    %v1190 = vsub.f32 %v343, %v678
    %v1191 = vsub.f32 %v346, %v679
    %v1192 = vsub.f32 %v351, %v680
    %v1193 = vsub.f32 %v354, %v681
    %v1194 = vsub.f32 %v359, %v682
    %v1195 = vsub.f32 %v362, %v683
    %v1196 = vsub.f32 %v367, %v684
    %v1197 = vsub.f32 %v370, %v685
    %v1198 = vsub.f32 %v375, %v686
    %v1199 = vsub.f32 %v378, %v687
    %v1200 = vsub.f32 %v383, %v688
    %v1201 = vsub.f32 %v386, %v689
    %v1202 = vsub.f32 %v391, %v690
    %v1203 = vsub.f32 %v394, %v691
    %v1204 = vsub.f32 %v399, %v692
    %v1205 = vsub.f32 %v402, %v693
    %v1206 = vsub.f32 %v407, %v694
    %v1207 = vsub.f32 %v410, %v695
    %v1208 = vsub.f32 %v415, %v696
    %v1209 = vsub.f32 %v418, %v697
    %v1210 = vsub.f32 %v423, %v698
    %v1211 = vsub.f32 %v426, %v699
    %v1212 = vsub.f32 %v431, %v700
    %v1213 = vsub.f32 %v434, %v701
    %v1214 = vsub.f32 %v439, %v702
    %v1215 = vsub.f32 %v442, %v703
    %v1216 = vsub.f32 %v447, %v704
    %v1217 = vsub.f32 %v450, %v705
    %v1218 = vsub.f32 %v455, %v706
    %v1219 = vsub.f32 %v458, %v707
    %v1220 = vsub.f32 %v463, %v708
    %v1221 = vsub.f32 %v466, %v709
    %v1222 = vsub.f32 %v471, %v710
    %v1223 = vsub.f32 %v474, %v711
    %v1224 = vsub.f32 %v479, %v712
    %v1225 = vsub.f32 %v482, %v713
    %v1226 = vsub.f32 %v487, %v714
    %v1227 = vsub.f32 %v490, %v715
    %v1228 = vsub.f32 %v495, %v716
    %v1229 = vsub.f32 %v498, %v717
    %v1230 = vsub.f32 %v503, %v718
    %v1231 = vsub.f32 %v506, %v719
    %v1232 = vsub.f32 %v511, %v720
    %v1233 = vsub.f32 %v514, %v721
    %v1234 = vsub.f32 %v519, %v722
    %v1235 = vsub.f32 %v522, %v723
    %v1236 = vsub.f32 %v527, %v724
    %v1237 = vsub.f32 %v530, %v725
    %v1238 = vadd.f32 %v1110, 1e-05
    %v1239 = vadd.f32 %v1111, 1e-05
    %v1240 = vadd.f32 %v1112, 1e-05
    %v1241 = vadd.f32 %v1113, 1e-05
    %v1242 = vadd.f32 %v1114, 1e-05
    %v1243 = vadd.f32 %v1115, 1e-05
    %v1244 = vadd.f32 %v1116, 1e-05
    %v1245 = vadd.f32 %v1117, 1e-05
    %v1246 = vadd.f32 %v1118, 1e-05
    %v1247 = vadd.f32 %v1119, 1e-05
    %v1248 = vadd.f32 %v1120, 1e-05
    %v1249 = vadd.f32 %v1121, 1e-05
    %v1250 = vadd.f32 %v1122, 1e-05
    %v1251 = vadd.f32 %v1123, 1e-05
    %v1252 = vadd.f32 %v1124, 1e-05
    %v1253 = vadd.f32 %v1125, 1e-05
    %v1254 = vadd.f32 %v1126, 1e-05
    %v1255 = vadd.f32 %v1127, 1e-05
    %v1256 = vadd.f32 %v1128, 1e-05
    %v1257 = vadd.f32 %v1129, 1e-05
    %v1258 = vadd.f32 %v1130, 1e-05
    %v1259 = vadd.f32 %v1131, 1e-05
    %v1260 = vadd.f32 %v1132, 1e-05
    %v1261 = vadd.f32 %v1133, 1e-05
    %v1262 = vadd.f32 %v1134, 1e-05
    %v1263 = vadd.f32 %v1135, 1e-05
    %v1264 = vadd.f32 %v1136, 1e-05
    %v1265 = vadd.f32 %v1137, 1e-05
    %v1266 = vadd.f32 %v1138, 1e-05
    %v1267 = vadd.f32 %v1139, 1e-05
    %v1268 = vadd.f32 %v1140, 1e-05
    %v1269 = vadd.f32 %v1141, 1e-05
    %v1270 = vadd.f32 %v1142, 1e-05
    %v1271 = vadd.f32 %v1143, 1e-05
    %v1272 = vadd.f32 %v1144, 1e-05
    %v1273 = vadd.f32 %v1145, 1e-05
    %v1274 = vadd.f32 %v1146, 1e-05
    %v1275 = vadd.f32 %v1147, 1e-05
    %v1276 = vadd.f32 %v1148, 1e-05
    %v1277 = vadd.f32 %v1149, 1e-05
    %v1278 = vadd.f32 %v1150, 1e-05
    %v1279 = vadd.f32 %v1151, 1e-05
    %v1280 = vadd.f32 %v1152, 1e-05
    %v1281 = vadd.f32 %v1153, 1e-05
    %v1282 = vadd.f32 %v1154, 1e-05
    %v1283 = vadd.f32 %v1155, 1e-05
    %v1284 = vadd.f32 %v1156, 1e-05
    %v1285 = vadd.f32 %v1157, 1e-05
    %v1286 = vadd.f32 %v1158, 1e-05
    %v1287 = vadd.f32 %v1159, 1e-05
    %v1288 = vadd.f32 %v1160, 1e-05
    %v1289 = vadd.f32 %v1161, 1e-05
    %v1290 = vadd.f32 %v1162, 1e-05
    %v1291 = vadd.f32 %v1163, 1e-05
    %v1292 = vadd.f32 %v1164, 1e-05
    %v1293 = vadd.f32 %v1165, 1e-05
    %v1294 = vadd.f32 %v1166, 1e-05
    %v1295 = vadd.f32 %v1167, 1e-05
    %v1296 = vadd.f32 %v1168, 1e-05
    %v1297 = vadd.f32 %v1169, 1e-05
    %v1298 = vadd.f32 %v1170, 1e-05
    %v1299 = vadd.f32 %v1171, 1e-05
    %v1300 = vadd.f32 %v1172, 1e-05
    %v1301 = vadd.f32 %v1173, 1e-05
    %v1302 = vrsqrt.pop %v1238
    %v1303 = vrsqrt.pop %v1239
    %v1304 = vrsqrt.pop %v1240
    %v1305 = vrsqrt.pop %v1241
    %v1306 = vrsqrt.pop %v1242
    %v1307 = vrsqrt.pop %v1243
    %v1308 = vrsqrt.pop %v1244
    %v1309 = vrsqrt.pop %v1245
    %v1310 = vrsqrt.pop %v1246
    %v1311 = vrsqrt.pop %v1247
    %v1312 = vrsqrt.pop %v1248
    %v1313 = vrsqrt.pop %v1249
    %v1314 = vrsqrt.pop %v1250
    %v1315 = vrsqrt.pop %v1251
    %v1316 = vrsqrt.pop %v1252
    %v1317 = vrsqrt.pop %v1253
    %v1318 = vrsqrt.pop %v1254
    %v1319 = vrsqrt.pop %v1255
    %v1320 = vrsqrt.pop %v1256
    %v1321 = vrsqrt.pop %v1257
    %v1322 = vrsqrt.pop %v1258
    %v1323 = vrsqrt.pop %v1259
    %v1324 = vrsqrt.pop %v1260
    %v1325 = vrsqrt.pop %v1261
    %v1326 = vrsqrt.pop %v1262
    %v1327 = vrsqrt.pop %v1263
    %v1328 = vrsqrt.pop %v1264
    %v1329 = vrsqrt.pop %v1265
    %v1330 = vrsqrt.pop %v1266
    %v1331 = vrsqrt.pop %v1267
    %v1332 = vrsqrt.pop %v1268
    %v1333 = vrsqrt.pop %v1269
    %v1334 = vrsqrt.pop %v1270
    %v1335 = vrsqrt.pop %v1271
    %v1336 = vrsqrt.pop %v1272
    %v1337 = vrsqrt.pop %v1273
    %v1338 = vrsqrt.pop %v1274
    %v1339 = vrsqrt.pop %v1275
    %v1340 = vrsqrt.pop %v1276
    %v1341 = vrsqrt.pop %v1277
    %v1342 = vrsqrt.pop %v1278
    %v1343 = vrsqrt.pop %v1279
    %v1344 = vrsqrt.pop %v1280
    %v1345 = vrsqrt.pop %v1281
    %v1346 = vrsqrt.pop %v1282
    %v1347 = vrsqrt.pop %v1283
    %v1348 = vrsqrt.pop %v1284
    %v1349 = vrsqrt.pop %v1285
    %v1350 = vrsqrt.pop %v1286
    %v1351 = vrsqrt.pop %v1287
    %v1352 = vrsqrt.pop %v1288
    %v1353 = vrsqrt.pop %v1289
    %v1354 = vrsqrt.pop %v1290
    %v1355 = vrsqrt.pop %v1291
    %v1356 = vrsqrt.pop %v1292
    %v1357 = vrsqrt.pop %v1293
    %v1358 = vrsqrt.pop %v1294
    %v1359 = vrsqrt.pop %v1295
    %v1360 = vrsqrt.pop %v1296
    %v1361 = vrsqrt.pop %v1297
    %v1362 = vrsqrt.pop %v1298
    %v1363 = vrsqrt.pop %v1299
    %v1364 = vrsqrt.pop %v1300
    %v1365 = vrsqrt.pop %v1301
    %v1366 = vmul.f32 %v1174, %v1302
    %v1367 = vmul.f32 %v1175, %v1303
    %v1368 = vmul.f32 %v1176, %v1304
    %v1369 = vmul.f32 %v1177, %v1305
    %v1370 = vmul.f32 %v1178, %v1306
    %v1371 = vmul.f32 %v1179, %v1307
    %v1372 = vmul.f32 %v1180, %v1308
    %v1373 = vmul.f32 %v1181, %v1309
    %v1374 = vmul.f32 %v1182, %v1310
    %v1375 = vmul.f32 %v1183, %v1311
    %v1376 = vmul.f32 %v1184, %v1312
    %v1377 = vmul.f32 %v1185, %v1313
    %v1378 = vmul.f32 %v1186, %v1314
    %v1379 = vmul.f32 %v1187, %v1315
    %v1380 = vmul.f32 %v1188, %v1316
    %v1381 = vmul.f32 %v1189, %v1317
    %v1382 = vmul.f32 %v1190, %v1318
    %v1383 = vmul.f32 %v1191, %v1319
    %v1384 = vmul.f32 %v1192, %v1320
    %v1385 = vmul.f32 %v1193, %v1321
    %v1386 = vmul.f32 %v1194, %v1322
    %v1387 = vmul.f32 %v1195, %v1323
    %v1388 = vmul.f32 %v1196, %v1324
    %v1389 = vmul.f32 %v1197, %v1325
    %v1390 = vmul.f32 %v1198, %v1326
    %v1391 = vmul.f32 %v1199, %v1327
    %v1392 = vmul.f32 %v1200, %v1328
    %v1393 = vmul.f32 %v1201, %v1329
    %v1394 = vmul.f32 %v1202, %v1330
    %v1395 = vmul.f32 %v1203, %v1331
    %v1396 = vmul.f32 %v1204, %v1332
    %v1397 = vmul.f32 %v1205, %v1333
    %v1398 = vmul.f32 %v1206, %v1334
    %v1399 = vmul.f32 %v1207, %v1335
    %v1400 = vmul.f32 %v1208, %v1336
    %v1401 = vmul.f32 %v1209, %v1337
    %v1402 = vmul.f32 %v1210, %v1338
    %v1403 = vmul.f32 %v1211, %v1339
    %v1404 = vmul.f32 %v1212, %v1340
    %v1405 = vmul.f32 %v1213, %v1341
    %v1406 = vmul.f32 %v1214, %v1342
    %v1407 = vmul.f32 %v1215, %v1343
    %v1408 = vmul.f32 %v1216, %v1344
    %v1409 = vmul.f32 %v1217, %v1345
    %v1410 = vmul.f32 %v1218, %v1346
    %v1411 = vmul.f32 %v1219, %v1347
    %v1412 = vmul.f32 %v1220, %v1348
    %v1413 = vmul.f32 %v1221, %v1349
    %v1414 = vmul.f32 %v1222, %v1350
    %v1415 = vmul.f32 %v1223, %v1351
    %v1416 = vmul.f32 %v1224, %v1352
    %v1417 = vmul.f32 %v1225, %v1353
    %v1418 = vmul.f32 %v1226, %v1354
    %v1419 = vmul.f32 %v1227, %v1355
    %v1420 = vmul.f32 %v1228, %v1356
    %v1421 = vmul.f32 %v1229, %v1357
    %v1422 = vmul.f32 %v1230, %v1358
    %v1423 = vmul.f32 %v1231, %v1359
    %v1424 = vmul.f32 %v1232, %v1360
    %v1425 = vmul.f32 %v1233, %v1361
    %v1426 = vmul.f32 %v1234, %v1362
    %v1427 = vmul.f32 %v1235, %v1363
    %v1428 = vmul.f32 %v1236, %v1364
    %v1429 = vmul.f32 %v1237, %v1365
    %vm1430 = vcmp.gt.f32.partialorder %v1366, 0.0
    %vm1431 = vcmp.gt.f32.partialorder %v1367, 0.0
    %vm1432 = vcmp.gt.f32.partialorder %v1368, 0.0
    %vm1433 = vcmp.gt.f32.partialorder %v1369, 0.0
    %vm1434 = vcmp.gt.f32.partialorder %v1370, 0.0
    %vm1435 = vcmp.gt.f32.partialorder %v1371, 0.0
    %vm1436 = vcmp.gt.f32.partialorder %v1372, 0.0
    %vm1437 = vcmp.gt.f32.partialorder %v1373, 0.0
    %vm1438 = vcmp.gt.f32.partialorder %v1374, 0.0
    %vm1439 = vcmp.gt.f32.partialorder %v1375, 0.0
    %vm1440 = vcmp.gt.f32.partialorder %v1376, 0.0
    %vm1441 = vcmp.gt.f32.partialorder %v1377, 0.0
    %vm1442 = vcmp.gt.f32.partialorder %v1378, 0.0
    %vm1443 = vcmp.gt.f32.partialorder %v1379, 0.0
    %vm1444 = vcmp.gt.f32.partialorder %v1380, 0.0
    %vm1445 = vcmp.gt.f32.partialorder %v1381, 0.0
    %vm1446 = vcmp.gt.f32.partialorder %v1382, 0.0
    %vm1447 = vcmp.gt.f32.partialorder %v1383, 0.0
    %vm1448 = vcmp.gt.f32.partialorder %v1384, 0.0
    %vm1449 = vcmp.gt.f32.partialorder %v1385, 0.0
    %vm1450 = vcmp.gt.f32.partialorder %v1386, 0.0
    %vm1451 = vcmp.gt.f32.partialorder %v1387, 0.0
    %vm1452 = vcmp.gt.f32.partialorder %v1388, 0.0
    %vm1453 = vcmp.gt.f32.partialorder %v1389, 0.0
    %vm1454 = vcmp.gt.f32.partialorder %v1390, 0.0
    %vm1455 = vcmp.gt.f32.partialorder %v1391, 0.0
    %vm1456 = vcmp.gt.f32.partialorder %v1392, 0.0
    %vm1457 = vcmp.gt.f32.partialorder %v1393, 0.0
    %vm1458 = vcmp.gt.f32.partialorder %v1394, 0.0
    %vm1459 = vcmp.gt.f32.partialorder %v1395, 0.0
    %vm1460 = vcmp.gt.f32.partialorder %v1396, 0.0
    %vm1461 = vcmp.gt.f32.partialorder %v1397, 0.0
    %vm1462 = vcmp.gt.f32.partialorder %v1398, 0.0
    %vm1463 = vcmp.gt.f32.partialorder %v1399, 0.0
    %vm1464 = vcmp.gt.f32.partialorder %v1400, 0.0
    %vm1465 = vcmp.gt.f32.partialorder %v1401, 0.0
    %vm1466 = vcmp.gt.f32.partialorder %v1402, 0.0
    %vm1467 = vcmp.gt.f32.partialorder %v1403, 0.0
    %vm1468 = vcmp.gt.f32.partialorder %v1404, 0.0
    %vm1469 = vcmp.gt.f32.partialorder %v1405, 0.0
    %vm1470 = vcmp.gt.f32.partialorder %v1406, 0.0
    %vm1471 = vcmp.gt.f32.partialorder %v1407, 0.0
    %vm1472 = vcmp.gt.f32.partialorder %v1408, 0.0
    %vm1473 = vcmp.gt.f32.partialorder %v1409, 0.0
    %vm1474 = vcmp.gt.f32.partialorder %v1410, 0.0
    %vm1475 = vcmp.gt.f32.partialorder %v1411, 0.0
    %vm1476 = vcmp.gt.f32.partialorder %v1412, 0.0
    %vm1477 = vcmp.gt.f32.partialorder %v1413, 0.0
    %vm1478 = vcmp.gt.f32.partialorder %v1414, 0.0
    %vm1479 = vcmp.gt.f32.partialorder %v1415, 0.0
    %vm1480 = vcmp.gt.f32.partialorder %v1416, 0.0
    %vm1481 = vcmp.gt.f32.partialorder %v1417, 0.0
    %vm1482 = vcmp.gt.f32.partialorder %v1418, 0.0
    %vm1483 = vcmp.gt.f32.partialorder %v1419, 0.0
    %vm1484 = vcmp.gt.f32.partialorder %v1420, 0.0
    %vm1485 = vcmp.gt.f32.partialorder %v1421, 0.0
    %vm1486 = vcmp.gt.f32.partialorder %v1422, 0.0
    %vm1487 = vcmp.gt.f32.partialorder %v1423, 0.0
    %vm1488 = vcmp.gt.f32.partialorder %v1424, 0.0
    %vm1489 = vcmp.gt.f32.partialorder %v1425, 0.0
    %vm1490 = vcmp.gt.f32.partialorder %v1426, 0.0
    %vm1491 = vcmp.gt.f32.partialorder %v1427, 0.0
    %vm1492 = vcmp.gt.f32.partialorder %v1428, 0.0
    %vm1493 = vcmp.gt.f32.partialorder %v1429, 0.0
    %v1494 = vmul.f32 %v1366, 0.01
    %v1495 = vmul.f32 %v1367, 0.01
    %v1496 = vmul.f32 %v1368, 0.01
    %v1497 = vmul.f32 %v1369, 0.01
    %v1498 = vmul.f32 %v1370, 0.01
    %v1499 = vmul.f32 %v1371, 0.01
    %v1500 = vmul.f32 %v1372, 0.01
    %v1501 = vmul.f32 %v1373, 0.01
    %v1502 = vmul.f32 %v1374, 0.01
    %v1503 = vmul.f32 %v1375, 0.01
    %v1504 = vmul.f32 %v1376, 0.01
    %v1505 = vmul.f32 %v1377, 0.01
    %v1506 = vmul.f32 %v1378, 0.01
    %v1507 = vmul.f32 %v1379, 0.01
    %v1508 = vmul.f32 %v1380, 0.01
    %v1509 = vmul.f32 %v1381, 0.01
    %v1510 = vmul.f32 %v1382, 0.01
    %v1511 = vmul.f32 %v1383, 0.01
    %v1512 = vmul.f32 %v1384, 0.01
    %v1513 = vmul.f32 %v1385, 0.01
    %v1514 = vmul.f32 %v1386, 0.01
    %v1515 = vmul.f32 %v1387, 0.01
    %v1516 = vmul.f32 %v1388, 0.01
    %v1517 = vmul.f32 %v1389, 0.01
    %v1518 = vmul.f32 %v1390, 0.01
    %v1519 = vmul.f32 %v1391, 0.01
    %v1520 = vmul.f32 %v1392, 0.01
    %v1521 = vmul.f32 %v1393, 0.01
    %v1522 = vmul.f32 %v1394, 0.01
    %v1523 = vmul.f32 %v1395, 0.01
    %v1524 = vmul.f32 %v1396, 0.01
    %v1525 = vmul.f32 %v1397, 0.01
    %v1526 = vmul.f32 %v1398, 0.01
    %v1527 = vmul.f32 %v1399, 0.01
    %v1528 = vmul.f32 %v1400, 0.01
    %v1529 = vmul.f32 %v1401, 0.01
    %v1530 = vmul.f32 %v1402, 0.01
    %v1531 = vmul.f32 %v1403, 0.01
    %v1532 = vmul.f32 %v1404, 0.01
    %v1533 = vmul.f32 %v1405, 0.01
    %v1534 = vmul.f32 %v1406, 0.01
    %v1535 = vmul.f32 %v1407, 0.01
    %v1536 = vmul.f32 %v1408, 0.01
    %v1537 = vmul.f32 %v1409, 0.01
    %v1538 = vmul.f32 %v1410, 0.01
    %v1539 = vmul.f32 %v1411, 0.01
    %v1540 = vmul.f32 %v1412, 0.01
    %v1541 = vmul.f32 %v1413, 0.01
    %v1542 = vmul.f32 %v1414, 0.01
    %v1543 = vmul.f32 %v1415, 0.01
    %v1544 = vmul.f32 %v1416, 0.01
    %v1545 = vmul.f32 %v1417, 0.01
    %v1546 = vmul.f32 %v1418, 0.01
    %v1547 = vmul.f32 %v1419, 0.01
    %v1548 = vmul.f32 %v1420, 0.01
    %v1549 = vmul.f32 %v1421, 0.01
    %v1550 = vmul.f32 %v1422, 0.01
    %v1551 = vmul.f32 %v1423, 0.01
    %v1552 = vmul.f32 %v1424, 0.01
    %v1553 = vmul.f32 %v1425, 0.01
    %v1554 = vmul.f32 %v1426, 0.01
    %v1555 = vmul.f32 %v1427, 0.01
    %v1556 = vmul.f32 %v1428, 0.01
    %v1557 = vmul.f32 %v1429, 0.01
    %v1558 = vsel %vm1430, %v1366, %v1494
    %v1559 = vsel %vm1431, %v1367, %v1495
    %v1560 = vsel %vm1432, %v1368, %v1496
    %v1561 = vsel %vm1433, %v1369, %v1497
    %v1562 = vsel %vm1434, %v1370, %v1498
    %v1563 = vsel %vm1435, %v1371, %v1499
    %v1564 = vsel %vm1436, %v1372, %v1500
    %v1565 = vsel %vm1437, %v1373, %v1501
    %v1566 = vsel %vm1438, %v1374, %v1502
    %v1567 = vsel %vm1439, %v1375, %v1503
    %v1568 = vsel %vm1440, %v1376, %v1504
    %v1569 = vsel %vm1441, %v1377, %v1505
    %v1570 = vsel %vm1442, %v1378, %v1506
    %v1571 = vsel %vm1443, %v1379, %v1507
    %v1572 = vsel %vm1444, %v1380, %v1508
    %v1573 = vsel %vm1445, %v1381, %v1509
    %v1574 = vsel %vm1446, %v1382, %v1510
    %v1575 = vsel %vm1447, %v1383, %v1511
    %v1576 = vsel %vm1448, %v1384, %v1512
    %v1577 = vsel %vm1449, %v1385, %v1513
    %v1578 = vsel %vm1450, %v1386, %v1514
    %v1579 = vsel %vm1451, %v1387, %v1515
    %v1580 = vsel %vm1452, %v1388, %v1516
    %v1581 = vsel %vm1453, %v1389, %v1517
    %v1582 = vsel %vm1454, %v1390, %v1518
    %v1583 = vsel %vm1455, %v1391, %v1519
    %v1584 = vsel %vm1456, %v1392, %v1520
    %v1585 = vsel %vm1457, %v1393, %v1521
    %v1586 = vsel %vm1458, %v1394, %v1522
    %v1587 = vsel %vm1459, %v1395, %v1523
    %v1588 = vsel %vm1460, %v1396, %v1524
    %v1589 = vsel %vm1461, %v1397, %v1525
    %v1590 = vsel %vm1462, %v1398, %v1526
    %v1591 = vsel %vm1463, %v1399, %v1527
    %v1592 = vsel %vm1464, %v1400, %v1528
    %v1593 = vsel %vm1465, %v1401, %v1529
    %v1594 = vsel %vm1466, %v1402, %v1530
    %v1595 = vsel %vm1467, %v1403, %v1531
    %v1596 = vsel %vm1468, %v1404, %v1532
    %v1597 = vsel %vm1469, %v1405, %v1533
    %v1598 = vsel %vm1470, %v1406, %v1534
    %v1599 = vsel %vm1471, %v1407, %v1535
    %v1600 = vsel %vm1472, %v1408, %v1536
    %v1601 = vsel %vm1473, %v1409, %v1537
    %v1602 = vsel %vm1474, %v1410, %v1538
    %v1603 = vsel %vm1475, %v1411, %v1539
    %v1604 = vsel %vm1476, %v1412, %v1540
    %v1605 = vsel %vm1477, %v1413, %v1541
    %v1606 = vsel %vm1478, %v1414, %v1542
    %v1607 = vsel %vm1479, %v1415, %v1543
    %v1608 = vsel %vm1480, %v1416, %v1544
    %v1609 = vsel %vm1481, %v1417, %v1545
    %v1610 = vsel %vm1482, %v1418, %v1546
    %v1611 = vsel %vm1483, %v1419, %v1547
    %v1612 = vsel %vm1484, %v1420, %v1548
    %v1613 = vsel %vm1485, %v1421, %v1549
    %v1614 = vsel %vm1486, %v1422, %v1550
    %v1615 = vsel %vm1487, %v1423, %v1551
    %v1616 = vsel %vm1488, %v1424, %v1552
    %v1617 = vsel %vm1489, %v1425, %v1553
    %v1618 = vsel %vm1490, %v1426, %v1554
    %v1619 = vsel %vm1491, %v1427, %v1555
    %v1620 = vsel %vm1492, %v1428, %v1556
    %v1621 = vsel %vm1493, %v1429, %v1557
    %v1622 = vpack.c.bf16 %v1559, %v1558
    %v1623 = vpack.c.bf16 %v1561, %v1560
    %v1624 = vpack.c.bf16 %v1563, %v1562
    %v1625 = vpack.c.bf16 %v1565, %v1564
    %v1626 = vpack.c.bf16 %v1567, %v1566
    %v1627 = vpack.c.bf16 %v1569, %v1568
    %v1628 = vpack.c.bf16 %v1571, %v1570
    %v1629 = vpack.c.bf16 %v1573, %v1572
    %v1630 = vpack.c.bf16 %v1575, %v1574
    %v1631 = vpack.c.bf16 %v1577, %v1576
    %v1632 = vpack.c.bf16 %v1579, %v1578
    %v1633 = vpack.c.bf16 %v1581, %v1580
    %v1634 = vpack.c.bf16 %v1583, %v1582
    %v1635 = vpack.c.bf16 %v1585, %v1584
    %v1636 = vpack.c.bf16 %v1587, %v1586
    %v1637 = vpack.c.bf16 %v1589, %v1588
    %v1638 = vpack.c.bf16 %v1591, %v1590
    %v1639 = vpack.c.bf16 %v1593, %v1592
    %v1640 = vpack.c.bf16 %v1595, %v1594
    %v1641 = vpack.c.bf16 %v1597, %v1596
    %v1642 = vpack.c.bf16 %v1599, %v1598
    %v1643 = vpack.c.bf16 %v1601, %v1600
    %v1644 = vpack.c.bf16 %v1603, %v1602
    %v1645 = vpack.c.bf16 %v1605, %v1604
    %v1646 = vpack.c.bf16 %v1607, %v1606
    %v1647 = vpack.c.bf16 %v1609, %v1608
    %v1648 = vpack.c.bf16 %v1611, %v1610
    %v1649 = vpack.c.bf16 %v1613, %v1612
    %v1650 = vpack.c.bf16 %v1615, %v1614
    %v1651 = vpack.c.bf16 %v1617, %v1616
    %v1652 = vpack.c.bf16 %v1619, %v1618
    %v1653 = vpack.c.bf16 %v1621, %v1620
    %v1654 = vld [vmem:[%s3] sm:$0xf]
    %v1655 = vld [vmem:[%s3 + $0x4] sm:$0xf]
    %v1656 = vld [vmem:[%s3 + $0x8] sm:$0xf]
    %v1657 = vld [vmem:[%s3 + $0xc] sm:$0xf]
    %v1658 = vld [vmem:[%s3 + $0x10] sm:$0xf]
    %v1659 = vld [vmem:[%s3 + $0x14] sm:$0xf]
    %v1660 = vld [vmem:[%s3 + $0x18] sm:$0xf]
    %v1661 = vld [vmem:[%s3 + $0x1c] sm:$0xf]
    %v1662 = vld [vmem:[%s3 + $0x20] sm:$0xf]
    %v1663 = vld [vmem:[%s3 + $0x24] sm:$0xf]
    %v1664 = vld [vmem:[%s3 + $0x28] sm:$0xf]
    %v1665 = vld [vmem:[%s3 + $0x2c] sm:$0xf]
    %v1666 = vld [vmem:[%s3 + $0x30] sm:$0xf]
    %v1667 = vld [vmem:[%s3 + $0x34] sm:$0xf]
    %v1668 = vld [vmem:[%s3 + $0x38] sm:$0xf]
    %v1669 = vld [vmem:[%s3 + $0x3c] sm:$0xf]
    %v1670 = vld [vmem:[%s4] sm:$0x1]
    %v1672 = vlaneseq
    %v1673 = vshrl.u32 %v1672, 7
    %v1674 = vsub.s32 0, %v1673
    %v1675 = vrot.slane %v1670, %v1674
    %v1693 = vunpack.c.l.b16 %v1654
    %v1694 = vunpack.c.l.b16 %v1655
    %v1695 = vunpack.c.l.b16 %v1656
    %v1696 = vunpack.c.l.b16 %v1657
    %v1697 = vunpack.c.l.b16 %v1658
    %v1698 = vunpack.c.l.b16 %v1659
    %v1699 = vunpack.c.l.b16 %v1660
    %v1700 = vunpack.c.l.b16 %v1661
    %v1701 = vunpack.c.l.b16 %v1662
    %v1702 = vunpack.c.l.b16 %v1663
    %v1703 = vunpack.c.l.b16 %v1664
    %v1704 = vunpack.c.l.b16 %v1665
    %v1705 = vunpack.c.l.b16 %v1666
    %v1706 = vunpack.c.l.b16 %v1667
    %v1707 = vunpack.c.l.b16 %v1668
    %v1708 = vunpack.c.l.b16 %v1669
    %v1709 = vpack.c.b16 %v1694, %v1693
    %v1710 = vpack.c.b16 %v1696, %v1695
    %v1711 = vpack.c.b16 %v1698, %v1697
    %v1712 = vpack.c.b16 %v1700, %v1699
    %v1713 = vpack.c.b16 %v1702, %v1701
    %v1714 = vpack.c.b16 %v1704, %v1703
    %v1715 = vpack.c.b16 %v1706, %v1705
    %v1716 = vpack.c.b16 %v1708, %v1707
    %1725 = vmatprep.subr.bf16.mxu0 0
    %1726 = vmatpush1.bf16.msra.mxu0 %v1716
    %1727 = vmatprep.subr.bf16.mxu0 0
    %1728 = vmatpush1.bf16.msra.mxu0 %v1715
    %1729 = vmatprep.subr.bf16.mxu0 0
    %1730 = vmatpush1.bf16.msra.mxu0 %v1714
    %1731 = vmatprep.subr.bf16.mxu0 0
    %1732 = vmatpush1.bf16.msra.mxu0 %v1713
    %1733 = vmatprep.subr.bf16.mxu0 0
    %1734 = vmatpush1.bf16.msra.mxu0 %v1712
    %1735 = vmatprep.subr.bf16.mxu0 0
    %1736 = vmatpush1.bf16.msra.mxu0 %v1711
    %1737 = vmatprep.subr.bf16.mxu0 0
    %1738 = vmatpush1.bf16.msra.mxu0 %v1710
    %1739 = vmatprep.subr.bf16.mxu0 0
    %1740 = vmatpush1.bf16.msra.mxu0 %v1709
    %1741 = vmatprep.subr.bf16.mxu0 0
    %1742 = vmatpush2.bf16.msra.mxu0 0
    %1743 = vmatprep.subr.bf16.mxu0 0
    %1744 = vmatpush2.bf16.msra.mxu0 0
    %1745 = vmatprep.subr.bf16.mxu0 0
    %1746 = vmatpush2.bf16.msra.mxu0 0
    %1747 = vmatprep.subr.bf16.mxu0 0
    %1748 = vmatpush2.bf16.msra.mxu0 0
    %1749 = vmatprep.subr.bf16.mxu0 0
    %1750 = vmatpush2.bf16.msra.mxu0 0
    %1751 = vmatprep.subr.bf16.mxu0 0
    %1752 = vmatpush2.bf16.msra.mxu0 0
    %1753 = vmatprep.subr.bf16.mxu0 0
    %1754 = vmatpush2.bf16.msra.mxu0 0
    %1755 = vmatprep.subr.bf16.mxu0 0
    %1756 = vmatpush2.bf16.msra.mxu0 0
    %1757 = vmatprep.mubr.bf16.mxu0 0
    %1758 = vmatmul.mubr.bf16.gmra.mxu0 %v1622
    %v1759 = vpop.f32.mrf.mxu0
    %v1760 = vadd.f32 %v1675, %v1759
    %v1761 = vpop.f32.mrf.mxu0
    %v1762 = vpop.f32.mrf.mxu0
    %v1763 = vadd.f32 %v1675, %v1762
    %v1764 = vpop.f32.mrf.mxu0
    %1765 = vmatprep.mubr.bf16.mxu0 0
    %1766 = vmatmul.mubr.bf16.gmra.mxu0 %v1623
    %v1767 = vpop.f32.mrf.mxu0
    %v1768 = vadd.f32 %v1675, %v1767
    %v1769 = vpop.f32.mrf.mxu0
    %v1770 = vpop.f32.mrf.mxu0
    %v1771 = vadd.f32 %v1675, %v1770
    %v1772 = vpop.f32.mrf.mxu0
    %1773 = vmatprep.mubr.bf16.mxu0 0
    %1774 = vmatmul.mubr.bf16.gmra.mxu0 %v1624
    %v1775 = vpop.f32.mrf.mxu0
    %v1776 = vadd.f32 %v1675, %v1775
    %v1777 = vpop.f32.mrf.mxu0
    %v1778 = vpop.f32.mrf.mxu0
    %v1779 = vadd.f32 %v1675, %v1778
    %v1780 = vpop.f32.mrf.mxu0
    %1781 = vmatprep.mubr.bf16.mxu0 0
    %1782 = vmatmul.mubr.bf16.gmra.mxu0 %v1625
    %v1783 = vpop.f32.mrf.mxu0
    %v1784 = vadd.f32 %v1675, %v1783
    %v1785 = vpop.f32.mrf.mxu0
    %v1786 = vpop.f32.mrf.mxu0
    %v1787 = vadd.f32 %v1675, %v1786
    %v1788 = vpop.f32.mrf.mxu0
    %1789 = vmatprep.mubr.bf16.mxu0 0
    %1790 = vmatmul.mubr.bf16.gmra.mxu0 %v1626
    %v1791 = vpop.f32.mrf.mxu0
    %v1792 = vadd.f32 %v1675, %v1791
    %v1793 = vpop.f32.mrf.mxu0
    %v1794 = vpop.f32.mrf.mxu0
    %v1795 = vadd.f32 %v1675, %v1794
    %v1796 = vpop.f32.mrf.mxu0
    %1797 = vmatprep.mubr.bf16.mxu0 0
    %1798 = vmatmul.mubr.bf16.gmra.mxu0 %v1627
    %v1799 = vpop.f32.mrf.mxu0
    %v1800 = vadd.f32 %v1675, %v1799
    %v1801 = vpop.f32.mrf.mxu0
    %v1802 = vpop.f32.mrf.mxu0
    %v1803 = vadd.f32 %v1675, %v1802
    %v1804 = vpop.f32.mrf.mxu0
    %1805 = vmatprep.mubr.bf16.mxu0 0
    %1806 = vmatmul.mubr.bf16.gmra.mxu0 %v1628
    %v1807 = vpop.f32.mrf.mxu0
    %v1808 = vadd.f32 %v1675, %v1807
    %v1809 = vpop.f32.mrf.mxu0
    %v1810 = vpop.f32.mrf.mxu0
    %v1811 = vadd.f32 %v1675, %v1810
    %v1812 = vpop.f32.mrf.mxu0
    %1813 = vmatprep.mubr.bf16.mxu0 0
    %1814 = vmatmul.mubr.bf16.gmra.mxu0 %v1629
    %v1815 = vpop.f32.mrf.mxu0
    %v1816 = vadd.f32 %v1675, %v1815
    %v1817 = vpop.f32.mrf.mxu0
    %v1818 = vpop.f32.mrf.mxu0
    %v1819 = vadd.f32 %v1675, %v1818
    %v1820 = vpop.f32.mrf.mxu0
    %1821 = vmatprep.mubr.bf16.mxu0 0
    %1822 = vmatmul.mubr.bf16.gmra.mxu0 %v1630
    %v1823 = vpop.f32.mrf.mxu0
    %v1824 = vadd.f32 %v1675, %v1823
    %v1825 = vpop.f32.mrf.mxu0
    %v1826 = vpop.f32.mrf.mxu0
    %v1827 = vadd.f32 %v1675, %v1826
    %v1828 = vpop.f32.mrf.mxu0
    %1829 = vmatprep.mubr.bf16.mxu0 0
    %1830 = vmatmul.mubr.bf16.gmra.mxu0 %v1631
    %v1831 = vpop.f32.mrf.mxu0
    %v1832 = vadd.f32 %v1675, %v1831
    %v1833 = vpop.f32.mrf.mxu0
    %v1834 = vpop.f32.mrf.mxu0
    %v1835 = vadd.f32 %v1675, %v1834
    %v1836 = vpop.f32.mrf.mxu0
    %1837 = vmatprep.mubr.bf16.mxu0 0
    %1838 = vmatmul.mubr.bf16.gmra.mxu0 %v1632
    %v1839 = vpop.f32.mrf.mxu0
    %v1840 = vadd.f32 %v1675, %v1839
    %v1841 = vpop.f32.mrf.mxu0
    %v1842 = vpop.f32.mrf.mxu0
    %v1843 = vadd.f32 %v1675, %v1842
    %v1844 = vpop.f32.mrf.mxu0
    %1845 = vmatprep.mubr.bf16.mxu0 0
    %1846 = vmatmul.mubr.bf16.gmra.mxu0 %v1633
    %v1847 = vpop.f32.mrf.mxu0
    %v1848 = vadd.f32 %v1675, %v1847
    %v1849 = vpop.f32.mrf.mxu0
    %v1850 = vpop.f32.mrf.mxu0
    %v1851 = vadd.f32 %v1675, %v1850
    %v1852 = vpop.f32.mrf.mxu0
    %1853 = vmatprep.mubr.bf16.mxu0 0
    %1854 = vmatmul.mubr.bf16.gmra.mxu0 %v1634
    %v1855 = vpop.f32.mrf.mxu0
    %v1856 = vadd.f32 %v1675, %v1855
    %v1857 = vpop.f32.mrf.mxu0
    %v1858 = vpop.f32.mrf.mxu0
    %v1859 = vadd.f32 %v1675, %v1858
    %v1860 = vpop.f32.mrf.mxu0
    %1861 = vmatprep.mubr.bf16.mxu0 0
    %1862 = vmatmul.mubr.bf16.gmra.mxu0 %v1635
    %v1863 = vpop.f32.mrf.mxu0
    %v1864 = vadd.f32 %v1675, %v1863
    %v1865 = vpop.f32.mrf.mxu0
    %v1866 = vpop.f32.mrf.mxu0
    %v1867 = vadd.f32 %v1675, %v1866
    %v1868 = vpop.f32.mrf.mxu0
    %1869 = vmatprep.mubr.bf16.mxu0 0
    %1870 = vmatmul.mubr.bf16.gmra.mxu0 %v1636
    %v1871 = vpop.f32.mrf.mxu0
    %v1872 = vadd.f32 %v1675, %v1871
    %v1873 = vpop.f32.mrf.mxu0
    %v1874 = vpop.f32.mrf.mxu0
    %v1875 = vadd.f32 %v1675, %v1874
    %v1876 = vpop.f32.mrf.mxu0
    %1877 = vmatprep.mubr.bf16.mxu0 0
    %1878 = vmatmul.mubr.bf16.gmra.mxu0 %v1637
    %v1879 = vpop.f32.mrf.mxu0
    %v1880 = vadd.f32 %v1675, %v1879
    %v1881 = vpop.f32.mrf.mxu0
    %v1882 = vpop.f32.mrf.mxu0
    %v1883 = vadd.f32 %v1675, %v1882
    %v1884 = vpop.f32.mrf.mxu0
    %1885 = vmatprep.mubr.bf16.mxu0 0
    %1886 = vmatmul.mubr.bf16.gmra.mxu0 %v1638
    %v1887 = vpop.f32.mrf.mxu0
    %v1888 = vadd.f32 %v1675, %v1887
    %v1889 = vpop.f32.mrf.mxu0
    %v1890 = vpop.f32.mrf.mxu0
    %v1891 = vadd.f32 %v1675, %v1890
    %v1892 = vpop.f32.mrf.mxu0
    %1893 = vmatprep.mubr.bf16.mxu0 0
    %1894 = vmatmul.mubr.bf16.gmra.mxu0 %v1639
    %v1895 = vpop.f32.mrf.mxu0
    %v1896 = vadd.f32 %v1675, %v1895
    %v1897 = vpop.f32.mrf.mxu0
    %v1898 = vpop.f32.mrf.mxu0
    %v1899 = vadd.f32 %v1675, %v1898
    %v1900 = vpop.f32.mrf.mxu0
    %1901 = vmatprep.mubr.bf16.mxu0 0
    %1902 = vmatmul.mubr.bf16.gmra.mxu0 %v1640
    %v1903 = vpop.f32.mrf.mxu0
    %v1904 = vadd.f32 %v1675, %v1903
    %v1905 = vpop.f32.mrf.mxu0
    %v1906 = vpop.f32.mrf.mxu0
    %v1907 = vadd.f32 %v1675, %v1906
    %v1908 = vpop.f32.mrf.mxu0
    %1909 = vmatprep.mubr.bf16.mxu0 0
    %1910 = vmatmul.mubr.bf16.gmra.mxu0 %v1641
    %v1911 = vpop.f32.mrf.mxu0
    %v1912 = vadd.f32 %v1675, %v1911
    %v1913 = vpop.f32.mrf.mxu0
    %v1914 = vpop.f32.mrf.mxu0
    %v1915 = vadd.f32 %v1675, %v1914
    %v1916 = vpop.f32.mrf.mxu0
    %1917 = vmatprep.mubr.bf16.mxu0 0
    %1918 = vmatmul.mubr.bf16.gmra.mxu0 %v1642
    %v1919 = vpop.f32.mrf.mxu0
    %v1920 = vadd.f32 %v1675, %v1919
    %v1921 = vpop.f32.mrf.mxu0
    %v1922 = vpop.f32.mrf.mxu0
    %v1923 = vadd.f32 %v1675, %v1922
    %v1924 = vpop.f32.mrf.mxu0
    %1925 = vmatprep.mubr.bf16.mxu0 0
    %1926 = vmatmul.mubr.bf16.gmra.mxu0 %v1643
    %v1927 = vpop.f32.mrf.mxu0
    %v1928 = vadd.f32 %v1675, %v1927
    %v1929 = vpop.f32.mrf.mxu0
    %v1930 = vpop.f32.mrf.mxu0
    %v1931 = vadd.f32 %v1675, %v1930
    %v1932 = vpop.f32.mrf.mxu0
    %1933 = vmatprep.mubr.bf16.mxu0 0
    %1934 = vmatmul.mubr.bf16.gmra.mxu0 %v1644
    %v1935 = vpop.f32.mrf.mxu0
    %v1936 = vadd.f32 %v1675, %v1935
    %v1937 = vpop.f32.mrf.mxu0
    %v1938 = vpop.f32.mrf.mxu0
    %v1939 = vadd.f32 %v1675, %v1938
    %v1940 = vpop.f32.mrf.mxu0
    %1941 = vmatprep.mubr.bf16.mxu0 0
    %1942 = vmatmul.mubr.bf16.gmra.mxu0 %v1645
    %v1943 = vpop.f32.mrf.mxu0
    %v1944 = vadd.f32 %v1675, %v1943
    %v1945 = vpop.f32.mrf.mxu0
    %v1946 = vpop.f32.mrf.mxu0
    %v1947 = vadd.f32 %v1675, %v1946
    %v1948 = vpop.f32.mrf.mxu0
    %1949 = vmatprep.mubr.bf16.mxu0 0
    %1950 = vmatmul.mubr.bf16.gmra.mxu0 %v1646
    %v1951 = vpop.f32.mrf.mxu0
    %v1952 = vadd.f32 %v1675, %v1951
    %v1953 = vpop.f32.mrf.mxu0
    %v1954 = vpop.f32.mrf.mxu0
    %v1955 = vadd.f32 %v1675, %v1954
    %v1956 = vpop.f32.mrf.mxu0
    %1957 = vmatprep.mubr.bf16.mxu0 0
    %1958 = vmatmul.mubr.bf16.gmra.mxu0 %v1647
    %v1959 = vpop.f32.mrf.mxu0
    %v1960 = vadd.f32 %v1675, %v1959
    %v1961 = vpop.f32.mrf.mxu0
    %v1962 = vpop.f32.mrf.mxu0
    %v1963 = vadd.f32 %v1675, %v1962
    %v1964 = vpop.f32.mrf.mxu0
    %1965 = vmatprep.mubr.bf16.mxu0 0
    %1966 = vmatmul.mubr.bf16.gmra.mxu0 %v1648
    %v1967 = vpop.f32.mrf.mxu0
    %v1968 = vadd.f32 %v1675, %v1967
    %v1969 = vpop.f32.mrf.mxu0
    %v1970 = vpop.f32.mrf.mxu0
    %v1971 = vadd.f32 %v1675, %v1970
    %v1972 = vpop.f32.mrf.mxu0
    %1973 = vmatprep.mubr.bf16.mxu0 0
    %1974 = vmatmul.mubr.bf16.gmra.mxu0 %v1649
    %v1975 = vpop.f32.mrf.mxu0
    %v1976 = vadd.f32 %v1675, %v1975
    %v1977 = vpop.f32.mrf.mxu0
    %v1978 = vpop.f32.mrf.mxu0
    %v1979 = vadd.f32 %v1675, %v1978
    %v1980 = vpop.f32.mrf.mxu0
    %1981 = vmatprep.mubr.bf16.mxu0 0
    %1982 = vmatmul.mubr.bf16.gmra.mxu0 %v1650
    %v1983 = vpop.f32.mrf.mxu0
    %v1984 = vadd.f32 %v1675, %v1983
    %v1985 = vpop.f32.mrf.mxu0
    %v1986 = vpop.f32.mrf.mxu0
    %v1987 = vadd.f32 %v1675, %v1986
    %v1988 = vpop.f32.mrf.mxu0
    %1989 = vmatprep.mubr.bf16.mxu0 0
    %1990 = vmatmul.mubr.bf16.gmra.mxu0 %v1651
    %v1991 = vpop.f32.mrf.mxu0
    %v1992 = vadd.f32 %v1675, %v1991
    %v1993 = vpop.f32.mrf.mxu0
    %v1994 = vpop.f32.mrf.mxu0
    %v1995 = vadd.f32 %v1675, %v1994
    %v1996 = vpop.f32.mrf.mxu0
    %1997 = vmatprep.mubr.bf16.mxu0 0
    %1998 = vmatmul.mubr.bf16.gmra.mxu0 %v1652
    %v1999 = vpop.f32.mrf.mxu0
    %v2000 = vadd.f32 %v1675, %v1999
    %v2001 = vpop.f32.mrf.mxu0
    %v2002 = vpop.f32.mrf.mxu0
    %v2003 = vadd.f32 %v1675, %v2002
    %v2004 = vpop.f32.mrf.mxu0
    %2005 = vmatprep.mubr.bf16.mxu0 0
    %2006 = vmatmul.mubr.bf16.gmra.mxu0 %v1653
    %v2007 = vpop.f32.mrf.mxu0
    %v2008 = vadd.f32 %v1675, %v2007
    %v2009 = vpop.f32.mrf.mxu0
    %v2010 = vpop.f32.mrf.mxu0
    %v2011 = vadd.f32 %v1675, %v2010
    %v2012 = vpop.f32.mrf.mxu0
    %2013 = vdwg.mxu0
    %2014 = vadd.xlane.f32.xlu0 %v1760
    %v2015 = vpop.xlane.xlu0 %2014
    %2016 = vadd.xlane.f32.xlu0 %v1763
    %v2017 = vpop.xlane.xlu0 %2016
    %2018 = vadd.xlane.f32.xlu0 %v1768
    %v2019 = vpop.xlane.xlu0 %2018
    %2020 = vadd.xlane.f32.xlu0 %v1771
    %v2021 = vpop.xlane.xlu0 %2020
    %2022 = vadd.xlane.f32.xlu0 %v1776
    %v2023 = vpop.xlane.xlu0 %2022
    %2024 = vadd.xlane.f32.xlu0 %v1779
    %v2025 = vpop.xlane.xlu0 %2024
    %2026 = vadd.xlane.f32.xlu0 %v1784
    %v2027 = vpop.xlane.xlu0 %2026
    %2028 = vadd.xlane.f32.xlu0 %v1787
    %v2029 = vpop.xlane.xlu0 %2028
    %2030 = vadd.xlane.f32.xlu0 %v1792
    %v2031 = vpop.xlane.xlu0 %2030
    %2032 = vadd.xlane.f32.xlu0 %v1795
    %v2033 = vpop.xlane.xlu0 %2032
    %2034 = vadd.xlane.f32.xlu0 %v1800
    %v2035 = vpop.xlane.xlu0 %2034
    %2036 = vadd.xlane.f32.xlu0 %v1803
    %v2037 = vpop.xlane.xlu0 %2036
    %2038 = vadd.xlane.f32.xlu0 %v1808
    %v2039 = vpop.xlane.xlu0 %2038
    %2040 = vadd.xlane.f32.xlu0 %v1811
    %v2041 = vpop.xlane.xlu0 %2040
    %2042 = vadd.xlane.f32.xlu0 %v1816
    %v2043 = vpop.xlane.xlu0 %2042
    %2044 = vadd.xlane.f32.xlu0 %v1819
    %v2045 = vpop.xlane.xlu0 %2044
    %2046 = vadd.xlane.f32.xlu0 %v1824
    %v2047 = vpop.xlane.xlu0 %2046
    %2048 = vadd.xlane.f32.xlu0 %v1827
    %v2049 = vpop.xlane.xlu0 %2048
    %2050 = vadd.xlane.f32.xlu0 %v1832
    %v2051 = vpop.xlane.xlu0 %2050
    %2052 = vadd.xlane.f32.xlu0 %v1835
    %v2053 = vpop.xlane.xlu0 %2052
    %2054 = vadd.xlane.f32.xlu0 %v1840
    %v2055 = vpop.xlane.xlu0 %2054
    %2056 = vadd.xlane.f32.xlu0 %v1843
    %v2057 = vpop.xlane.xlu0 %2056
    %2058 = vadd.xlane.f32.xlu0 %v1848
    %v2059 = vpop.xlane.xlu0 %2058
    %2060 = vadd.xlane.f32.xlu0 %v1851
    %v2061 = vpop.xlane.xlu0 %2060
    %2062 = vadd.xlane.f32.xlu0 %v1856
    %v2063 = vpop.xlane.xlu0 %2062
    %2064 = vadd.xlane.f32.xlu0 %v1859
    %v2065 = vpop.xlane.xlu0 %2064
    %2066 = vadd.xlane.f32.xlu0 %v1864
    %v2067 = vpop.xlane.xlu0 %2066
    %2068 = vadd.xlane.f32.xlu0 %v1867
    %v2069 = vpop.xlane.xlu0 %2068
    %2070 = vadd.xlane.f32.xlu0 %v1872
    %v2071 = vpop.xlane.xlu0 %2070
    %2072 = vadd.xlane.f32.xlu0 %v1875
    %v2073 = vpop.xlane.xlu0 %2072
    %2074 = vadd.xlane.f32.xlu0 %v1880
    %v2075 = vpop.xlane.xlu0 %2074
    %2076 = vadd.xlane.f32.xlu0 %v1883
    %v2077 = vpop.xlane.xlu0 %2076
    %2078 = vadd.xlane.f32.xlu0 %v1888
    %v2079 = vpop.xlane.xlu0 %2078
    %2080 = vadd.xlane.f32.xlu0 %v1891
    %v2081 = vpop.xlane.xlu0 %2080
    %2082 = vadd.xlane.f32.xlu0 %v1896
    %v2083 = vpop.xlane.xlu0 %2082
    %2084 = vadd.xlane.f32.xlu0 %v1899
    %v2085 = vpop.xlane.xlu0 %2084
    %2086 = vadd.xlane.f32.xlu0 %v1904
    %v2087 = vpop.xlane.xlu0 %2086
    %2088 = vadd.xlane.f32.xlu0 %v1907
    %v2089 = vpop.xlane.xlu0 %2088
    %2090 = vadd.xlane.f32.xlu0 %v1912
    %v2091 = vpop.xlane.xlu0 %2090
    %2092 = vadd.xlane.f32.xlu0 %v1915
    %v2093 = vpop.xlane.xlu0 %2092
    %2094 = vadd.xlane.f32.xlu0 %v1920
    %v2095 = vpop.xlane.xlu0 %2094
    %2096 = vadd.xlane.f32.xlu0 %v1923
    %v2097 = vpop.xlane.xlu0 %2096
    %2098 = vadd.xlane.f32.xlu0 %v1928
    %v2099 = vpop.xlane.xlu0 %2098
    %2100 = vadd.xlane.f32.xlu0 %v1931
    %v2101 = vpop.xlane.xlu0 %2100
    %2102 = vadd.xlane.f32.xlu0 %v1936
    %v2103 = vpop.xlane.xlu0 %2102
    %2104 = vadd.xlane.f32.xlu0 %v1939
    %v2105 = vpop.xlane.xlu0 %2104
    %2106 = vadd.xlane.f32.xlu0 %v1944
    %v2107 = vpop.xlane.xlu0 %2106
    %2108 = vadd.xlane.f32.xlu0 %v1947
    %v2109 = vpop.xlane.xlu0 %2108
    %2110 = vadd.xlane.f32.xlu0 %v1952
    %v2111 = vpop.xlane.xlu0 %2110
    %2112 = vadd.xlane.f32.xlu0 %v1955
    %v2113 = vpop.xlane.xlu0 %2112
    %2114 = vadd.xlane.f32.xlu0 %v1960
    %v2115 = vpop.xlane.xlu0 %2114
    %2116 = vadd.xlane.f32.xlu0 %v1963
    %v2117 = vpop.xlane.xlu0 %2116
    %2118 = vadd.xlane.f32.xlu0 %v1968
    %v2119 = vpop.xlane.xlu0 %2118
    %2120 = vadd.xlane.f32.xlu0 %v1971
    %v2121 = vpop.xlane.xlu0 %2120
    %2122 = vadd.xlane.f32.xlu0 %v1976
    %v2123 = vpop.xlane.xlu0 %2122
    %2124 = vadd.xlane.f32.xlu0 %v1979
    %v2125 = vpop.xlane.xlu0 %2124
    %2126 = vadd.xlane.f32.xlu0 %v1984
    %v2127 = vpop.xlane.xlu0 %2126
    %2128 = vadd.xlane.f32.xlu0 %v1987
    %v2129 = vpop.xlane.xlu0 %2128
    %2130 = vadd.xlane.f32.xlu0 %v1992
    %v2131 = vpop.xlane.xlu0 %2130
    %2132 = vadd.xlane.f32.xlu0 %v1995
    %v2133 = vpop.xlane.xlu0 %2132
    %2134 = vadd.xlane.f32.xlu0 %v2000
    %v2135 = vpop.xlane.xlu0 %2134
    %2136 = vadd.xlane.f32.xlu0 %v2003
    %v2137 = vpop.xlane.xlu0 %2136
    %2138 = vadd.xlane.f32.xlu0 %v2008
    %v2139 = vpop.xlane.xlu0 %2138
    %2140 = vadd.xlane.f32.xlu0 %v2011
    %v2141 = vpop.xlane.xlu0 %2140
    %v2142 = vmul.f32 %v2015, %v661
    %v2143 = vmul.f32 %v2017, %v661
    %v2144 = vmul.f32 %v2019, %v661
    %v2145 = vmul.f32 %v2021, %v661
    %v2146 = vmul.f32 %v2023, %v661
    %v2147 = vmul.f32 %v2025, %v661
    %v2148 = vmul.f32 %v2027, %v661
    %v2149 = vmul.f32 %v2029, %v661
    %v2150 = vmul.f32 %v2031, %v661
    %v2151 = vmul.f32 %v2033, %v661
    %v2152 = vmul.f32 %v2035, %v661
    %v2153 = vmul.f32 %v2037, %v661
    %v2154 = vmul.f32 %v2039, %v661
    %v2155 = vmul.f32 %v2041, %v661
    %v2156 = vmul.f32 %v2043, %v661
    %v2157 = vmul.f32 %v2045, %v661
    %v2158 = vmul.f32 %v2047, %v661
    %v2159 = vmul.f32 %v2049, %v661
    %v2160 = vmul.f32 %v2051, %v661
    %v2161 = vmul.f32 %v2053, %v661
    %v2162 = vmul.f32 %v2055, %v661
    %v2163 = vmul.f32 %v2057, %v661
    %v2164 = vmul.f32 %v2059, %v661
    %v2165 = vmul.f32 %v2061, %v661
    %v2166 = vmul.f32 %v2063, %v661
    %v2167 = vmul.f32 %v2065, %v661
    %v2168 = vmul.f32 %v2067, %v661
    %v2169 = vmul.f32 %v2069, %v661
    %v2170 = vmul.f32 %v2071, %v661
    %v2171 = vmul.f32 %v2073, %v661
    %v2172 = vmul.f32 %v2075, %v661
    %v2173 = vmul.f32 %v2077, %v661
    %v2174 = vmul.f32 %v2079, %v661
    %v2175 = vmul.f32 %v2081, %v661
    %v2176 = vmul.f32 %v2083, %v661
    %v2177 = vmul.f32 %v2085, %v661
    %v2178 = vmul.f32 %v2087, %v661
    %v2179 = vmul.f32 %v2089, %v661
    %v2180 = vmul.f32 %v2091, %v661
    %v2181 = vmul.f32 %v2093, %v661
    %v2182 = vmul.f32 %v2095, %v661
    %v2183 = vmul.f32 %v2097, %v661
    %v2184 = vmul.f32 %v2099, %v661
    %v2185 = vmul.f32 %v2101, %v661
    %v2186 = vmul.f32 %v2103, %v661
    %v2187 = vmul.f32 %v2105, %v661
    %v2188 = vmul.f32 %v2107, %v661
    %v2189 = vmul.f32 %v2109, %v661
    %v2190 = vmul.f32 %v2111, %v661
    %v2191 = vmul.f32 %v2113, %v661
    %v2192 = vmul.f32 %v2115, %v661
    %v2193 = vmul.f32 %v2117, %v661
    %v2194 = vmul.f32 %v2119, %v661
    %v2195 = vmul.f32 %v2121, %v661
    %v2196 = vmul.f32 %v2123, %v661
    %v2197 = vmul.f32 %v2125, %v661
    %v2198 = vmul.f32 %v2127, %v661
    %v2199 = vmul.f32 %v2129, %v661
    %v2200 = vmul.f32 %v2131, %v661
    %v2201 = vmul.f32 %v2133, %v661
    %v2202 = vmul.f32 %v2135, %v661
    %v2203 = vmul.f32 %v2137, %v661
    %v2204 = vmul.f32 %v2139, %v661
    %v2205 = vmul.f32 %v2141, %v661
    %v2206 = vmul.f32 %v1760, %v1760
    %v2207 = vmul.f32 %v1763, %v1763
    %v2208 = vmul.f32 %v1768, %v1768
    %v2209 = vmul.f32 %v1771, %v1771
    %v2210 = vmul.f32 %v1776, %v1776
    %v2211 = vmul.f32 %v1779, %v1779
    %v2212 = vmul.f32 %v1784, %v1784
    %v2213 = vmul.f32 %v1787, %v1787
    %v2214 = vmul.f32 %v1792, %v1792
    %v2215 = vmul.f32 %v1795, %v1795
    %v2216 = vmul.f32 %v1800, %v1800
    %v2217 = vmul.f32 %v1803, %v1803
    %v2218 = vmul.f32 %v1808, %v1808
    %v2219 = vmul.f32 %v1811, %v1811
    %v2220 = vmul.f32 %v1816, %v1816
    %v2221 = vmul.f32 %v1819, %v1819
    %v2222 = vmul.f32 %v1824, %v1824
    %v2223 = vmul.f32 %v1827, %v1827
    %v2224 = vmul.f32 %v1832, %v1832
    %v2225 = vmul.f32 %v1835, %v1835
    %v2226 = vmul.f32 %v1840, %v1840
    %v2227 = vmul.f32 %v1843, %v1843
    %v2228 = vmul.f32 %v1848, %v1848
    %v2229 = vmul.f32 %v1851, %v1851
    %v2230 = vmul.f32 %v1856, %v1856
    %v2231 = vmul.f32 %v1859, %v1859
    %v2232 = vmul.f32 %v1864, %v1864
    %v2233 = vmul.f32 %v1867, %v1867
    %v2234 = vmul.f32 %v1872, %v1872
    %v2235 = vmul.f32 %v1875, %v1875
    %v2236 = vmul.f32 %v1880, %v1880
    %v2237 = vmul.f32 %v1883, %v1883
    %v2238 = vmul.f32 %v1888, %v1888
    %v2239 = vmul.f32 %v1891, %v1891
    %v2240 = vmul.f32 %v1896, %v1896
    %v2241 = vmul.f32 %v1899, %v1899
    %v2242 = vmul.f32 %v1904, %v1904
    %v2243 = vmul.f32 %v1907, %v1907
    %v2244 = vmul.f32 %v1912, %v1912
    %v2245 = vmul.f32 %v1915, %v1915
    %v2246 = vmul.f32 %v1920, %v1920
    %v2247 = vmul.f32 %v1923, %v1923
    %v2248 = vmul.f32 %v1928, %v1928
    %v2249 = vmul.f32 %v1931, %v1931
    %v2250 = vmul.f32 %v1936, %v1936
    %v2251 = vmul.f32 %v1939, %v1939
    %v2252 = vmul.f32 %v1944, %v1944
    %v2253 = vmul.f32 %v1947, %v1947
    %v2254 = vmul.f32 %v1952, %v1952
    %v2255 = vmul.f32 %v1955, %v1955
    %v2256 = vmul.f32 %v1960, %v1960
    %v2257 = vmul.f32 %v1963, %v1963
    %v2258 = vmul.f32 %v1968, %v1968
    %v2259 = vmul.f32 %v1971, %v1971
    %v2260 = vmul.f32 %v1976, %v1976
    %v2261 = vmul.f32 %v1979, %v1979
    %v2262 = vmul.f32 %v1984, %v1984
    %v2263 = vmul.f32 %v1987, %v1987
    %v2264 = vmul.f32 %v1992, %v1992
    %v2265 = vmul.f32 %v1995, %v1995
    %v2266 = vmul.f32 %v2000, %v2000
    %v2267 = vmul.f32 %v2003, %v2003
    %v2268 = vmul.f32 %v2008, %v2008
    %v2269 = vmul.f32 %v2011, %v2011
    %2270 = vadd.xlane.f32.xlu0 %v2206
    %v2271 = vpop.xlane.xlu0 %2270
    %2272 = vadd.xlane.f32.xlu0 %v2207
    %v2273 = vpop.xlane.xlu0 %2272
    %2274 = vadd.xlane.f32.xlu0 %v2208
    %v2275 = vpop.xlane.xlu0 %2274
    %2276 = vadd.xlane.f32.xlu0 %v2209
    %v2277 = vpop.xlane.xlu0 %2276
    %2278 = vadd.xlane.f32.xlu0 %v2210
    %v2279 = vpop.xlane.xlu0 %2278
    %2280 = vadd.xlane.f32.xlu0 %v2211
    %v2281 = vpop.xlane.xlu0 %2280
    %2282 = vadd.xlane.f32.xlu0 %v2212
    %v2283 = vpop.xlane.xlu0 %2282
    %2284 = vadd.xlane.f32.xlu0 %v2213
    %v2285 = vpop.xlane.xlu0 %2284
    %2286 = vadd.xlane.f32.xlu0 %v2214
    %v2287 = vpop.xlane.xlu0 %2286
    %2288 = vadd.xlane.f32.xlu0 %v2215
    %v2289 = vpop.xlane.xlu0 %2288
    %2290 = vadd.xlane.f32.xlu0 %v2216
    %v2291 = vpop.xlane.xlu0 %2290
    %2292 = vadd.xlane.f32.xlu0 %v2217
    %v2293 = vpop.xlane.xlu0 %2292
    %2294 = vadd.xlane.f32.xlu0 %v2218
    %v2295 = vpop.xlane.xlu0 %2294
    %2296 = vadd.xlane.f32.xlu0 %v2219
    %v2297 = vpop.xlane.xlu0 %2296
    %2298 = vadd.xlane.f32.xlu0 %v2220
    %v2299 = vpop.xlane.xlu0 %2298
    %2300 = vadd.xlane.f32.xlu0 %v2221
    %v2301 = vpop.xlane.xlu0 %2300
    %2302 = vadd.xlane.f32.xlu0 %v2222
    %v2303 = vpop.xlane.xlu0 %2302
    %2304 = vadd.xlane.f32.xlu0 %v2223
    %v2305 = vpop.xlane.xlu0 %2304
    %2306 = vadd.xlane.f32.xlu0 %v2224
    %v2307 = vpop.xlane.xlu0 %2306
    %2308 = vadd.xlane.f32.xlu0 %v2225
    %v2309 = vpop.xlane.xlu0 %2308
    %2310 = vadd.xlane.f32.xlu0 %v2226
    %v2311 = vpop.xlane.xlu0 %2310
    %2312 = vadd.xlane.f32.xlu0 %v2227
    %v2313 = vpop.xlane.xlu0 %2312
    %2314 = vadd.xlane.f32.xlu0 %v2228
    %v2315 = vpop.xlane.xlu0 %2314
    %2316 = vadd.xlane.f32.xlu0 %v2229
    %v2317 = vpop.xlane.xlu0 %2316
    %2318 = vadd.xlane.f32.xlu0 %v2230
    %v2319 = vpop.xlane.xlu0 %2318
    %2320 = vadd.xlane.f32.xlu0 %v2231
    %v2321 = vpop.xlane.xlu0 %2320
    %2322 = vadd.xlane.f32.xlu0 %v2232
    %v2323 = vpop.xlane.xlu0 %2322
    %2324 = vadd.xlane.f32.xlu0 %v2233
    %v2325 = vpop.xlane.xlu0 %2324
    %2326 = vadd.xlane.f32.xlu0 %v2234
    %v2327 = vpop.xlane.xlu0 %2326
    %2328 = vadd.xlane.f32.xlu0 %v2235
    %v2329 = vpop.xlane.xlu0 %2328
    %2330 = vadd.xlane.f32.xlu0 %v2236
    %v2331 = vpop.xlane.xlu0 %2330
    %2332 = vadd.xlane.f32.xlu0 %v2237
    %v2333 = vpop.xlane.xlu0 %2332
    %2334 = vadd.xlane.f32.xlu0 %v2238
    %v2335 = vpop.xlane.xlu0 %2334
    %2336 = vadd.xlane.f32.xlu0 %v2239
    %v2337 = vpop.xlane.xlu0 %2336
    %2338 = vadd.xlane.f32.xlu0 %v2240
    %v2339 = vpop.xlane.xlu0 %2338
    %2340 = vadd.xlane.f32.xlu0 %v2241
    %v2341 = vpop.xlane.xlu0 %2340
    %2342 = vadd.xlane.f32.xlu0 %v2242
    %v2343 = vpop.xlane.xlu0 %2342
    %2344 = vadd.xlane.f32.xlu0 %v2243
    %v2345 = vpop.xlane.xlu0 %2344
    %2346 = vadd.xlane.f32.xlu0 %v2244
    %v2347 = vpop.xlane.xlu0 %2346
    %2348 = vadd.xlane.f32.xlu0 %v2245
    %v2349 = vpop.xlane.xlu0 %2348
    %2350 = vadd.xlane.f32.xlu0 %v2246
    %v2351 = vpop.xlane.xlu0 %2350
    %2352 = vadd.xlane.f32.xlu0 %v2247
    %v2353 = vpop.xlane.xlu0 %2352
    %2354 = vadd.xlane.f32.xlu0 %v2248
    %v2355 = vpop.xlane.xlu0 %2354
    %2356 = vadd.xlane.f32.xlu0 %v2249
    %v2357 = vpop.xlane.xlu0 %2356
    %2358 = vadd.xlane.f32.xlu0 %v2250
    %v2359 = vpop.xlane.xlu0 %2358
    %2360 = vadd.xlane.f32.xlu0 %v2251
    %v2361 = vpop.xlane.xlu0 %2360
    %2362 = vadd.xlane.f32.xlu0 %v2252
    %v2363 = vpop.xlane.xlu0 %2362
    %2364 = vadd.xlane.f32.xlu0 %v2253
    %v2365 = vpop.xlane.xlu0 %2364
    %2366 = vadd.xlane.f32.xlu0 %v2254
    %v2367 = vpop.xlane.xlu0 %2366
    %2368 = vadd.xlane.f32.xlu0 %v2255
    %v2369 = vpop.xlane.xlu0 %2368
    %2370 = vadd.xlane.f32.xlu0 %v2256
    %v2371 = vpop.xlane.xlu0 %2370
    %2372 = vadd.xlane.f32.xlu0 %v2257
    %v2373 = vpop.xlane.xlu0 %2372
    %2374 = vadd.xlane.f32.xlu0 %v2258
    %v2375 = vpop.xlane.xlu0 %2374
    %2376 = vadd.xlane.f32.xlu0 %v2259
    %v2377 = vpop.xlane.xlu0 %2376
    %2378 = vadd.xlane.f32.xlu0 %v2260
    %v2379 = vpop.xlane.xlu0 %2378
    %2380 = vadd.xlane.f32.xlu0 %v2261
    %v2381 = vpop.xlane.xlu0 %2380
    %2382 = vadd.xlane.f32.xlu0 %v2262
    %v2383 = vpop.xlane.xlu0 %2382
    %2384 = vadd.xlane.f32.xlu0 %v2263
    %v2385 = vpop.xlane.xlu0 %2384
    %2386 = vadd.xlane.f32.xlu0 %v2264
    %v2387 = vpop.xlane.xlu0 %2386
    %2388 = vadd.xlane.f32.xlu0 %v2265
    %v2389 = vpop.xlane.xlu0 %2388
    %2390 = vadd.xlane.f32.xlu0 %v2266
    %v2391 = vpop.xlane.xlu0 %2390
    %2392 = vadd.xlane.f32.xlu0 %v2267
    %v2393 = vpop.xlane.xlu0 %2392
    %2394 = vadd.xlane.f32.xlu0 %v2268
    %v2395 = vpop.xlane.xlu0 %2394
    %2396 = vadd.xlane.f32.xlu0 %v2269
    %v2397 = vpop.xlane.xlu0 %2396
    %v2398 = vmul.f32 %v2271, %v661
    %v2399 = vmul.f32 %v2273, %v661
    %v2400 = vmul.f32 %v2275, %v661
    %v2401 = vmul.f32 %v2277, %v661
    %v2402 = vmul.f32 %v2279, %v661
    %v2403 = vmul.f32 %v2281, %v661
    %v2404 = vmul.f32 %v2283, %v661
    %v2405 = vmul.f32 %v2285, %v661
    %v2406 = vmul.f32 %v2287, %v661
    %v2407 = vmul.f32 %v2289, %v661
    %v2408 = vmul.f32 %v2291, %v661
    %v2409 = vmul.f32 %v2293, %v661
    %v2410 = vmul.f32 %v2295, %v661
    %v2411 = vmul.f32 %v2297, %v661
    %v2412 = vmul.f32 %v2299, %v661
    %v2413 = vmul.f32 %v2301, %v661
    %v2414 = vmul.f32 %v2303, %v661
    %v2415 = vmul.f32 %v2305, %v661
    %v2416 = vmul.f32 %v2307, %v661
    %v2417 = vmul.f32 %v2309, %v661
    %v2418 = vmul.f32 %v2311, %v661
    %v2419 = vmul.f32 %v2313, %v661
    %v2420 = vmul.f32 %v2315, %v661
    %v2421 = vmul.f32 %v2317, %v661
    %v2422 = vmul.f32 %v2319, %v661
    %v2423 = vmul.f32 %v2321, %v661
    %v2424 = vmul.f32 %v2323, %v661
    %v2425 = vmul.f32 %v2325, %v661
    %v2426 = vmul.f32 %v2327, %v661
    %v2427 = vmul.f32 %v2329, %v661
    %v2428 = vmul.f32 %v2331, %v661
    %v2429 = vmul.f32 %v2333, %v661
    %v2430 = vmul.f32 %v2335, %v661
    %v2431 = vmul.f32 %v2337, %v661
    %v2432 = vmul.f32 %v2339, %v661
    %v2433 = vmul.f32 %v2341, %v661
    %v2434 = vmul.f32 %v2343, %v661
    %v2435 = vmul.f32 %v2345, %v661
    %v2436 = vmul.f32 %v2347, %v661
    %v2437 = vmul.f32 %v2349, %v661
    %v2438 = vmul.f32 %v2351, %v661
    %v2439 = vmul.f32 %v2353, %v661
    %v2440 = vmul.f32 %v2355, %v661
    %v2441 = vmul.f32 %v2357, %v661
    %v2442 = vmul.f32 %v2359, %v661
    %v2443 = vmul.f32 %v2361, %v661
    %v2444 = vmul.f32 %v2363, %v661
    %v2445 = vmul.f32 %v2365, %v661
    %v2446 = vmul.f32 %v2367, %v661
    %v2447 = vmul.f32 %v2369, %v661
    %v2448 = vmul.f32 %v2371, %v661
    %v2449 = vmul.f32 %v2373, %v661
    %v2450 = vmul.f32 %v2375, %v661
    %v2451 = vmul.f32 %v2377, %v661
    %v2452 = vmul.f32 %v2379, %v661
    %v2453 = vmul.f32 %v2381, %v661
    %v2454 = vmul.f32 %v2383, %v661
    %v2455 = vmul.f32 %v2385, %v661
    %v2456 = vmul.f32 %v2387, %v661
    %v2457 = vmul.f32 %v2389, %v661
    %v2458 = vmul.f32 %v2391, %v661
    %v2459 = vmul.f32 %v2393, %v661
    %v2460 = vmul.f32 %v2395, %v661
    %v2461 = vmul.f32 %v2397, %v661
    %v2462 = vmul.f32 %v2142, %v2142
    %v2463 = vmul.f32 %v2143, %v2143
    %v2464 = vmul.f32 %v2144, %v2144
    %v2465 = vmul.f32 %v2145, %v2145
    %v2466 = vmul.f32 %v2146, %v2146
    %v2467 = vmul.f32 %v2147, %v2147
    %v2468 = vmul.f32 %v2148, %v2148
    %v2469 = vmul.f32 %v2149, %v2149
    %v2470 = vmul.f32 %v2150, %v2150
    %v2471 = vmul.f32 %v2151, %v2151
    %v2472 = vmul.f32 %v2152, %v2152
    %v2473 = vmul.f32 %v2153, %v2153
    %v2474 = vmul.f32 %v2154, %v2154
    %v2475 = vmul.f32 %v2155, %v2155
    %v2476 = vmul.f32 %v2156, %v2156
    %v2477 = vmul.f32 %v2157, %v2157
    %v2478 = vmul.f32 %v2158, %v2158
    %v2479 = vmul.f32 %v2159, %v2159
    %v2480 = vmul.f32 %v2160, %v2160
    %v2481 = vmul.f32 %v2161, %v2161
    %v2482 = vmul.f32 %v2162, %v2162
    %v2483 = vmul.f32 %v2163, %v2163
    %v2484 = vmul.f32 %v2164, %v2164
    %v2485 = vmul.f32 %v2165, %v2165
    %v2486 = vmul.f32 %v2166, %v2166
    %v2487 = vmul.f32 %v2167, %v2167
    %v2488 = vmul.f32 %v2168, %v2168
    %v2489 = vmul.f32 %v2169, %v2169
    %v2490 = vmul.f32 %v2170, %v2170
    %v2491 = vmul.f32 %v2171, %v2171
    %v2492 = vmul.f32 %v2172, %v2172
    %v2493 = vmul.f32 %v2173, %v2173
    %v2494 = vmul.f32 %v2174, %v2174
    %v2495 = vmul.f32 %v2175, %v2175
    %v2496 = vmul.f32 %v2176, %v2176
    %v2497 = vmul.f32 %v2177, %v2177
    %v2498 = vmul.f32 %v2178, %v2178
    %v2499 = vmul.f32 %v2179, %v2179
    %v2500 = vmul.f32 %v2180, %v2180
    %v2501 = vmul.f32 %v2181, %v2181
    %v2502 = vmul.f32 %v2182, %v2182
    %v2503 = vmul.f32 %v2183, %v2183
    %v2504 = vmul.f32 %v2184, %v2184
    %v2505 = vmul.f32 %v2185, %v2185
    %v2506 = vmul.f32 %v2186, %v2186
    %v2507 = vmul.f32 %v2187, %v2187
    %v2508 = vmul.f32 %v2188, %v2188
    %v2509 = vmul.f32 %v2189, %v2189
    %v2510 = vmul.f32 %v2190, %v2190
    %v2511 = vmul.f32 %v2191, %v2191
    %v2512 = vmul.f32 %v2192, %v2192
    %v2513 = vmul.f32 %v2193, %v2193
    %v2514 = vmul.f32 %v2194, %v2194
    %v2515 = vmul.f32 %v2195, %v2195
    %v2516 = vmul.f32 %v2196, %v2196
    %v2517 = vmul.f32 %v2197, %v2197
    %v2518 = vmul.f32 %v2198, %v2198
    %v2519 = vmul.f32 %v2199, %v2199
    %v2520 = vmul.f32 %v2200, %v2200
    %v2521 = vmul.f32 %v2201, %v2201
    %v2522 = vmul.f32 %v2202, %v2202
    %v2523 = vmul.f32 %v2203, %v2203
    %v2524 = vmul.f32 %v2204, %v2204
    %v2525 = vmul.f32 %v2205, %v2205
    %v2526 = vsub.f32 %v2398, %v2462
    %v2527 = vsub.f32 %v2399, %v2463
    %v2528 = vsub.f32 %v2400, %v2464
    %v2529 = vsub.f32 %v2401, %v2465
    %v2530 = vsub.f32 %v2402, %v2466
    %v2531 = vsub.f32 %v2403, %v2467
    %v2532 = vsub.f32 %v2404, %v2468
    %v2533 = vsub.f32 %v2405, %v2469
    %v2534 = vsub.f32 %v2406, %v2470
    %v2535 = vsub.f32 %v2407, %v2471
    %v2536 = vsub.f32 %v2408, %v2472
    %v2537 = vsub.f32 %v2409, %v2473
    %v2538 = vsub.f32 %v2410, %v2474
    %v2539 = vsub.f32 %v2411, %v2475
    %v2540 = vsub.f32 %v2412, %v2476
    %v2541 = vsub.f32 %v2413, %v2477
    %v2542 = vsub.f32 %v2414, %v2478
    %v2543 = vsub.f32 %v2415, %v2479
    %v2544 = vsub.f32 %v2416, %v2480
    %v2545 = vsub.f32 %v2417, %v2481
    %v2546 = vsub.f32 %v2418, %v2482
    %v2547 = vsub.f32 %v2419, %v2483
    %v2548 = vsub.f32 %v2420, %v2484
    %v2549 = vsub.f32 %v2421, %v2485
    %v2550 = vsub.f32 %v2422, %v2486
    %v2551 = vsub.f32 %v2423, %v2487
    %v2552 = vsub.f32 %v2424, %v2488
    %v2553 = vsub.f32 %v2425, %v2489
    %v2554 = vsub.f32 %v2426, %v2490
    %v2555 = vsub.f32 %v2427, %v2491
    %v2556 = vsub.f32 %v2428, %v2492
    %v2557 = vsub.f32 %v2429, %v2493
    %v2558 = vsub.f32 %v2430, %v2494
    %v2559 = vsub.f32 %v2431, %v2495
    %v2560 = vsub.f32 %v2432, %v2496
    %v2561 = vsub.f32 %v2433, %v2497
    %v2562 = vsub.f32 %v2434, %v2498
    %v2563 = vsub.f32 %v2435, %v2499
    %v2564 = vsub.f32 %v2436, %v2500
    %v2565 = vsub.f32 %v2437, %v2501
    %v2566 = vsub.f32 %v2438, %v2502
    %v2567 = vsub.f32 %v2439, %v2503
    %v2568 = vsub.f32 %v2440, %v2504
    %v2569 = vsub.f32 %v2441, %v2505
    %v2570 = vsub.f32 %v2442, %v2506
    %v2571 = vsub.f32 %v2443, %v2507
    %v2572 = vsub.f32 %v2444, %v2508
    %v2573 = vsub.f32 %v2445, %v2509
    %v2574 = vsub.f32 %v2446, %v2510
    %v2575 = vsub.f32 %v2447, %v2511
    %v2576 = vsub.f32 %v2448, %v2512
    %v2577 = vsub.f32 %v2449, %v2513
    %v2578 = vsub.f32 %v2450, %v2514
    %v2579 = vsub.f32 %v2451, %v2515
    %v2580 = vsub.f32 %v2452, %v2516
    %v2581 = vsub.f32 %v2453, %v2517
    %v2582 = vsub.f32 %v2454, %v2518
    %v2583 = vsub.f32 %v2455, %v2519
    %v2584 = vsub.f32 %v2456, %v2520
    %v2585 = vsub.f32 %v2457, %v2521
    %v2586 = vsub.f32 %v2458, %v2522
    %v2587 = vsub.f32 %v2459, %v2523
    %v2588 = vsub.f32 %v2460, %v2524
    %v2589 = vsub.f32 %v2461, %v2525
    %v2590 = vmax.f32 %v2526, 0.0
    %v2591 = vmax.f32 %v2527, 0.0
    %v2592 = vmax.f32 %v2528, 0.0
    %v2593 = vmax.f32 %v2529, 0.0
    %v2594 = vmax.f32 %v2530, 0.0
    %v2595 = vmax.f32 %v2531, 0.0
    %v2596 = vmax.f32 %v2532, 0.0
    %v2597 = vmax.f32 %v2533, 0.0
    %v2598 = vmax.f32 %v2534, 0.0
    %v2599 = vmax.f32 %v2535, 0.0
    %v2600 = vmax.f32 %v2536, 0.0
    %v2601 = vmax.f32 %v2537, 0.0
    %v2602 = vmax.f32 %v2538, 0.0
    %v2603 = vmax.f32 %v2539, 0.0
    %v2604 = vmax.f32 %v2540, 0.0
    %v2605 = vmax.f32 %v2541, 0.0
    %v2606 = vmax.f32 %v2542, 0.0
    %v2607 = vmax.f32 %v2543, 0.0
    %v2608 = vmax.f32 %v2544, 0.0
    %v2609 = vmax.f32 %v2545, 0.0
    %v2610 = vmax.f32 %v2546, 0.0
    %v2611 = vmax.f32 %v2547, 0.0
    %v2612 = vmax.f32 %v2548, 0.0
    %v2613 = vmax.f32 %v2549, 0.0
    %v2614 = vmax.f32 %v2550, 0.0
    %v2615 = vmax.f32 %v2551, 0.0
    %v2616 = vmax.f32 %v2552, 0.0
    %v2617 = vmax.f32 %v2553, 0.0
    %v2618 = vmax.f32 %v2554, 0.0
    %v2619 = vmax.f32 %v2555, 0.0
    %v2620 = vmax.f32 %v2556, 0.0
    %v2621 = vmax.f32 %v2557, 0.0
    %v2622 = vmax.f32 %v2558, 0.0
    %v2623 = vmax.f32 %v2559, 0.0
    %v2624 = vmax.f32 %v2560, 0.0
    %v2625 = vmax.f32 %v2561, 0.0
    %v2626 = vmax.f32 %v2562, 0.0
    %v2627 = vmax.f32 %v2563, 0.0
    %v2628 = vmax.f32 %v2564, 0.0
    %v2629 = vmax.f32 %v2565, 0.0
    %v2630 = vmax.f32 %v2566, 0.0
    %v2631 = vmax.f32 %v2567, 0.0
    %v2632 = vmax.f32 %v2568, 0.0
    %v2633 = vmax.f32 %v2569, 0.0
    %v2634 = vmax.f32 %v2570, 0.0
    %v2635 = vmax.f32 %v2571, 0.0
    %v2636 = vmax.f32 %v2572, 0.0
    %v2637 = vmax.f32 %v2573, 0.0
    %v2638 = vmax.f32 %v2574, 0.0
    %v2639 = vmax.f32 %v2575, 0.0
    %v2640 = vmax.f32 %v2576, 0.0
    %v2641 = vmax.f32 %v2577, 0.0
    %v2642 = vmax.f32 %v2578, 0.0
    %v2643 = vmax.f32 %v2579, 0.0
    %v2644 = vmax.f32 %v2580, 0.0
    %v2645 = vmax.f32 %v2581, 0.0
    %v2646 = vmax.f32 %v2582, 0.0
    %v2647 = vmax.f32 %v2583, 0.0
    %v2648 = vmax.f32 %v2584, 0.0
    %v2649 = vmax.f32 %v2585, 0.0
    %v2650 = vmax.f32 %v2586, 0.0
    %v2651 = vmax.f32 %v2587, 0.0
    %v2652 = vmax.f32 %v2588, 0.0
    %v2653 = vmax.f32 %v2589, 0.0
    %v2654 = vsub.f32 %v1760, %v2142
    %v2655 = vsub.f32 %v1763, %v2143
    %v2656 = vsub.f32 %v1768, %v2144
    %v2657 = vsub.f32 %v1771, %v2145
    %v2658 = vsub.f32 %v1776, %v2146
    %v2659 = vsub.f32 %v1779, %v2147
    %v2660 = vsub.f32 %v1784, %v2148
    %v2661 = vsub.f32 %v1787, %v2149
    %v2662 = vsub.f32 %v1792, %v2150
    %v2663 = vsub.f32 %v1795, %v2151
    %v2664 = vsub.f32 %v1800, %v2152
    %v2665 = vsub.f32 %v1803, %v2153
    %v2666 = vsub.f32 %v1808, %v2154
    %v2667 = vsub.f32 %v1811, %v2155
    %v2668 = vsub.f32 %v1816, %v2156
    %v2669 = vsub.f32 %v1819, %v2157
    %v2670 = vsub.f32 %v1824, %v2158
    %v2671 = vsub.f32 %v1827, %v2159
    %v2672 = vsub.f32 %v1832, %v2160
    %v2673 = vsub.f32 %v1835, %v2161
    %v2674 = vsub.f32 %v1840, %v2162
    %v2675 = vsub.f32 %v1843, %v2163
    %v2676 = vsub.f32 %v1848, %v2164
    %v2677 = vsub.f32 %v1851, %v2165
    %v2678 = vsub.f32 %v1856, %v2166
    %v2679 = vsub.f32 %v1859, %v2167
    %v2680 = vsub.f32 %v1864, %v2168
    %v2681 = vsub.f32 %v1867, %v2169
    %v2682 = vsub.f32 %v1872, %v2170
    %v2683 = vsub.f32 %v1875, %v2171
    %v2684 = vsub.f32 %v1880, %v2172
    %v2685 = vsub.f32 %v1883, %v2173
    %v2686 = vsub.f32 %v1888, %v2174
    %v2687 = vsub.f32 %v1891, %v2175
    %v2688 = vsub.f32 %v1896, %v2176
    %v2689 = vsub.f32 %v1899, %v2177
    %v2690 = vsub.f32 %v1904, %v2178
    %v2691 = vsub.f32 %v1907, %v2179
    %v2692 = vsub.f32 %v1912, %v2180
    %v2693 = vsub.f32 %v1915, %v2181
    %v2694 = vsub.f32 %v1920, %v2182
    %v2695 = vsub.f32 %v1923, %v2183
    %v2696 = vsub.f32 %v1928, %v2184
    %v2697 = vsub.f32 %v1931, %v2185
    %v2698 = vsub.f32 %v1936, %v2186
    %v2699 = vsub.f32 %v1939, %v2187
    %v2700 = vsub.f32 %v1944, %v2188
    %v2701 = vsub.f32 %v1947, %v2189
    %v2702 = vsub.f32 %v1952, %v2190
    %v2703 = vsub.f32 %v1955, %v2191
    %v2704 = vsub.f32 %v1960, %v2192
    %v2705 = vsub.f32 %v1963, %v2193
    %v2706 = vsub.f32 %v1968, %v2194
    %v2707 = vsub.f32 %v1971, %v2195
    %v2708 = vsub.f32 %v1976, %v2196
    %v2709 = vsub.f32 %v1979, %v2197
    %v2710 = vsub.f32 %v1984, %v2198
    %v2711 = vsub.f32 %v1987, %v2199
    %v2712 = vsub.f32 %v1992, %v2200
    %v2713 = vsub.f32 %v1995, %v2201
    %v2714 = vsub.f32 %v2000, %v2202
    %v2715 = vsub.f32 %v2003, %v2203
    %v2716 = vsub.f32 %v2008, %v2204
    %v2717 = vsub.f32 %v2011, %v2205
    %v2718 = vadd.f32 %v2590, 1e-05
    %v2719 = vadd.f32 %v2591, 1e-05
    %v2720 = vadd.f32 %v2592, 1e-05
    %v2721 = vadd.f32 %v2593, 1e-05
    %v2722 = vadd.f32 %v2594, 1e-05
    %v2723 = vadd.f32 %v2595, 1e-05
    %v2724 = vadd.f32 %v2596, 1e-05
    %v2725 = vadd.f32 %v2597, 1e-05
    %v2726 = vadd.f32 %v2598, 1e-05
    %v2727 = vadd.f32 %v2599, 1e-05
    %v2728 = vadd.f32 %v2600, 1e-05
    %v2729 = vadd.f32 %v2601, 1e-05
    %v2730 = vadd.f32 %v2602, 1e-05
    %v2731 = vadd.f32 %v2603, 1e-05
    %v2732 = vadd.f32 %v2604, 1e-05
    %v2733 = vadd.f32 %v2605, 1e-05
    %v2734 = vadd.f32 %v2606, 1e-05
    %v2735 = vadd.f32 %v2607, 1e-05
    %v2736 = vadd.f32 %v2608, 1e-05
    %v2737 = vadd.f32 %v2609, 1e-05
    %v2738 = vadd.f32 %v2610, 1e-05
    %v2739 = vadd.f32 %v2611, 1e-05
    %v2740 = vadd.f32 %v2612, 1e-05
    %v2741 = vadd.f32 %v2613, 1e-05
    %v2742 = vadd.f32 %v2614, 1e-05
    %v2743 = vadd.f32 %v2615, 1e-05
    %v2744 = vadd.f32 %v2616, 1e-05
    %v2745 = vadd.f32 %v2617, 1e-05
    %v2746 = vadd.f32 %v2618, 1e-05
    %v2747 = vadd.f32 %v2619, 1e-05
    %v2748 = vadd.f32 %v2620, 1e-05
    %v2749 = vadd.f32 %v2621, 1e-05
    %v2750 = vadd.f32 %v2622, 1e-05
    %v2751 = vadd.f32 %v2623, 1e-05
    %v2752 = vadd.f32 %v2624, 1e-05
    %v2753 = vadd.f32 %v2625, 1e-05
    %v2754 = vadd.f32 %v2626, 1e-05
    %v2755 = vadd.f32 %v2627, 1e-05
    %v2756 = vadd.f32 %v2628, 1e-05
    %v2757 = vadd.f32 %v2629, 1e-05
    %v2758 = vadd.f32 %v2630, 1e-05
    %v2759 = vadd.f32 %v2631, 1e-05
    %v2760 = vadd.f32 %v2632, 1e-05
    %v2761 = vadd.f32 %v2633, 1e-05
    %v2762 = vadd.f32 %v2634, 1e-05
    %v2763 = vadd.f32 %v2635, 1e-05
    %v2764 = vadd.f32 %v2636, 1e-05
    %v2765 = vadd.f32 %v2637, 1e-05
    %v2766 = vadd.f32 %v2638, 1e-05
    %v2767 = vadd.f32 %v2639, 1e-05
    %v2768 = vadd.f32 %v2640, 1e-05
    %v2769 = vadd.f32 %v2641, 1e-05
    %v2770 = vadd.f32 %v2642, 1e-05
    %v2771 = vadd.f32 %v2643, 1e-05
    %v2772 = vadd.f32 %v2644, 1e-05
    %v2773 = vadd.f32 %v2645, 1e-05
    %v2774 = vadd.f32 %v2646, 1e-05
    %v2775 = vadd.f32 %v2647, 1e-05
    %v2776 = vadd.f32 %v2648, 1e-05
    %v2777 = vadd.f32 %v2649, 1e-05
    %v2778 = vadd.f32 %v2650, 1e-05
    %v2779 = vadd.f32 %v2651, 1e-05
    %v2780 = vadd.f32 %v2652, 1e-05
    %v2781 = vadd.f32 %v2653, 1e-05
    %v2782 = vrsqrt.pop %v2718
    %v2783 = vrsqrt.pop %v2719
    %v2784 = vrsqrt.pop %v2720
    %v2785 = vrsqrt.pop %v2721
    %v2786 = vrsqrt.pop %v2722
    %v2787 = vrsqrt.pop %v2723
    %v2788 = vrsqrt.pop %v2724
    %v2789 = vrsqrt.pop %v2725
    %v2790 = vrsqrt.pop %v2726
    %v2791 = vrsqrt.pop %v2727
    %v2792 = vrsqrt.pop %v2728
    %v2793 = vrsqrt.pop %v2729
    %v2794 = vrsqrt.pop %v2730
    %v2795 = vrsqrt.pop %v2731
    %v2796 = vrsqrt.pop %v2732
    %v2797 = vrsqrt.pop %v2733
    %v2798 = vrsqrt.pop %v2734
    %v2799 = vrsqrt.pop %v2735
    %v2800 = vrsqrt.pop %v2736
    %v2801 = vrsqrt.pop %v2737
    %v2802 = vrsqrt.pop %v2738
    %v2803 = vrsqrt.pop %v2739
    %v2804 = vrsqrt.pop %v2740
    %v2805 = vrsqrt.pop %v2741
    %v2806 = vrsqrt.pop %v2742
    %v2807 = vrsqrt.pop %v2743
    %v2808 = vrsqrt.pop %v2744
    %v2809 = vrsqrt.pop %v2745
    %v2810 = vrsqrt.pop %v2746
    %v2811 = vrsqrt.pop %v2747
    %v2812 = vrsqrt.pop %v2748
    %v2813 = vrsqrt.pop %v2749
    %v2814 = vrsqrt.pop %v2750
    %v2815 = vrsqrt.pop %v2751
    %v2816 = vrsqrt.pop %v2752
    %v2817 = vrsqrt.pop %v2753
    %v2818 = vrsqrt.pop %v2754
    %v2819 = vrsqrt.pop %v2755
    %v2820 = vrsqrt.pop %v2756
    %v2821 = vrsqrt.pop %v2757
    %v2822 = vrsqrt.pop %v2758
    %v2823 = vrsqrt.pop %v2759
    %v2824 = vrsqrt.pop %v2760
    %v2825 = vrsqrt.pop %v2761
    %v2826 = vrsqrt.pop %v2762
    %v2827 = vrsqrt.pop %v2763
    %v2828 = vrsqrt.pop %v2764
    %v2829 = vrsqrt.pop %v2765
    %v2830 = vrsqrt.pop %v2766
    %v2831 = vrsqrt.pop %v2767
    %v2832 = vrsqrt.pop %v2768
    %v2833 = vrsqrt.pop %v2769
    %v2834 = vrsqrt.pop %v2770
    %v2835 = vrsqrt.pop %v2771
    %v2836 = vrsqrt.pop %v2772
    %v2837 = vrsqrt.pop %v2773
    %v2838 = vrsqrt.pop %v2774
    %v2839 = vrsqrt.pop %v2775
    %v2840 = vrsqrt.pop %v2776
    %v2841 = vrsqrt.pop %v2777
    %v2842 = vrsqrt.pop %v2778
    %v2843 = vrsqrt.pop %v2779
    %v2844 = vrsqrt.pop %v2780
    %v2845 = vrsqrt.pop %v2781
    %v2846 = vmul.f32 %v2654, %v2782
    %v2847 = vmul.f32 %v2655, %v2783
    %v2848 = vmul.f32 %v2656, %v2784
    %v2849 = vmul.f32 %v2657, %v2785
    %v2850 = vmul.f32 %v2658, %v2786
    %v2851 = vmul.f32 %v2659, %v2787
    %v2852 = vmul.f32 %v2660, %v2788
    %v2853 = vmul.f32 %v2661, %v2789
    %v2854 = vmul.f32 %v2662, %v2790
    %v2855 = vmul.f32 %v2663, %v2791
    %v2856 = vmul.f32 %v2664, %v2792
    %v2857 = vmul.f32 %v2665, %v2793
    %v2858 = vmul.f32 %v2666, %v2794
    %v2859 = vmul.f32 %v2667, %v2795
    %v2860 = vmul.f32 %v2668, %v2796
    %v2861 = vmul.f32 %v2669, %v2797
    %v2862 = vmul.f32 %v2670, %v2798
    %v2863 = vmul.f32 %v2671, %v2799
    %v2864 = vmul.f32 %v2672, %v2800
    %v2865 = vmul.f32 %v2673, %v2801
    %v2866 = vmul.f32 %v2674, %v2802
    %v2867 = vmul.f32 %v2675, %v2803
    %v2868 = vmul.f32 %v2676, %v2804
    %v2869 = vmul.f32 %v2677, %v2805
    %v2870 = vmul.f32 %v2678, %v2806
    %v2871 = vmul.f32 %v2679, %v2807
    %v2872 = vmul.f32 %v2680, %v2808
    %v2873 = vmul.f32 %v2681, %v2809
    %v2874 = vmul.f32 %v2682, %v2810
    %v2875 = vmul.f32 %v2683, %v2811
    %v2876 = vmul.f32 %v2684, %v2812
    %v2877 = vmul.f32 %v2685, %v2813
    %v2878 = vmul.f32 %v2686, %v2814
    %v2879 = vmul.f32 %v2687, %v2815
    %v2880 = vmul.f32 %v2688, %v2816
    %v2881 = vmul.f32 %v2689, %v2817
    %v2882 = vmul.f32 %v2690, %v2818
    %v2883 = vmul.f32 %v2691, %v2819
    %v2884 = vmul.f32 %v2692, %v2820
    %v2885 = vmul.f32 %v2693, %v2821
    %v2886 = vmul.f32 %v2694, %v2822
    %v2887 = vmul.f32 %v2695, %v2823
    %v2888 = vmul.f32 %v2696, %v2824
    %v2889 = vmul.f32 %v2697, %v2825
    %v2890 = vmul.f32 %v2698, %v2826
    %v2891 = vmul.f32 %v2699, %v2827
    %v2892 = vmul.f32 %v2700, %v2828
    %v2893 = vmul.f32 %v2701, %v2829
    %v2894 = vmul.f32 %v2702, %v2830
    %v2895 = vmul.f32 %v2703, %v2831
    %v2896 = vmul.f32 %v2704, %v2832
    %v2897 = vmul.f32 %v2705, %v2833
    %v2898 = vmul.f32 %v2706, %v2834
    %v2899 = vmul.f32 %v2707, %v2835
    %v2900 = vmul.f32 %v2708, %v2836
    %v2901 = vmul.f32 %v2709, %v2837
    %v2902 = vmul.f32 %v2710, %v2838
    %v2903 = vmul.f32 %v2711, %v2839
    %v2904 = vmul.f32 %v2712, %v2840
    %v2905 = vmul.f32 %v2713, %v2841
    %v2906 = vmul.f32 %v2714, %v2842
    %v2907 = vmul.f32 %v2715, %v2843
    %v2908 = vmul.f32 %v2716, %v2844
    %v2909 = vmul.f32 %v2717, %v2845
    %vm2910 = vcmp.gt.f32.partialorder %v2846, 0.0
    %vm2911 = vcmp.gt.f32.partialorder %v2847, 0.0
    %vm2912 = vcmp.gt.f32.partialorder %v2848, 0.0
    %vm2913 = vcmp.gt.f32.partialorder %v2849, 0.0
    %vm2914 = vcmp.gt.f32.partialorder %v2850, 0.0
    %vm2915 = vcmp.gt.f32.partialorder %v2851, 0.0
    %vm2916 = vcmp.gt.f32.partialorder %v2852, 0.0
    %vm2917 = vcmp.gt.f32.partialorder %v2853, 0.0
    %vm2918 = vcmp.gt.f32.partialorder %v2854, 0.0
    %vm2919 = vcmp.gt.f32.partialorder %v2855, 0.0
    %vm2920 = vcmp.gt.f32.partialorder %v2856, 0.0
    %vm2921 = vcmp.gt.f32.partialorder %v2857, 0.0
    %vm2922 = vcmp.gt.f32.partialorder %v2858, 0.0
    %vm2923 = vcmp.gt.f32.partialorder %v2859, 0.0
    %vm2924 = vcmp.gt.f32.partialorder %v2860, 0.0
    %vm2925 = vcmp.gt.f32.partialorder %v2861, 0.0
    %vm2926 = vcmp.gt.f32.partialorder %v2862, 0.0
    %vm2927 = vcmp.gt.f32.partialorder %v2863, 0.0
    %vm2928 = vcmp.gt.f32.partialorder %v2864, 0.0
    %vm2929 = vcmp.gt.f32.partialorder %v2865, 0.0
    %vm2930 = vcmp.gt.f32.partialorder %v2866, 0.0
    %vm2931 = vcmp.gt.f32.partialorder %v2867, 0.0
    %vm2932 = vcmp.gt.f32.partialorder %v2868, 0.0
    %vm2933 = vcmp.gt.f32.partialorder %v2869, 0.0
    %vm2934 = vcmp.gt.f32.partialorder %v2870, 0.0
    %vm2935 = vcmp.gt.f32.partialorder %v2871, 0.0
    %vm2936 = vcmp.gt.f32.partialorder %v2872, 0.0
    %vm2937 = vcmp.gt.f32.partialorder %v2873, 0.0
    %vm2938 = vcmp.gt.f32.partialorder %v2874, 0.0
    %vm2939 = vcmp.gt.f32.partialorder %v2875, 0.0
    %vm2940 = vcmp.gt.f32.partialorder %v2876, 0.0
    %vm2941 = vcmp.gt.f32.partialorder %v2877, 0.0
    %vm2942 = vcmp.gt.f32.partialorder %v2878, 0.0
    %vm2943 = vcmp.gt.f32.partialorder %v2879, 0.0
    %vm2944 = vcmp.gt.f32.partialorder %v2880, 0.0
    %vm2945 = vcmp.gt.f32.partialorder %v2881, 0.0
    %vm2946 = vcmp.gt.f32.partialorder %v2882, 0.0
    %vm2947 = vcmp.gt.f32.partialorder %v2883, 0.0
    %vm2948 = vcmp.gt.f32.partialorder %v2884, 0.0
    %vm2949 = vcmp.gt.f32.partialorder %v2885, 0.0
    %vm2950 = vcmp.gt.f32.partialorder %v2886, 0.0
    %vm2951 = vcmp.gt.f32.partialorder %v2887, 0.0
    %vm2952 = vcmp.gt.f32.partialorder %v2888, 0.0
    %vm2953 = vcmp.gt.f32.partialorder %v2889, 0.0
    %vm2954 = vcmp.gt.f32.partialorder %v2890, 0.0
    %vm2955 = vcmp.gt.f32.partialorder %v2891, 0.0
    %vm2956 = vcmp.gt.f32.partialorder %v2892, 0.0
    %vm2957 = vcmp.gt.f32.partialorder %v2893, 0.0
    %vm2958 = vcmp.gt.f32.partialorder %v2894, 0.0
    %vm2959 = vcmp.gt.f32.partialorder %v2895, 0.0
    %vm2960 = vcmp.gt.f32.partialorder %v2896, 0.0
    %vm2961 = vcmp.gt.f32.partialorder %v2897, 0.0
    %vm2962 = vcmp.gt.f32.partialorder %v2898, 0.0
    %vm2963 = vcmp.gt.f32.partialorder %v2899, 0.0
    %vm2964 = vcmp.gt.f32.partialorder %v2900, 0.0
    %vm2965 = vcmp.gt.f32.partialorder %v2901, 0.0
    %vm2966 = vcmp.gt.f32.partialorder %v2902, 0.0
    %vm2967 = vcmp.gt.f32.partialorder %v2903, 0.0
    %vm2968 = vcmp.gt.f32.partialorder %v2904, 0.0
    %vm2969 = vcmp.gt.f32.partialorder %v2905, 0.0
    %vm2970 = vcmp.gt.f32.partialorder %v2906, 0.0
    %vm2971 = vcmp.gt.f32.partialorder %v2907, 0.0
    %vm2972 = vcmp.gt.f32.partialorder %v2908, 0.0
    %vm2973 = vcmp.gt.f32.partialorder %v2909, 0.0
    %v2974 = vmul.f32 %v2846, 0.01
    %v2975 = vmul.f32 %v2847, 0.01
    %v2976 = vmul.f32 %v2848, 0.01
    %v2977 = vmul.f32 %v2849, 0.01
    %v2978 = vmul.f32 %v2850, 0.01
    %v2979 = vmul.f32 %v2851, 0.01
    %v2980 = vmul.f32 %v2852, 0.01
    %v2981 = vmul.f32 %v2853, 0.01
    %v2982 = vmul.f32 %v2854, 0.01
    %v2983 = vmul.f32 %v2855, 0.01
    %v2984 = vmul.f32 %v2856, 0.01
    %v2985 = vmul.f32 %v2857, 0.01
    %v2986 = vmul.f32 %v2858, 0.01
    %v2987 = vmul.f32 %v2859, 0.01
    %v2988 = vmul.f32 %v2860, 0.01
    %v2989 = vmul.f32 %v2861, 0.01
    %v2990 = vmul.f32 %v2862, 0.01
    %v2991 = vmul.f32 %v2863, 0.01
    %v2992 = vmul.f32 %v2864, 0.01
    %v2993 = vmul.f32 %v2865, 0.01
    %v2994 = vmul.f32 %v2866, 0.01
    %v2995 = vmul.f32 %v2867, 0.01
    %v2996 = vmul.f32 %v2868, 0.01
    %v2997 = vmul.f32 %v2869, 0.01
    %v2998 = vmul.f32 %v2870, 0.01
    %v2999 = vmul.f32 %v2871, 0.01
    %v3000 = vmul.f32 %v2872, 0.01
    %v3001 = vmul.f32 %v2873, 0.01
    %v3002 = vmul.f32 %v2874, 0.01
    %v3003 = vmul.f32 %v2875, 0.01
    %v3004 = vmul.f32 %v2876, 0.01
    %v3005 = vmul.f32 %v2877, 0.01
    %v3006 = vmul.f32 %v2878, 0.01
    %v3007 = vmul.f32 %v2879, 0.01
    %v3008 = vmul.f32 %v2880, 0.01
    %v3009 = vmul.f32 %v2881, 0.01
    %v3010 = vmul.f32 %v2882, 0.01
    %v3011 = vmul.f32 %v2883, 0.01
    %v3012 = vmul.f32 %v2884, 0.01
    %v3013 = vmul.f32 %v2885, 0.01
    %v3014 = vmul.f32 %v2886, 0.01
    %v3015 = vmul.f32 %v2887, 0.01
    %v3016 = vmul.f32 %v2888, 0.01
    %v3017 = vmul.f32 %v2889, 0.01
    %v3018 = vmul.f32 %v2890, 0.01
    %v3019 = vmul.f32 %v2891, 0.01
    %v3020 = vmul.f32 %v2892, 0.01
    %v3021 = vmul.f32 %v2893, 0.01
    %v3022 = vmul.f32 %v2894, 0.01
    %v3023 = vmul.f32 %v2895, 0.01
    %v3024 = vmul.f32 %v2896, 0.01
    %v3025 = vmul.f32 %v2897, 0.01
    %v3026 = vmul.f32 %v2898, 0.01
    %v3027 = vmul.f32 %v2899, 0.01
    %v3028 = vmul.f32 %v2900, 0.01
    %v3029 = vmul.f32 %v2901, 0.01
    %v3030 = vmul.f32 %v2902, 0.01
    %v3031 = vmul.f32 %v2903, 0.01
    %v3032 = vmul.f32 %v2904, 0.01
    %v3033 = vmul.f32 %v2905, 0.01
    %v3034 = vmul.f32 %v2906, 0.01
    %v3035 = vmul.f32 %v2907, 0.01
    %v3036 = vmul.f32 %v2908, 0.01
    %v3037 = vmul.f32 %v2909, 0.01
    %v3038 = vsel %vm2910, %v2846, %v2974
    %v3039 = vsel %vm2911, %v2847, %v2975
    %v3040 = vsel %vm2912, %v2848, %v2976
    %v3041 = vsel %vm2913, %v2849, %v2977
    %v3042 = vsel %vm2914, %v2850, %v2978
    %v3043 = vsel %vm2915, %v2851, %v2979
    %v3044 = vsel %vm2916, %v2852, %v2980
    %v3045 = vsel %vm2917, %v2853, %v2981
    %v3046 = vsel %vm2918, %v2854, %v2982
    %v3047 = vsel %vm2919, %v2855, %v2983
    %v3048 = vsel %vm2920, %v2856, %v2984
    %v3049 = vsel %vm2921, %v2857, %v2985
    %v3050 = vsel %vm2922, %v2858, %v2986
    %v3051 = vsel %vm2923, %v2859, %v2987
    %v3052 = vsel %vm2924, %v2860, %v2988
    %v3053 = vsel %vm2925, %v2861, %v2989
    %v3054 = vsel %vm2926, %v2862, %v2990
    %v3055 = vsel %vm2927, %v2863, %v2991
    %v3056 = vsel %vm2928, %v2864, %v2992
    %v3057 = vsel %vm2929, %v2865, %v2993
    %v3058 = vsel %vm2930, %v2866, %v2994
    %v3059 = vsel %vm2931, %v2867, %v2995
    %v3060 = vsel %vm2932, %v2868, %v2996
    %v3061 = vsel %vm2933, %v2869, %v2997
    %v3062 = vsel %vm2934, %v2870, %v2998
    %v3063 = vsel %vm2935, %v2871, %v2999
    %v3064 = vsel %vm2936, %v2872, %v3000
    %v3065 = vsel %vm2937, %v2873, %v3001
    %v3066 = vsel %vm2938, %v2874, %v3002
    %v3067 = vsel %vm2939, %v2875, %v3003
    %v3068 = vsel %vm2940, %v2876, %v3004
    %v3069 = vsel %vm2941, %v2877, %v3005
    %v3070 = vsel %vm2942, %v2878, %v3006
    %v3071 = vsel %vm2943, %v2879, %v3007
    %v3072 = vsel %vm2944, %v2880, %v3008
    %v3073 = vsel %vm2945, %v2881, %v3009
    %v3074 = vsel %vm2946, %v2882, %v3010
    %v3075 = vsel %vm2947, %v2883, %v3011
    %v3076 = vsel %vm2948, %v2884, %v3012
    %v3077 = vsel %vm2949, %v2885, %v3013
    %v3078 = vsel %vm2950, %v2886, %v3014
    %v3079 = vsel %vm2951, %v2887, %v3015
    %v3080 = vsel %vm2952, %v2888, %v3016
    %v3081 = vsel %vm2953, %v2889, %v3017
    %v3082 = vsel %vm2954, %v2890, %v3018
    %v3083 = vsel %vm2955, %v2891, %v3019
    %v3084 = vsel %vm2956, %v2892, %v3020
    %v3085 = vsel %vm2957, %v2893, %v3021
    %v3086 = vsel %vm2958, %v2894, %v3022
    %v3087 = vsel %vm2959, %v2895, %v3023
    %v3088 = vsel %vm2960, %v2896, %v3024
    %v3089 = vsel %vm2961, %v2897, %v3025
    %v3090 = vsel %vm2962, %v2898, %v3026
    %v3091 = vsel %vm2963, %v2899, %v3027
    %v3092 = vsel %vm2964, %v2900, %v3028
    %v3093 = vsel %vm2965, %v2901, %v3029
    %v3094 = vsel %vm2966, %v2902, %v3030
    %v3095 = vsel %vm2967, %v2903, %v3031
    %v3096 = vsel %vm2968, %v2904, %v3032
    %v3097 = vsel %vm2969, %v2905, %v3033
    %v3098 = vsel %vm2970, %v2906, %v3034
    %v3099 = vsel %vm2971, %v2907, %v3035
    %v3100 = vsel %vm2972, %v2908, %v3036
    %v3101 = vsel %vm2973, %v2909, %v3037
    %v3102 = vpack.c.bf16 %v3039, %v3038
    %v3103 = vpack.c.bf16 %v3041, %v3040
    %v3104 = vpack.c.bf16 %v3043, %v3042
    %v3105 = vpack.c.bf16 %v3045, %v3044
    %v3106 = vpack.c.bf16 %v3047, %v3046
    %v3107 = vpack.c.bf16 %v3049, %v3048
    %v3108 = vpack.c.bf16 %v3051, %v3050
    %v3109 = vpack.c.bf16 %v3053, %v3052
    %v3110 = vpack.c.bf16 %v3055, %v3054
    %v3111 = vpack.c.bf16 %v3057, %v3056
    %v3112 = vpack.c.bf16 %v3059, %v3058
    %v3113 = vpack.c.bf16 %v3061, %v3060
    %v3114 = vpack.c.bf16 %v3063, %v3062
    %v3115 = vpack.c.bf16 %v3065, %v3064
    %v3116 = vpack.c.bf16 %v3067, %v3066
    %v3117 = vpack.c.bf16 %v3069, %v3068
    %v3118 = vpack.c.bf16 %v3071, %v3070
    %v3119 = vpack.c.bf16 %v3073, %v3072
    %v3120 = vpack.c.bf16 %v3075, %v3074
    %v3121 = vpack.c.bf16 %v3077, %v3076
    %v3122 = vpack.c.bf16 %v3079, %v3078
    %v3123 = vpack.c.bf16 %v3081, %v3080
    %v3124 = vpack.c.bf16 %v3083, %v3082
    %v3125 = vpack.c.bf16 %v3085, %v3084
    %v3126 = vpack.c.bf16 %v3087, %v3086
    %v3127 = vpack.c.bf16 %v3089, %v3088
    %v3128 = vpack.c.bf16 %v3091, %v3090
    %v3129 = vpack.c.bf16 %v3093, %v3092
    %v3130 = vpack.c.bf16 %v3095, %v3094
    %v3131 = vpack.c.bf16 %v3097, %v3096
    %v3132 = vpack.c.bf16 %v3099, %v3098
    %v3133 = vpack.c.bf16 %v3101, %v3100
    %v3134 = vld [vmem:[%s5] sm:$0xff]
    %v3135 = vld [vmem:[%s5 + $0x8] sm:$0xff]
    %v3136 = vld [vmem:[%s5 + $0x10] sm:$0xff]
    %v3137 = vld [vmem:[%s5 + $0x18] sm:$0xff]
    %v3138 = vld [vmem:[%s5 + $0x20] sm:$0xff]
    %v3139 = vld [vmem:[%s5 + $0x28] sm:$0xff]
    %v3140 = vld [vmem:[%s5 + $0x30] sm:$0xff]
    %v3141 = vld [vmem:[%s5 + $0x38] sm:$0xff]
    %v3142 = vld [vmem:[%s5 + $0x40] sm:$0xff]
    %v3143 = vld [vmem:[%s5 + $0x48] sm:$0xff]
    %v3144 = vld [vmem:[%s5 + $0x50] sm:$0xff]
    %v3145 = vld [vmem:[%s5 + $0x58] sm:$0xff]
    %v3146 = vld [vmem:[%s5 + $0x60] sm:$0xff]
    %v3147 = vld [vmem:[%s5 + $0x68] sm:$0xff]
    %v3148 = vld [vmem:[%s5 + $0x70] sm:$0xff]
    %v3149 = vld [vmem:[%s5 + $0x78] sm:$0xff]
    %v3150 = vld [vmem:[%s6] sm:$0x3]
    %v3152 = vlaneseq
    %v3153 = vshrl.u32 %v3152, 7
    %v3154 = vsub.s32 0, %v3153
    %v3155 = vrot.slane %v3150, %v3154
    %v3156 = vlaneseq
    %v3157 = vshrl.u32 %v3156, 7
    %v3158 = vsub.s32 1, %v3157
    %v3159 = vrot.slane %v3150, %v3158
    %v3178 = vunpack.c.l.b16 %v3134
    %v3179 = vunpack.c.h.b16 %v3134
    %v3180 = vunpack.c.l.b16 %v3135
    %v3181 = vunpack.c.h.b16 %v3135
    %v3182 = vunpack.c.l.b16 %v3136
    %v3183 = vunpack.c.h.b16 %v3136
    %v3184 = vunpack.c.l.b16 %v3137
    %v3185 = vunpack.c.h.b16 %v3137
    %v3186 = vunpack.c.l.b16 %v3138
    %v3187 = vunpack.c.h.b16 %v3138
    %v3188 = vunpack.c.l.b16 %v3139
    %v3189 = vunpack.c.h.b16 %v3139
    %v3190 = vunpack.c.l.b16 %v3140
    %v3191 = vunpack.c.h.b16 %v3140
    %v3192 = vunpack.c.l.b16 %v3141
    %v3193 = vunpack.c.h.b16 %v3141
    %v3194 = vunpack.c.l.b16 %v3142
    %v3195 = vunpack.c.h.b16 %v3142
    %v3196 = vunpack.c.l.b16 %v3143
    %v3197 = vunpack.c.h.b16 %v3143
    %v3198 = vunpack.c.l.b16 %v3144
    %v3199 = vunpack.c.h.b16 %v3144
    %v3200 = vunpack.c.l.b16 %v3145
    %v3201 = vunpack.c.h.b16 %v3145
    %v3202 = vunpack.c.l.b16 %v3146
    %v3203 = vunpack.c.h.b16 %v3146
    %v3204 = vunpack.c.l.b16 %v3147
    %v3205 = vunpack.c.h.b16 %v3147
    %v3206 = vunpack.c.l.b16 %v3148
    %v3207 = vunpack.c.h.b16 %v3148
    %v3208 = vunpack.c.l.b16 %v3149
    %v3209 = vunpack.c.h.b16 %v3149
    %v3210 = vpack.c.b16 %v3180, %v3178
    %v3211 = vpack.c.b16 %v3181, %v3179
    %v3212 = vpack.c.b16 %v3184, %v3182
    %v3213 = vpack.c.b16 %v3185, %v3183
    %v3214 = vpack.c.b16 %v3188, %v3186
    %v3215 = vpack.c.b16 %v3189, %v3187
    %v3216 = vpack.c.b16 %v3192, %v3190
    %v3217 = vpack.c.b16 %v3193, %v3191
    %v3218 = vpack.c.b16 %v3196, %v3194
    %v3219 = vpack.c.b16 %v3197, %v3195
    %v3220 = vpack.c.b16 %v3200, %v3198
    %v3221 = vpack.c.b16 %v3201, %v3199
    %v3222 = vpack.c.b16 %v3204, %v3202
    %v3223 = vpack.c.b16 %v3205, %v3203
    %v3224 = vpack.c.b16 %v3208, %v3206
    %v3225 = vpack.c.b16 %v3209, %v3207
    %3242 = vmatprep.subr.bf16.mxu0 %v3225
    %3243 = vmatpush1.bf16.msra.mxu0 %v3224
    %3244 = vmatprep.subr.bf16.mxu0 %v3223
    %3245 = vmatpush1.bf16.msra.mxu0 %v3222
    %3246 = vmatprep.subr.bf16.mxu0 %v3221
    %3247 = vmatpush1.bf16.msra.mxu0 %v3220
    %3248 = vmatprep.subr.bf16.mxu0 %v3219
    %3249 = vmatpush1.bf16.msra.mxu0 %v3218
    %3250 = vmatprep.subr.bf16.mxu0 %v3217
    %3251 = vmatpush1.bf16.msra.mxu0 %v3216
    %3252 = vmatprep.subr.bf16.mxu0 %v3215
    %3253 = vmatpush1.bf16.msra.mxu0 %v3214
    %3254 = vmatprep.subr.bf16.mxu0 %v3213
    %3255 = vmatpush1.bf16.msra.mxu0 %v3212
    %3256 = vmatprep.subr.bf16.mxu0 %v3211
    %3257 = vmatpush1.bf16.msra.mxu0 %v3210
    %3258 = vmatprep.subr.bf16.mxu0 0
    %3259 = vmatpush2.bf16.msra.mxu0 0
    %3260 = vmatprep.subr.bf16.mxu0 0
    %3261 = vmatpush2.bf16.msra.mxu0 0
    %3262 = vmatprep.subr.bf16.mxu0 0
    %3263 = vmatpush2.bf16.msra.mxu0 0
    %3264 = vmatprep.subr.bf16.mxu0 0
    %3265 = vmatpush2.bf16.msra.mxu0 0
    %3266 = vmatprep.subr.bf16.mxu0 0
    %3267 = vmatpush2.bf16.msra.mxu0 0
    %3268 = vmatprep.subr.bf16.mxu0 0
    %3269 = vmatpush2.bf16.msra.mxu0 0
    %3270 = vmatprep.subr.bf16.mxu0 0
    %3271 = vmatpush2.bf16.msra.mxu0 0
    %3272 = vmatprep.subr.bf16.mxu0 0
    %3273 = vmatpush2.bf16.msra.mxu0 0
    %3274 = vmatprep.mubr.bf16.mxu0 0
    %3275 = vmatmul.mubr.bf16.gmra.mxu0 %v3102
    %v3276 = vpop.f32.mrf.mxu0
    %v3277 = vadd.f32 %v3155, %v3276
    %v3278 = vpop.f32.mrf.mxu0
    %v3279 = vadd.f32 %v3159, %v3278
    %v3280 = vpop.f32.mrf.mxu0
    %v3281 = vadd.f32 %v3155, %v3280
    %v3282 = vpop.f32.mrf.mxu0
    %v3283 = vadd.f32 %v3159, %v3282
    %3284 = vmatprep.mubr.bf16.mxu0 0
    %3285 = vmatmul.mubr.bf16.gmra.mxu0 %v3103
    %v3286 = vpop.f32.mrf.mxu0
    %v3287 = vadd.f32 %v3155, %v3286
    %v3288 = vpop.f32.mrf.mxu0
    %v3289 = vadd.f32 %v3159, %v3288
    %v3290 = vpop.f32.mrf.mxu0
    %v3291 = vadd.f32 %v3155, %v3290
    %v3292 = vpop.f32.mrf.mxu0
    %v3293 = vadd.f32 %v3159, %v3292
    %3294 = vmatprep.mubr.bf16.mxu0 0
    %3295 = vmatmul.mubr.bf16.gmra.mxu0 %v3104
    %v3296 = vpop.f32.mrf.mxu0
    %v3297 = vadd.f32 %v3155, %v3296
    %v3298 = vpop.f32.mrf.mxu0
    %v3299 = vadd.f32 %v3159, %v3298
    %v3300 = vpop.f32.mrf.mxu0
    %v3301 = vadd.f32 %v3155, %v3300
    %v3302 = vpop.f32.mrf.mxu0
    %v3303 = vadd.f32 %v3159, %v3302
    %3304 = vmatprep.mubr.bf16.mxu0 0
    %3305 = vmatmul.mubr.bf16.gmra.mxu0 %v3105
    %v3306 = vpop.f32.mrf.mxu0
    %v3307 = vadd.f32 %v3155, %v3306
    %v3308 = vpop.f32.mrf.mxu0
    %v3309 = vadd.f32 %v3159, %v3308
    %v3310 = vpop.f32.mrf.mxu0
    %v3311 = vadd.f32 %v3155, %v3310
    %v3312 = vpop.f32.mrf.mxu0
    %v3313 = vadd.f32 %v3159, %v3312
    %3314 = vmatprep.mubr.bf16.mxu0 0
    %3315 = vmatmul.mubr.bf16.gmra.mxu0 %v3106
    %v3316 = vpop.f32.mrf.mxu0
    %v3317 = vadd.f32 %v3155, %v3316
    %v3318 = vpop.f32.mrf.mxu0
    %v3319 = vadd.f32 %v3159, %v3318
    %v3320 = vpop.f32.mrf.mxu0
    %v3321 = vadd.f32 %v3155, %v3320
    %v3322 = vpop.f32.mrf.mxu0
    %v3323 = vadd.f32 %v3159, %v3322
    %3324 = vmatprep.mubr.bf16.mxu0 0
    %3325 = vmatmul.mubr.bf16.gmra.mxu0 %v3107
    %v3326 = vpop.f32.mrf.mxu0
    %v3327 = vadd.f32 %v3155, %v3326
    %v3328 = vpop.f32.mrf.mxu0
    %v3329 = vadd.f32 %v3159, %v3328
    %v3330 = vpop.f32.mrf.mxu0
    %v3331 = vadd.f32 %v3155, %v3330
    %v3332 = vpop.f32.mrf.mxu0
    %v3333 = vadd.f32 %v3159, %v3332
    %3334 = vmatprep.mubr.bf16.mxu0 0
    %3335 = vmatmul.mubr.bf16.gmra.mxu0 %v3108
    %v3336 = vpop.f32.mrf.mxu0
    %v3337 = vadd.f32 %v3155, %v3336
    %v3338 = vpop.f32.mrf.mxu0
    %v3339 = vadd.f32 %v3159, %v3338
    %v3340 = vpop.f32.mrf.mxu0
    %v3341 = vadd.f32 %v3155, %v3340
    %v3342 = vpop.f32.mrf.mxu0
    %v3343 = vadd.f32 %v3159, %v3342
    %3344 = vmatprep.mubr.bf16.mxu0 0
    %3345 = vmatmul.mubr.bf16.gmra.mxu0 %v3109
    %v3346 = vpop.f32.mrf.mxu0
    %v3347 = vadd.f32 %v3155, %v3346
    %v3348 = vpop.f32.mrf.mxu0
    %v3349 = vadd.f32 %v3159, %v3348
    %v3350 = vpop.f32.mrf.mxu0
    %v3351 = vadd.f32 %v3155, %v3350
    %v3352 = vpop.f32.mrf.mxu0
    %v3353 = vadd.f32 %v3159, %v3352
    %3354 = vmatprep.mubr.bf16.mxu0 0
    %3355 = vmatmul.mubr.bf16.gmra.mxu0 %v3110
    %v3356 = vpop.f32.mrf.mxu0
    %v3357 = vadd.f32 %v3155, %v3356
    %v3358 = vpop.f32.mrf.mxu0
    %v3359 = vadd.f32 %v3159, %v3358
    %v3360 = vpop.f32.mrf.mxu0
    %v3361 = vadd.f32 %v3155, %v3360
    %v3362 = vpop.f32.mrf.mxu0
    %v3363 = vadd.f32 %v3159, %v3362
    %3364 = vmatprep.mubr.bf16.mxu0 0
    %3365 = vmatmul.mubr.bf16.gmra.mxu0 %v3111
    %v3366 = vpop.f32.mrf.mxu0
    %v3367 = vadd.f32 %v3155, %v3366
    %v3368 = vpop.f32.mrf.mxu0
    %v3369 = vadd.f32 %v3159, %v3368
    %v3370 = vpop.f32.mrf.mxu0
    %v3371 = vadd.f32 %v3155, %v3370
    %v3372 = vpop.f32.mrf.mxu0
    %v3373 = vadd.f32 %v3159, %v3372
    %3374 = vmatprep.mubr.bf16.mxu0 0
    %3375 = vmatmul.mubr.bf16.gmra.mxu0 %v3112
    %v3376 = vpop.f32.mrf.mxu0
    %v3377 = vadd.f32 %v3155, %v3376
    %v3378 = vpop.f32.mrf.mxu0
    %v3379 = vadd.f32 %v3159, %v3378
    %v3380 = vpop.f32.mrf.mxu0
    %v3381 = vadd.f32 %v3155, %v3380
    %v3382 = vpop.f32.mrf.mxu0
    %v3383 = vadd.f32 %v3159, %v3382
    %3384 = vmatprep.mubr.bf16.mxu0 0
    %3385 = vmatmul.mubr.bf16.gmra.mxu0 %v3113
    %v3386 = vpop.f32.mrf.mxu0
    %v3387 = vadd.f32 %v3155, %v3386
    %v3388 = vpop.f32.mrf.mxu0
    %v3389 = vadd.f32 %v3159, %v3388
    %v3390 = vpop.f32.mrf.mxu0
    %v3391 = vadd.f32 %v3155, %v3390
    %v3392 = vpop.f32.mrf.mxu0
    %v3393 = vadd.f32 %v3159, %v3392
    %3394 = vmatprep.mubr.bf16.mxu0 0
    %3395 = vmatmul.mubr.bf16.gmra.mxu0 %v3114
    %v3396 = vpop.f32.mrf.mxu0
    %v3397 = vadd.f32 %v3155, %v3396
    %v3398 = vpop.f32.mrf.mxu0
    %v3399 = vadd.f32 %v3159, %v3398
    %v3400 = vpop.f32.mrf.mxu0
    %v3401 = vadd.f32 %v3155, %v3400
    %v3402 = vpop.f32.mrf.mxu0
    %v3403 = vadd.f32 %v3159, %v3402
    %3404 = vmatprep.mubr.bf16.mxu0 0
    %3405 = vmatmul.mubr.bf16.gmra.mxu0 %v3115
    %v3406 = vpop.f32.mrf.mxu0
    %v3407 = vadd.f32 %v3155, %v3406
    %v3408 = vpop.f32.mrf.mxu0
    %v3409 = vadd.f32 %v3159, %v3408
    %v3410 = vpop.f32.mrf.mxu0
    %v3411 = vadd.f32 %v3155, %v3410
    %v3412 = vpop.f32.mrf.mxu0
    %v3413 = vadd.f32 %v3159, %v3412
    %3414 = vmatprep.mubr.bf16.mxu0 0
    %3415 = vmatmul.mubr.bf16.gmra.mxu0 %v3116
    %v3416 = vpop.f32.mrf.mxu0
    %v3417 = vadd.f32 %v3155, %v3416
    %v3418 = vpop.f32.mrf.mxu0
    %v3419 = vadd.f32 %v3159, %v3418
    %v3420 = vpop.f32.mrf.mxu0
    %v3421 = vadd.f32 %v3155, %v3420
    %v3422 = vpop.f32.mrf.mxu0
    %v3423 = vadd.f32 %v3159, %v3422
    %3424 = vmatprep.mubr.bf16.mxu0 0
    %3425 = vmatmul.mubr.bf16.gmra.mxu0 %v3117
    %v3426 = vpop.f32.mrf.mxu0
    %v3427 = vadd.f32 %v3155, %v3426
    %v3428 = vpop.f32.mrf.mxu0
    %v3429 = vadd.f32 %v3159, %v3428
    %v3430 = vpop.f32.mrf.mxu0
    %v3431 = vadd.f32 %v3155, %v3430
    %v3432 = vpop.f32.mrf.mxu0
    %v3433 = vadd.f32 %v3159, %v3432
    %3434 = vmatprep.mubr.bf16.mxu0 0
    %3435 = vmatmul.mubr.bf16.gmra.mxu0 %v3118
    %v3436 = vpop.f32.mrf.mxu0
    %v3437 = vadd.f32 %v3155, %v3436
    %v3438 = vpop.f32.mrf.mxu0
    %v3439 = vadd.f32 %v3159, %v3438
    %v3440 = vpop.f32.mrf.mxu0
    %v3441 = vadd.f32 %v3155, %v3440
    %v3442 = vpop.f32.mrf.mxu0
    %v3443 = vadd.f32 %v3159, %v3442
    %3444 = vmatprep.mubr.bf16.mxu0 0
    %3445 = vmatmul.mubr.bf16.gmra.mxu0 %v3119
    %v3446 = vpop.f32.mrf.mxu0
    %v3447 = vadd.f32 %v3155, %v3446
    %v3448 = vpop.f32.mrf.mxu0
    %v3449 = vadd.f32 %v3159, %v3448
    %v3450 = vpop.f32.mrf.mxu0
    %v3451 = vadd.f32 %v3155, %v3450
    %v3452 = vpop.f32.mrf.mxu0
    %v3453 = vadd.f32 %v3159, %v3452
    %3454 = vmatprep.mubr.bf16.mxu0 0
    %3455 = vmatmul.mubr.bf16.gmra.mxu0 %v3120
    %v3456 = vpop.f32.mrf.mxu0
    %v3457 = vadd.f32 %v3155, %v3456
    %v3458 = vpop.f32.mrf.mxu0
    %v3459 = vadd.f32 %v3159, %v3458
    %v3460 = vpop.f32.mrf.mxu0
    %v3461 = vadd.f32 %v3155, %v3460
    %v3462 = vpop.f32.mrf.mxu0
    %v3463 = vadd.f32 %v3159, %v3462
    %3464 = vmatprep.mubr.bf16.mxu0 0
    %3465 = vmatmul.mubr.bf16.gmra.mxu0 %v3121
    %v3466 = vpop.f32.mrf.mxu0
    %v3467 = vadd.f32 %v3155, %v3466
    %v3468 = vpop.f32.mrf.mxu0
    %v3469 = vadd.f32 %v3159, %v3468
    %v3470 = vpop.f32.mrf.mxu0
    %v3471 = vadd.f32 %v3155, %v3470
    %v3472 = vpop.f32.mrf.mxu0
    %v3473 = vadd.f32 %v3159, %v3472
    %3474 = vmatprep.mubr.bf16.mxu0 0
    %3475 = vmatmul.mubr.bf16.gmra.mxu0 %v3122
    %v3476 = vpop.f32.mrf.mxu0
    %v3477 = vadd.f32 %v3155, %v3476
    %v3478 = vpop.f32.mrf.mxu0
    %v3479 = vadd.f32 %v3159, %v3478
    %v3480 = vpop.f32.mrf.mxu0
    %v3481 = vadd.f32 %v3155, %v3480
    %v3482 = vpop.f32.mrf.mxu0
    %v3483 = vadd.f32 %v3159, %v3482
    %3484 = vmatprep.mubr.bf16.mxu0 0
    %3485 = vmatmul.mubr.bf16.gmra.mxu0 %v3123
    %v3486 = vpop.f32.mrf.mxu0
    %v3487 = vadd.f32 %v3155, %v3486
    %v3488 = vpop.f32.mrf.mxu0
    %v3489 = vadd.f32 %v3159, %v3488
    %v3490 = vpop.f32.mrf.mxu0
    %v3491 = vadd.f32 %v3155, %v3490
    %v3492 = vpop.f32.mrf.mxu0
    %v3493 = vadd.f32 %v3159, %v3492
    %3494 = vmatprep.mubr.bf16.mxu0 0
    %3495 = vmatmul.mubr.bf16.gmra.mxu0 %v3124
    %v3496 = vpop.f32.mrf.mxu0
    %v3497 = vadd.f32 %v3155, %v3496
    %v3498 = vpop.f32.mrf.mxu0
    %v3499 = vadd.f32 %v3159, %v3498
    %v3500 = vpop.f32.mrf.mxu0
    %v3501 = vadd.f32 %v3155, %v3500
    %v3502 = vpop.f32.mrf.mxu0
    %v3503 = vadd.f32 %v3159, %v3502
    %3504 = vmatprep.mubr.bf16.mxu0 0
    %3505 = vmatmul.mubr.bf16.gmra.mxu0 %v3125
    %v3506 = vpop.f32.mrf.mxu0
    %v3507 = vadd.f32 %v3155, %v3506
    %v3508 = vpop.f32.mrf.mxu0
    %v3509 = vadd.f32 %v3159, %v3508
    %v3510 = vpop.f32.mrf.mxu0
    %v3511 = vadd.f32 %v3155, %v3510
    %v3512 = vpop.f32.mrf.mxu0
    %v3513 = vadd.f32 %v3159, %v3512
    %3514 = vmatprep.mubr.bf16.mxu0 0
    %3515 = vmatmul.mubr.bf16.gmra.mxu0 %v3126
    %v3516 = vpop.f32.mrf.mxu0
    %v3517 = vadd.f32 %v3155, %v3516
    %v3518 = vpop.f32.mrf.mxu0
    %v3519 = vadd.f32 %v3159, %v3518
    %v3520 = vpop.f32.mrf.mxu0
    %v3521 = vadd.f32 %v3155, %v3520
    %v3522 = vpop.f32.mrf.mxu0
    %v3523 = vadd.f32 %v3159, %v3522
    %3524 = vmatprep.mubr.bf16.mxu0 0
    %3525 = vmatmul.mubr.bf16.gmra.mxu0 %v3127
    %v3526 = vpop.f32.mrf.mxu0
    %v3527 = vadd.f32 %v3155, %v3526
    %v3528 = vpop.f32.mrf.mxu0
    %v3529 = vadd.f32 %v3159, %v3528
    %v3530 = vpop.f32.mrf.mxu0
    %v3531 = vadd.f32 %v3155, %v3530
    %v3532 = vpop.f32.mrf.mxu0
    %v3533 = vadd.f32 %v3159, %v3532
    %3534 = vmatprep.mubr.bf16.mxu0 0
    %3535 = vmatmul.mubr.bf16.gmra.mxu0 %v3128
    %v3536 = vpop.f32.mrf.mxu0
    %v3537 = vadd.f32 %v3155, %v3536
    %v3538 = vpop.f32.mrf.mxu0
    %v3539 = vadd.f32 %v3159, %v3538
    %v3540 = vpop.f32.mrf.mxu0
    %v3541 = vadd.f32 %v3155, %v3540
    %v3542 = vpop.f32.mrf.mxu0
    %v3543 = vadd.f32 %v3159, %v3542
    %3544 = vmatprep.mubr.bf16.mxu0 0
    %3545 = vmatmul.mubr.bf16.gmra.mxu0 %v3129
    %v3546 = vpop.f32.mrf.mxu0
    %v3547 = vadd.f32 %v3155, %v3546
    %v3548 = vpop.f32.mrf.mxu0
    %v3549 = vadd.f32 %v3159, %v3548
    %v3550 = vpop.f32.mrf.mxu0
    %v3551 = vadd.f32 %v3155, %v3550
    %v3552 = vpop.f32.mrf.mxu0
    %v3553 = vadd.f32 %v3159, %v3552
    %3554 = vmatprep.mubr.bf16.mxu0 0
    %3555 = vmatmul.mubr.bf16.gmra.mxu0 %v3130
    %v3556 = vpop.f32.mrf.mxu0
    %v3557 = vadd.f32 %v3155, %v3556
    %v3558 = vpop.f32.mrf.mxu0
    %v3559 = vadd.f32 %v3159, %v3558
    %v3560 = vpop.f32.mrf.mxu0
    %v3561 = vadd.f32 %v3155, %v3560
    %v3562 = vpop.f32.mrf.mxu0
    %v3563 = vadd.f32 %v3159, %v3562
    %3564 = vmatprep.mubr.bf16.mxu0 0
    %3565 = vmatmul.mubr.bf16.gmra.mxu0 %v3131
    %v3566 = vpop.f32.mrf.mxu0
    %v3567 = vadd.f32 %v3155, %v3566
    %v3568 = vpop.f32.mrf.mxu0
    %v3569 = vadd.f32 %v3159, %v3568
    %v3570 = vpop.f32.mrf.mxu0
    %v3571 = vadd.f32 %v3155, %v3570
    %v3572 = vpop.f32.mrf.mxu0
    %v3573 = vadd.f32 %v3159, %v3572
    %3574 = vmatprep.mubr.bf16.mxu0 0
    %3575 = vmatmul.mubr.bf16.gmra.mxu0 %v3132
    %v3576 = vpop.f32.mrf.mxu0
    %v3577 = vadd.f32 %v3155, %v3576
    %v3578 = vpop.f32.mrf.mxu0
    %v3579 = vadd.f32 %v3159, %v3578
    %v3580 = vpop.f32.mrf.mxu0
    %v3581 = vadd.f32 %v3155, %v3580
    %v3582 = vpop.f32.mrf.mxu0
    %v3583 = vadd.f32 %v3159, %v3582
    %3584 = vmatprep.mubr.bf16.mxu0 0
    %3585 = vmatmul.mubr.bf16.gmra.mxu0 %v3133
    %v3586 = vpop.f32.mrf.mxu0
    %v3587 = vadd.f32 %v3155, %v3586
    %v3588 = vpop.f32.mrf.mxu0
    %v3589 = vadd.f32 %v3159, %v3588
    %v3590 = vpop.f32.mrf.mxu0
    %v3591 = vadd.f32 %v3155, %v3590
    %v3592 = vpop.f32.mrf.mxu0
    %v3593 = vadd.f32 %v3159, %v3592
    %3594 = vdwg.mxu0
    %v3595 = vxor.u32 %v3277, 2147483648
    %v3596 = vxor.u32 %v3279, 2147483648
    %v3597 = vxor.u32 %v3281, 2147483648
    %v3598 = vxor.u32 %v3283, 2147483648
    %v3599 = vxor.u32 %v3287, 2147483648
    %v3600 = vxor.u32 %v3289, 2147483648
    %v3601 = vxor.u32 %v3291, 2147483648
    %v3602 = vxor.u32 %v3293, 2147483648
    %v3603 = vxor.u32 %v3297, 2147483648
    %v3604 = vxor.u32 %v3299, 2147483648
    %v3605 = vxor.u32 %v3301, 2147483648
    %v3606 = vxor.u32 %v3303, 2147483648
    %v3607 = vxor.u32 %v3307, 2147483648
    %v3608 = vxor.u32 %v3309, 2147483648
    %v3609 = vxor.u32 %v3311, 2147483648
    %v3610 = vxor.u32 %v3313, 2147483648
    %v3611 = vxor.u32 %v3317, 2147483648
    %v3612 = vxor.u32 %v3319, 2147483648
    %v3613 = vxor.u32 %v3321, 2147483648
    %v3614 = vxor.u32 %v3323, 2147483648
    %v3615 = vxor.u32 %v3327, 2147483648
    %v3616 = vxor.u32 %v3329, 2147483648
    %v3617 = vxor.u32 %v3331, 2147483648
    %v3618 = vxor.u32 %v3333, 2147483648
    %v3619 = vxor.u32 %v3337, 2147483648
    %v3620 = vxor.u32 %v3339, 2147483648
    %v3621 = vxor.u32 %v3341, 2147483648
    %v3622 = vxor.u32 %v3343, 2147483648
    %v3623 = vxor.u32 %v3347, 2147483648
    %v3624 = vxor.u32 %v3349, 2147483648
    %v3625 = vxor.u32 %v3351, 2147483648
    %v3626 = vxor.u32 %v3353, 2147483648
    %v3627 = vxor.u32 %v3357, 2147483648
    %v3628 = vxor.u32 %v3359, 2147483648
    %v3629 = vxor.u32 %v3361, 2147483648
    %v3630 = vxor.u32 %v3363, 2147483648
    %v3631 = vxor.u32 %v3367, 2147483648
    %v3632 = vxor.u32 %v3369, 2147483648
    %v3633 = vxor.u32 %v3371, 2147483648
    %v3634 = vxor.u32 %v3373, 2147483648
    %v3635 = vxor.u32 %v3377, 2147483648
    %v3636 = vxor.u32 %v3379, 2147483648
    %v3637 = vxor.u32 %v3381, 2147483648
    %v3638 = vxor.u32 %v3383, 2147483648
    %v3639 = vxor.u32 %v3387, 2147483648
    %v3640 = vxor.u32 %v3389, 2147483648
    %v3641 = vxor.u32 %v3391, 2147483648
    %v3642 = vxor.u32 %v3393, 2147483648
    %v3643 = vxor.u32 %v3397, 2147483648
    %v3644 = vxor.u32 %v3399, 2147483648
    %v3645 = vxor.u32 %v3401, 2147483648
    %v3646 = vxor.u32 %v3403, 2147483648
    %v3647 = vxor.u32 %v3407, 2147483648
    %v3648 = vxor.u32 %v3409, 2147483648
    %v3649 = vxor.u32 %v3411, 2147483648
    %v3650 = vxor.u32 %v3413, 2147483648
    %v3651 = vxor.u32 %v3417, 2147483648
    %v3652 = vxor.u32 %v3419, 2147483648
    %v3653 = vxor.u32 %v3421, 2147483648
    %v3654 = vxor.u32 %v3423, 2147483648
    %v3655 = vxor.u32 %v3427, 2147483648
    %v3656 = vxor.u32 %v3429, 2147483648
    %v3657 = vxor.u32 %v3431, 2147483648
    %v3658 = vxor.u32 %v3433, 2147483648
    %v3659 = vxor.u32 %v3437, 2147483648
    %v3660 = vxor.u32 %v3439, 2147483648
    %v3661 = vxor.u32 %v3441, 2147483648
    %v3662 = vxor.u32 %v3443, 2147483648
    %v3663 = vxor.u32 %v3447, 2147483648
    %v3664 = vxor.u32 %v3449, 2147483648
    %v3665 = vxor.u32 %v3451, 2147483648
    %v3666 = vxor.u32 %v3453, 2147483648
    %v3667 = vxor.u32 %v3457, 2147483648
    %v3668 = vxor.u32 %v3459, 2147483648
    %v3669 = vxor.u32 %v3461, 2147483648
    %v3670 = vxor.u32 %v3463, 2147483648
    %v3671 = vxor.u32 %v3467, 2147483648
    %v3672 = vxor.u32 %v3469, 2147483648
    %v3673 = vxor.u32 %v3471, 2147483648
    %v3674 = vxor.u32 %v3473, 2147483648
    %v3675 = vxor.u32 %v3477, 2147483648
    %v3676 = vxor.u32 %v3479, 2147483648
    %v3677 = vxor.u32 %v3481, 2147483648
    %v3678 = vxor.u32 %v3483, 2147483648
    %v3679 = vxor.u32 %v3487, 2147483648
    %v3680 = vxor.u32 %v3489, 2147483648
    %v3681 = vxor.u32 %v3491, 2147483648
    %v3682 = vxor.u32 %v3493, 2147483648
    %v3683 = vxor.u32 %v3497, 2147483648
    %v3684 = vxor.u32 %v3499, 2147483648
    %v3685 = vxor.u32 %v3501, 2147483648
    %v3686 = vxor.u32 %v3503, 2147483648
    %v3687 = vxor.u32 %v3507, 2147483648
    %v3688 = vxor.u32 %v3509, 2147483648
    %v3689 = vxor.u32 %v3511, 2147483648
    %v3690 = vxor.u32 %v3513, 2147483648
    %v3691 = vxor.u32 %v3517, 2147483648
    %v3692 = vxor.u32 %v3519, 2147483648
    %v3693 = vxor.u32 %v3521, 2147483648
    %v3694 = vxor.u32 %v3523, 2147483648
    %v3695 = vxor.u32 %v3527, 2147483648
    %v3696 = vxor.u32 %v3529, 2147483648
    %v3697 = vxor.u32 %v3531, 2147483648
    %v3698 = vxor.u32 %v3533, 2147483648
    %v3699 = vxor.u32 %v3537, 2147483648
    %v3700 = vxor.u32 %v3539, 2147483648
    %v3701 = vxor.u32 %v3541, 2147483648
    %v3702 = vxor.u32 %v3543, 2147483648
    %v3703 = vxor.u32 %v3547, 2147483648
    %v3704 = vxor.u32 %v3549, 2147483648
    %v3705 = vxor.u32 %v3551, 2147483648
    %v3706 = vxor.u32 %v3553, 2147483648
    %v3707 = vxor.u32 %v3557, 2147483648
    %v3708 = vxor.u32 %v3559, 2147483648
    %v3709 = vxor.u32 %v3561, 2147483648
    %v3710 = vxor.u32 %v3563, 2147483648
    %v3711 = vxor.u32 %v3567, 2147483648
    %v3712 = vxor.u32 %v3569, 2147483648
    %v3713 = vxor.u32 %v3571, 2147483648
    %v3714 = vxor.u32 %v3573, 2147483648
    %v3715 = vxor.u32 %v3577, 2147483648
    %v3716 = vxor.u32 %v3579, 2147483648
    %v3717 = vxor.u32 %v3581, 2147483648
    %v3718 = vxor.u32 %v3583, 2147483648
    %v3719 = vxor.u32 %v3587, 2147483648
    %v3720 = vxor.u32 %v3589, 2147483648
    %v3721 = vxor.u32 %v3591, 2147483648
    %v3722 = vxor.u32 %v3593, 2147483648
    %v3723 = vmul.f32 %v3595, 1.442695
    %v3724 = vpow.pop %v3723
    %v3725 = vmul.f32 %v3596, 1.442695
    %v3726 = vpow.pop %v3725
    %v3727 = vmul.f32 %v3597, 1.442695
    %v3728 = vpow.pop %v3727
    %v3729 = vmul.f32 %v3598, 1.442695
    %v3730 = vpow.pop %v3729
    %v3731 = vmul.f32 %v3599, 1.442695
    %v3732 = vpow.pop %v3731
    %v3733 = vmul.f32 %v3600, 1.442695
    %v3734 = vpow.pop %v3733
    %v3735 = vmul.f32 %v3601, 1.442695
    %v3736 = vpow.pop %v3735
    %v3737 = vmul.f32 %v3602, 1.442695
    %v3738 = vpow.pop %v3737
    %v3739 = vmul.f32 %v3603, 1.442695
    %v3740 = vpow.pop %v3739
    %v3741 = vmul.f32 %v3604, 1.442695
    %v3742 = vpow.pop %v3741
    %v3743 = vmul.f32 %v3605, 1.442695
    %v3744 = vpow.pop %v3743
    %v3745 = vmul.f32 %v3606, 1.442695
    %v3746 = vpow.pop %v3745
    %v3747 = vmul.f32 %v3607, 1.442695
    %v3748 = vpow.pop %v3747
    %v3749 = vmul.f32 %v3608, 1.442695
    %v3750 = vpow.pop %v3749
    %v3751 = vmul.f32 %v3609, 1.442695
    %v3752 = vpow.pop %v3751
    %v3753 = vmul.f32 %v3610, 1.442695
    %v3754 = vpow.pop %v3753
    %v3755 = vmul.f32 %v3611, 1.442695
    %v3756 = vpow.pop %v3755
    %v3757 = vmul.f32 %v3612, 1.442695
    %v3758 = vpow.pop %v3757
    %v3759 = vmul.f32 %v3613, 1.442695
    %v3760 = vpow.pop %v3759
    %v3761 = vmul.f32 %v3614, 1.442695
    %v3762 = vpow.pop %v3761
    %v3763 = vmul.f32 %v3615, 1.442695
    %v3764 = vpow.pop %v3763
    %v3765 = vmul.f32 %v3616, 1.442695
    %v3766 = vpow.pop %v3765
    %v3767 = vmul.f32 %v3617, 1.442695
    %v3768 = vpow.pop %v3767
    %v3769 = vmul.f32 %v3618, 1.442695
    %v3770 = vpow.pop %v3769
    %v3771 = vmul.f32 %v3619, 1.442695
    %v3772 = vpow.pop %v3771
    %v3773 = vmul.f32 %v3620, 1.442695
    %v3774 = vpow.pop %v3773
    %v3775 = vmul.f32 %v3621, 1.442695
    %v3776 = vpow.pop %v3775
    %v3777 = vmul.f32 %v3622, 1.442695
    %v3778 = vpow.pop %v3777
    %v3779 = vmul.f32 %v3623, 1.442695
    %v3780 = vpow.pop %v3779
    %v3781 = vmul.f32 %v3624, 1.442695
    %v3782 = vpow.pop %v3781
    %v3783 = vmul.f32 %v3625, 1.442695
    %v3784 = vpow.pop %v3783
    %v3785 = vmul.f32 %v3626, 1.442695
    %v3786 = vpow.pop %v3785
    %v3787 = vmul.f32 %v3627, 1.442695
    %v3788 = vpow.pop %v3787
    %v3789 = vmul.f32 %v3628, 1.442695
    %v3790 = vpow.pop %v3789
    %v3791 = vmul.f32 %v3629, 1.442695
    %v3792 = vpow.pop %v3791
    %v3793 = vmul.f32 %v3630, 1.442695
    %v3794 = vpow.pop %v3793
    %v3795 = vmul.f32 %v3631, 1.442695
    %v3796 = vpow.pop %v3795
    %v3797 = vmul.f32 %v3632, 1.442695
    %v3798 = vpow.pop %v3797
    %v3799 = vmul.f32 %v3633, 1.442695
    %v3800 = vpow.pop %v3799
    %v3801 = vmul.f32 %v3634, 1.442695
    %v3802 = vpow.pop %v3801
    %v3803 = vmul.f32 %v3635, 1.442695
    %v3804 = vpow.pop %v3803
    %v3805 = vmul.f32 %v3636, 1.442695
    %v3806 = vpow.pop %v3805
    %v3807 = vmul.f32 %v3637, 1.442695
    %v3808 = vpow.pop %v3807
    %v3809 = vmul.f32 %v3638, 1.442695
    %v3810 = vpow.pop %v3809
    %v3811 = vmul.f32 %v3639, 1.442695
    %v3812 = vpow.pop %v3811
    %v3813 = vmul.f32 %v3640, 1.442695
    %v3814 = vpow.pop %v3813
    %v3815 = vmul.f32 %v3641, 1.442695
    %v3816 = vpow.pop %v3815
    %v3817 = vmul.f32 %v3642, 1.442695
    %v3818 = vpow.pop %v3817
    %v3819 = vmul.f32 %v3643, 1.442695
    %v3820 = vpow.pop %v3819
    %v3821 = vmul.f32 %v3644, 1.442695
    %v3822 = vpow.pop %v3821
    %v3823 = vmul.f32 %v3645, 1.442695
    %v3824 = vpow.pop %v3823
    %v3825 = vmul.f32 %v3646, 1.442695
    %v3826 = vpow.pop %v3825
    %v3827 = vmul.f32 %v3647, 1.442695
    %v3828 = vpow.pop %v3827
    %v3829 = vmul.f32 %v3648, 1.442695
    %v3830 = vpow.pop %v3829
    %v3831 = vmul.f32 %v3649, 1.442695
    %v3832 = vpow.pop %v3831
    %v3833 = vmul.f32 %v3650, 1.442695
    %v3834 = vpow.pop %v3833
    %v3835 = vmul.f32 %v3651, 1.442695
    %v3836 = vpow.pop %v3835
    %v3837 = vmul.f32 %v3652, 1.442695
    %v3838 = vpow.pop %v3837
    %v3839 = vmul.f32 %v3653, 1.442695
    %v3840 = vpow.pop %v3839
    %v3841 = vmul.f32 %v3654, 1.442695
    %v3842 = vpow.pop %v3841
    %v3843 = vmul.f32 %v3655, 1.442695
    %v3844 = vpow.pop %v3843
    %v3845 = vmul.f32 %v3656, 1.442695
    %v3846 = vpow.pop %v3845
    %v3847 = vmul.f32 %v3657, 1.442695
    %v3848 = vpow.pop %v3847
    %v3849 = vmul.f32 %v3658, 1.442695
    %v3850 = vpow.pop %v3849
    %v3851 = vmul.f32 %v3659, 1.442695
    %v3852 = vpow.pop %v3851
    %v3853 = vmul.f32 %v3660, 1.442695
    %v3854 = vpow.pop %v3853
    %v3855 = vmul.f32 %v3661, 1.442695
    %v3856 = vpow.pop %v3855
    %v3857 = vmul.f32 %v3662, 1.442695
    %v3858 = vpow.pop %v3857
    %v3859 = vmul.f32 %v3663, 1.442695
    %v3860 = vpow.pop %v3859
    %v3861 = vmul.f32 %v3664, 1.442695
    %v3862 = vpow.pop %v3861
    %v3863 = vmul.f32 %v3665, 1.442695
    %v3864 = vpow.pop %v3863
    %v3865 = vmul.f32 %v3666, 1.442695
    %v3866 = vpow.pop %v3865
    %v3867 = vmul.f32 %v3667, 1.442695
    %v3868 = vpow.pop %v3867
    %v3869 = vmul.f32 %v3668, 1.442695
    %v3870 = vpow.pop %v3869
    %v3871 = vmul.f32 %v3669, 1.442695
    %v3872 = vpow.pop %v3871
    %v3873 = vmul.f32 %v3670, 1.442695
    %v3874 = vpow.pop %v3873
    %v3875 = vmul.f32 %v3671, 1.442695
    %v3876 = vpow.pop %v3875
    %v3877 = vmul.f32 %v3672, 1.442695
    %v3878 = vpow.pop %v3877
    %v3879 = vmul.f32 %v3673, 1.442695
    %v3880 = vpow.pop %v3879
    %v3881 = vmul.f32 %v3674, 1.442695
    %v3882 = vpow.pop %v3881
    %v3883 = vmul.f32 %v3675, 1.442695
    %v3884 = vpow.pop %v3883
    %v3885 = vmul.f32 %v3676, 1.442695
    %v3886 = vpow.pop %v3885
    %v3887 = vmul.f32 %v3677, 1.442695
    %v3888 = vpow.pop %v3887
    %v3889 = vmul.f32 %v3678, 1.442695
    %v3890 = vpow.pop %v3889
    %v3891 = vmul.f32 %v3679, 1.442695
    %v3892 = vpow.pop %v3891
    %v3893 = vmul.f32 %v3680, 1.442695
    %v3894 = vpow.pop %v3893
    %v3895 = vmul.f32 %v3681, 1.442695
    %v3896 = vpow.pop %v3895
    %v3897 = vmul.f32 %v3682, 1.442695
    %v3898 = vpow.pop %v3897
    %v3899 = vmul.f32 %v3683, 1.442695
    %v3900 = vpow.pop %v3899
    %v3901 = vmul.f32 %v3684, 1.442695
    %v3902 = vpow.pop %v3901
    %v3903 = vmul.f32 %v3685, 1.442695
    %v3904 = vpow.pop %v3903
    %v3905 = vmul.f32 %v3686, 1.442695
    %v3906 = vpow.pop %v3905
    %v3907 = vmul.f32 %v3687, 1.442695
    %v3908 = vpow.pop %v3907
    %v3909 = vmul.f32 %v3688, 1.442695
    %v3910 = vpow.pop %v3909
    %v3911 = vmul.f32 %v3689, 1.442695
    %v3912 = vpow.pop %v3911
    %v3913 = vmul.f32 %v3690, 1.442695
    %v3914 = vpow.pop %v3913
    %v3915 = vmul.f32 %v3691, 1.442695
    %v3916 = vpow.pop %v3915
    %v3917 = vmul.f32 %v3692, 1.442695
    %v3918 = vpow.pop %v3917
    %v3919 = vmul.f32 %v3693, 1.442695
    %v3920 = vpow.pop %v3919
    %v3921 = vmul.f32 %v3694, 1.442695
    %v3922 = vpow.pop %v3921
    %v3923 = vmul.f32 %v3695, 1.442695
    %v3924 = vpow.pop %v3923
    %v3925 = vmul.f32 %v3696, 1.442695
    %v3926 = vpow.pop %v3925
    %v3927 = vmul.f32 %v3697, 1.442695
    %v3928 = vpow.pop %v3927
    %v3929 = vmul.f32 %v3698, 1.442695
    %v3930 = vpow.pop %v3929
    %v3931 = vmul.f32 %v3699, 1.442695
    %v3932 = vpow.pop %v3931
    %v3933 = vmul.f32 %v3700, 1.442695
    %v3934 = vpow.pop %v3933
    %v3935 = vmul.f32 %v3701, 1.442695
    %v3936 = vpow.pop %v3935
    %v3937 = vmul.f32 %v3702, 1.442695
    %v3938 = vpow.pop %v3937
    %v3939 = vmul.f32 %v3703, 1.442695
    %v3940 = vpow.pop %v3939
    %v3941 = vmul.f32 %v3704, 1.442695
    %v3942 = vpow.pop %v3941
    %v3943 = vmul.f32 %v3705, 1.442695
    %v3944 = vpow.pop %v3943
    %v3945 = vmul.f32 %v3706, 1.442695
    %v3946 = vpow.pop %v3945
    %v3947 = vmul.f32 %v3707, 1.442695
    %v3948 = vpow.pop %v3947
    %v3949 = vmul.f32 %v3708, 1.442695
    %v3950 = vpow.pop %v3949
    %v3951 = vmul.f32 %v3709, 1.442695
    %v3952 = vpow.pop %v3951
    %v3953 = vmul.f32 %v3710, 1.442695
    %v3954 = vpow.pop %v3953
    %v3955 = vmul.f32 %v3711, 1.442695
    %v3956 = vpow.pop %v3955
    %v3957 = vmul.f32 %v3712, 1.442695
    %v3958 = vpow.pop %v3957
    %v3959 = vmul.f32 %v3713, 1.442695
    %v3960 = vpow.pop %v3959
    %v3961 = vmul.f32 %v3714, 1.442695
    %v3962 = vpow.pop %v3961
    %v3963 = vmul.f32 %v3715, 1.442695
    %v3964 = vpow.pop %v3963
    %v3965 = vmul.f32 %v3716, 1.442695
    %v3966 = vpow.pop %v3965
    %v3967 = vmul.f32 %v3717, 1.442695
    %v3968 = vpow.pop %v3967
    %v3969 = vmul.f32 %v3718, 1.442695
    %v3970 = vpow.pop %v3969
    %v3971 = vmul.f32 %v3719, 1.442695
    %v3972 = vpow.pop %v3971
    %v3973 = vmul.f32 %v3720, 1.442695
    %v3974 = vpow.pop %v3973
    %v3975 = vmul.f32 %v3721, 1.442695
    %v3976 = vpow.pop %v3975
    %v3977 = vmul.f32 %v3722, 1.442695
    %v3978 = vpow.pop %v3977
    %v3979 = vadd.f32 %v3724, 1.0
    %v3980 = vadd.f32 %v3726, 1.0
    %v3981 = vadd.f32 %v3728, 1.0
    %v3982 = vadd.f32 %v3730, 1.0
    %v3983 = vadd.f32 %v3732, 1.0
    %v3984 = vadd.f32 %v3734, 1.0
    %v3985 = vadd.f32 %v3736, 1.0
    %v3986 = vadd.f32 %v3738, 1.0
    %v3987 = vadd.f32 %v3740, 1.0
    %v3988 = vadd.f32 %v3742, 1.0
    %v3989 = vadd.f32 %v3744, 1.0
    %v3990 = vadd.f32 %v3746, 1.0
    %v3991 = vadd.f32 %v3748, 1.0
    %v3992 = vadd.f32 %v3750, 1.0
    %v3993 = vadd.f32 %v3752, 1.0
    %v3994 = vadd.f32 %v3754, 1.0
    %v3995 = vadd.f32 %v3756, 1.0
    %v3996 = vadd.f32 %v3758, 1.0
    %v3997 = vadd.f32 %v3760, 1.0
    %v3998 = vadd.f32 %v3762, 1.0
    %v3999 = vadd.f32 %v3764, 1.0
    %v4000 = vadd.f32 %v3766, 1.0
    %v4001 = vadd.f32 %v3768, 1.0
    %v4002 = vadd.f32 %v3770, 1.0
    %v4003 = vadd.f32 %v3772, 1.0
    %v4004 = vadd.f32 %v3774, 1.0
    %v4005 = vadd.f32 %v3776, 1.0
    %v4006 = vadd.f32 %v3778, 1.0
    %v4007 = vadd.f32 %v3780, 1.0
    %v4008 = vadd.f32 %v3782, 1.0
    %v4009 = vadd.f32 %v3784, 1.0
    %v4010 = vadd.f32 %v3786, 1.0
    %v4011 = vadd.f32 %v3788, 1.0
    %v4012 = vadd.f32 %v3790, 1.0
    %v4013 = vadd.f32 %v3792, 1.0
    %v4014 = vadd.f32 %v3794, 1.0
    %v4015 = vadd.f32 %v3796, 1.0
    %v4016 = vadd.f32 %v3798, 1.0
    %v4017 = vadd.f32 %v3800, 1.0
    %v4018 = vadd.f32 %v3802, 1.0
    %v4019 = vadd.f32 %v3804, 1.0
    %v4020 = vadd.f32 %v3806, 1.0
    %v4021 = vadd.f32 %v3808, 1.0
    %v4022 = vadd.f32 %v3810, 1.0
    %v4023 = vadd.f32 %v3812, 1.0
    %v4024 = vadd.f32 %v3814, 1.0
    %v4025 = vadd.f32 %v3816, 1.0
    %v4026 = vadd.f32 %v3818, 1.0
    %v4027 = vadd.f32 %v3820, 1.0
    %v4028 = vadd.f32 %v3822, 1.0
    %v4029 = vadd.f32 %v3824, 1.0
    %v4030 = vadd.f32 %v3826, 1.0
    %v4031 = vadd.f32 %v3828, 1.0
    %v4032 = vadd.f32 %v3830, 1.0
    %v4033 = vadd.f32 %v3832, 1.0
    %v4034 = vadd.f32 %v3834, 1.0
    %v4035 = vadd.f32 %v3836, 1.0
    %v4036 = vadd.f32 %v3838, 1.0
    %v4037 = vadd.f32 %v3840, 1.0
    %v4038 = vadd.f32 %v3842, 1.0
    %v4039 = vadd.f32 %v3844, 1.0
    %v4040 = vadd.f32 %v3846, 1.0
    %v4041 = vadd.f32 %v3848, 1.0
    %v4042 = vadd.f32 %v3850, 1.0
    %v4043 = vadd.f32 %v3852, 1.0
    %v4044 = vadd.f32 %v3854, 1.0
    %v4045 = vadd.f32 %v3856, 1.0
    %v4046 = vadd.f32 %v3858, 1.0
    %v4047 = vadd.f32 %v3860, 1.0
    %v4048 = vadd.f32 %v3862, 1.0
    %v4049 = vadd.f32 %v3864, 1.0
    %v4050 = vadd.f32 %v3866, 1.0
    %v4051 = vadd.f32 %v3868, 1.0
    %v4052 = vadd.f32 %v3870, 1.0
    %v4053 = vadd.f32 %v3872, 1.0
    %v4054 = vadd.f32 %v3874, 1.0
    %v4055 = vadd.f32 %v3876, 1.0
    %v4056 = vadd.f32 %v3878, 1.0
    %v4057 = vadd.f32 %v3880, 1.0
    %v4058 = vadd.f32 %v3882, 1.0
    %v4059 = vadd.f32 %v3884, 1.0
    %v4060 = vadd.f32 %v3886, 1.0
    %v4061 = vadd.f32 %v3888, 1.0
    %v4062 = vadd.f32 %v3890, 1.0
    %v4063 = vadd.f32 %v3892, 1.0
    %v4064 = vadd.f32 %v3894, 1.0
    %v4065 = vadd.f32 %v3896, 1.0
    %v4066 = vadd.f32 %v3898, 1.0
    %v4067 = vadd.f32 %v3900, 1.0
    %v4068 = vadd.f32 %v3902, 1.0
    %v4069 = vadd.f32 %v3904, 1.0
    %v4070 = vadd.f32 %v3906, 1.0
    %v4071 = vadd.f32 %v3908, 1.0
    %v4072 = vadd.f32 %v3910, 1.0
    %v4073 = vadd.f32 %v3912, 1.0
    %v4074 = vadd.f32 %v3914, 1.0
    %v4075 = vadd.f32 %v3916, 1.0
    %v4076 = vadd.f32 %v3918, 1.0
    %v4077 = vadd.f32 %v3920, 1.0
    %v4078 = vadd.f32 %v3922, 1.0
    %v4079 = vadd.f32 %v3924, 1.0
    %v4080 = vadd.f32 %v3926, 1.0
    %v4081 = vadd.f32 %v3928, 1.0
    %v4082 = vadd.f32 %v3930, 1.0
    %v4083 = vadd.f32 %v3932, 1.0
    %v4084 = vadd.f32 %v3934, 1.0
    %v4085 = vadd.f32 %v3936, 1.0
    %v4086 = vadd.f32 %v3938, 1.0
    %v4087 = vadd.f32 %v3940, 1.0
    %v4088 = vadd.f32 %v3942, 1.0
    %v4089 = vadd.f32 %v3944, 1.0
    %v4090 = vadd.f32 %v3946, 1.0
    %v4091 = vadd.f32 %v3948, 1.0
    %v4092 = vadd.f32 %v3950, 1.0
    %v4093 = vadd.f32 %v3952, 1.0
    %v4094 = vadd.f32 %v3954, 1.0
    %v4095 = vadd.f32 %v3956, 1.0
    %v4096 = vadd.f32 %v3958, 1.0
    %v4097 = vadd.f32 %v3960, 1.0
    %v4098 = vadd.f32 %v3962, 1.0
    %v4099 = vadd.f32 %v3964, 1.0
    %v4100 = vadd.f32 %v3966, 1.0
    %v4101 = vadd.f32 %v3968, 1.0
    %v4102 = vadd.f32 %v3970, 1.0
    %v4103 = vadd.f32 %v3972, 1.0
    %v4104 = vadd.f32 %v3974, 1.0
    %v4105 = vadd.f32 %v3976, 1.0
    %v4106 = vadd.f32 %v3978, 1.0
    %v4107 = vrcp.pop %v3979
    %v4108 = vmul.f32 1.0, %v4107
    %v4109 = vrcp.pop %v3980
    %v4110 = vmul.f32 1.0, %v4109
    %v4111 = vrcp.pop %v3981
    %v4112 = vmul.f32 1.0, %v4111
    %v4113 = vrcp.pop %v3982
    %v4114 = vmul.f32 1.0, %v4113
    %v4115 = vrcp.pop %v3983
    %v4116 = vmul.f32 1.0, %v4115
    %v4117 = vrcp.pop %v3984
    %v4118 = vmul.f32 1.0, %v4117
    %v4119 = vrcp.pop %v3985
    %v4120 = vmul.f32 1.0, %v4119
    %v4121 = vrcp.pop %v3986
    %v4122 = vmul.f32 1.0, %v4121
    %v4123 = vrcp.pop %v3987
    %v4124 = vmul.f32 1.0, %v4123
    %v4125 = vrcp.pop %v3988
    %v4126 = vmul.f32 1.0, %v4125
    %v4127 = vrcp.pop %v3989
    %v4128 = vmul.f32 1.0, %v4127
    %v4129 = vrcp.pop %v3990
    %v4130 = vmul.f32 1.0, %v4129
    %v4131 = vrcp.pop %v3991
    %v4132 = vmul.f32 1.0, %v4131
    %v4133 = vrcp.pop %v3992
    %v4134 = vmul.f32 1.0, %v4133
    %v4135 = vrcp.pop %v3993
    %v4136 = vmul.f32 1.0, %v4135
    %v4137 = vrcp.pop %v3994
    %v4138 = vmul.f32 1.0, %v4137
    %v4139 = vrcp.pop %v3995
    %v4140 = vmul.f32 1.0, %v4139
    %v4141 = vrcp.pop %v3996
    %v4142 = vmul.f32 1.0, %v4141
    %v4143 = vrcp.pop %v3997
    %v4144 = vmul.f32 1.0, %v4143
    %v4145 = vrcp.pop %v3998
    %v4146 = vmul.f32 1.0, %v4145
    %v4147 = vrcp.pop %v3999
    %v4148 = vmul.f32 1.0, %v4147
    %v4149 = vrcp.pop %v4000
    %v4150 = vmul.f32 1.0, %v4149
    %v4151 = vrcp.pop %v4001
    %v4152 = vmul.f32 1.0, %v4151
    %v4153 = vrcp.pop %v4002
    %v4154 = vmul.f32 1.0, %v4153
    %v4155 = vrcp.pop %v4003
    %v4156 = vmul.f32 1.0, %v4155
    %v4157 = vrcp.pop %v4004
    %v4158 = vmul.f32 1.0, %v4157
    %v4159 = vrcp.pop %v4005
    %v4160 = vmul.f32 1.0, %v4159
    %v4161 = vrcp.pop %v4006
    %v4162 = vmul.f32 1.0, %v4161
    %v4163 = vrcp.pop %v4007
    %v4164 = vmul.f32 1.0, %v4163
    %v4165 = vrcp.pop %v4008
    %v4166 = vmul.f32 1.0, %v4165
    %v4167 = vrcp.pop %v4009
    %v4168 = vmul.f32 1.0, %v4167
    %v4169 = vrcp.pop %v4010
    %v4170 = vmul.f32 1.0, %v4169
    %v4171 = vrcp.pop %v4011
    %v4172 = vmul.f32 1.0, %v4171
    %v4173 = vrcp.pop %v4012
    %v4174 = vmul.f32 1.0, %v4173
    %v4175 = vrcp.pop %v4013
    %v4176 = vmul.f32 1.0, %v4175
    %v4177 = vrcp.pop %v4014
    %v4178 = vmul.f32 1.0, %v4177
    %v4179 = vrcp.pop %v4015
    %v4180 = vmul.f32 1.0, %v4179
    %v4181 = vrcp.pop %v4016
    %v4182 = vmul.f32 1.0, %v4181
    %v4183 = vrcp.pop %v4017
    %v4184 = vmul.f32 1.0, %v4183
    %v4185 = vrcp.pop %v4018
    %v4186 = vmul.f32 1.0, %v4185
    %v4187 = vrcp.pop %v4019
    %v4188 = vmul.f32 1.0, %v4187
    %v4189 = vrcp.pop %v4020
    %v4190 = vmul.f32 1.0, %v4189
    %v4191 = vrcp.pop %v4021
    %v4192 = vmul.f32 1.0, %v4191
    %v4193 = vrcp.pop %v4022
    %v4194 = vmul.f32 1.0, %v4193
    %v4195 = vrcp.pop %v4023
    %v4196 = vmul.f32 1.0, %v4195
    %v4197 = vrcp.pop %v4024
    %v4198 = vmul.f32 1.0, %v4197
    %v4199 = vrcp.pop %v4025
    %v4200 = vmul.f32 1.0, %v4199
    %v4201 = vrcp.pop %v4026
    %v4202 = vmul.f32 1.0, %v4201
    %v4203 = vrcp.pop %v4027
    %v4204 = vmul.f32 1.0, %v4203
    %v4205 = vrcp.pop %v4028
    %v4206 = vmul.f32 1.0, %v4205
    %v4207 = vrcp.pop %v4029
    %v4208 = vmul.f32 1.0, %v4207
    %v4209 = vrcp.pop %v4030
    %v4210 = vmul.f32 1.0, %v4209
    %v4211 = vrcp.pop %v4031
    %v4212 = vmul.f32 1.0, %v4211
    %v4213 = vrcp.pop %v4032
    %v4214 = vmul.f32 1.0, %v4213
    %v4215 = vrcp.pop %v4033
    %v4216 = vmul.f32 1.0, %v4215
    %v4217 = vrcp.pop %v4034
    %v4218 = vmul.f32 1.0, %v4217
    %v4219 = vrcp.pop %v4035
    %v4220 = vmul.f32 1.0, %v4219
    %v4221 = vrcp.pop %v4036
    %v4222 = vmul.f32 1.0, %v4221
    %v4223 = vrcp.pop %v4037
    %v4224 = vmul.f32 1.0, %v4223
    %v4225 = vrcp.pop %v4038
    %v4226 = vmul.f32 1.0, %v4225
    %v4227 = vrcp.pop %v4039
    %v4228 = vmul.f32 1.0, %v4227
    %v4229 = vrcp.pop %v4040
    %v4230 = vmul.f32 1.0, %v4229
    %v4231 = vrcp.pop %v4041
    %v4232 = vmul.f32 1.0, %v4231
    %v4233 = vrcp.pop %v4042
    %v4234 = vmul.f32 1.0, %v4233
    %v4235 = vrcp.pop %v4043
    %v4236 = vmul.f32 1.0, %v4235
    %v4237 = vrcp.pop %v4044
    %v4238 = vmul.f32 1.0, %v4237
    %v4239 = vrcp.pop %v4045
    %v4240 = vmul.f32 1.0, %v4239
    %v4241 = vrcp.pop %v4046
    %v4242 = vmul.f32 1.0, %v4241
    %v4243 = vrcp.pop %v4047
    %v4244 = vmul.f32 1.0, %v4243
    %v4245 = vrcp.pop %v4048
    %v4246 = vmul.f32 1.0, %v4245
    %v4247 = vrcp.pop %v4049
    %v4248 = vmul.f32 1.0, %v4247
    %v4249 = vrcp.pop %v4050
    %v4250 = vmul.f32 1.0, %v4249
    %v4251 = vrcp.pop %v4051
    %v4252 = vmul.f32 1.0, %v4251
    %v4253 = vrcp.pop %v4052
    %v4254 = vmul.f32 1.0, %v4253
    %v4255 = vrcp.pop %v4053
    %v4256 = vmul.f32 1.0, %v4255
    %v4257 = vrcp.pop %v4054
    %v4258 = vmul.f32 1.0, %v4257
    %v4259 = vrcp.pop %v4055
    %v4260 = vmul.f32 1.0, %v4259
    %v4261 = vrcp.pop %v4056
    %v4262 = vmul.f32 1.0, %v4261
    %v4263 = vrcp.pop %v4057
    %v4264 = vmul.f32 1.0, %v4263
    %v4265 = vrcp.pop %v4058
    %v4266 = vmul.f32 1.0, %v4265
    %v4267 = vrcp.pop %v4059
    %v4268 = vmul.f32 1.0, %v4267
    %v4269 = vrcp.pop %v4060
    %v4270 = vmul.f32 1.0, %v4269
    %v4271 = vrcp.pop %v4061
    %v4272 = vmul.f32 1.0, %v4271
    %v4273 = vrcp.pop %v4062
    %v4274 = vmul.f32 1.0, %v4273
    %v4275 = vrcp.pop %v4063
    %v4276 = vmul.f32 1.0, %v4275
    %v4277 = vrcp.pop %v4064
    %v4278 = vmul.f32 1.0, %v4277
    %v4279 = vrcp.pop %v4065
    %v4280 = vmul.f32 1.0, %v4279
    %v4281 = vrcp.pop %v4066
    %v4282 = vmul.f32 1.0, %v4281
    %v4283 = vrcp.pop %v4067
    %v4284 = vmul.f32 1.0, %v4283
    %v4285 = vrcp.pop %v4068
    %v4286 = vmul.f32 1.0, %v4285
    %v4287 = vrcp.pop %v4069
    %v4288 = vmul.f32 1.0, %v4287
    %v4289 = vrcp.pop %v4070
    %v4290 = vmul.f32 1.0, %v4289
    %v4291 = vrcp.pop %v4071
    %v4292 = vmul.f32 1.0, %v4291
    %v4293 = vrcp.pop %v4072
    %v4294 = vmul.f32 1.0, %v4293
    %v4295 = vrcp.pop %v4073
    %v4296 = vmul.f32 1.0, %v4295
    %v4297 = vrcp.pop %v4074
    %v4298 = vmul.f32 1.0, %v4297
    %v4299 = vrcp.pop %v4075
    %v4300 = vmul.f32 1.0, %v4299
    %v4301 = vrcp.pop %v4076
    %v4302 = vmul.f32 1.0, %v4301
    %v4303 = vrcp.pop %v4077
    %v4304 = vmul.f32 1.0, %v4303
    %v4305 = vrcp.pop %v4078
    %v4306 = vmul.f32 1.0, %v4305
    %v4307 = vrcp.pop %v4079
    %v4308 = vmul.f32 1.0, %v4307
    %v4309 = vrcp.pop %v4080
    %v4310 = vmul.f32 1.0, %v4309
    %v4311 = vrcp.pop %v4081
    %v4312 = vmul.f32 1.0, %v4311
    %v4313 = vrcp.pop %v4082
    %v4314 = vmul.f32 1.0, %v4313
    %v4315 = vrcp.pop %v4083
    %v4316 = vmul.f32 1.0, %v4315
    %v4317 = vrcp.pop %v4084
    %v4318 = vmul.f32 1.0, %v4317
    %v4319 = vrcp.pop %v4085
    %v4320 = vmul.f32 1.0, %v4319
    %v4321 = vrcp.pop %v4086
    %v4322 = vmul.f32 1.0, %v4321
    %v4323 = vrcp.pop %v4087
    %v4324 = vmul.f32 1.0, %v4323
    %v4325 = vrcp.pop %v4088
    %v4326 = vmul.f32 1.0, %v4325
    %v4327 = vrcp.pop %v4089
    %v4328 = vmul.f32 1.0, %v4327
    %v4329 = vrcp.pop %v4090
    %v4330 = vmul.f32 1.0, %v4329
    %v4331 = vrcp.pop %v4091
    %v4332 = vmul.f32 1.0, %v4331
    %v4333 = vrcp.pop %v4092
    %v4334 = vmul.f32 1.0, %v4333
    %v4335 = vrcp.pop %v4093
    %v4336 = vmul.f32 1.0, %v4335
    %v4337 = vrcp.pop %v4094
    %v4338 = vmul.f32 1.0, %v4337
    %v4339 = vrcp.pop %v4095
    %v4340 = vmul.f32 1.0, %v4339
    %v4341 = vrcp.pop %v4096
    %v4342 = vmul.f32 1.0, %v4341
    %v4343 = vrcp.pop %v4097
    %v4344 = vmul.f32 1.0, %v4343
    %v4345 = vrcp.pop %v4098
    %v4346 = vmul.f32 1.0, %v4345
    %v4347 = vrcp.pop %v4099
    %v4348 = vmul.f32 1.0, %v4347
    %v4349 = vrcp.pop %v4100
    %v4350 = vmul.f32 1.0, %v4349
    %v4351 = vrcp.pop %v4101
    %v4352 = vmul.f32 1.0, %v4351
    %v4353 = vrcp.pop %v4102
    %v4354 = vmul.f32 1.0, %v4353
    %v4355 = vrcp.pop %v4103
    %v4356 = vmul.f32 1.0, %v4355
    %v4357 = vrcp.pop %v4104
    %v4358 = vmul.f32 1.0, %v4357
    %v4359 = vrcp.pop %v4105
    %v4360 = vmul.f32 1.0, %v4359
    %v4361 = vrcp.pop %v4106
    %v4362 = vmul.f32 1.0, %v4361
    %4363 = vst [vmem:[#allocation2] sm:$0xff] %v4108
    %4364 = vst [vmem:[#allocation2 + $0x8] sm:$0xff] %v4110
    %4365 = vst [vmem:[#allocation2 + $0x10] sm:$0xff] %v4112
    %4366 = vst [vmem:[#allocation2 + $0x18] sm:$0xff] %v4114
    %4367 = vst [vmem:[#allocation2 + $0x20] sm:$0xff] %v4116
    %4368 = vst [vmem:[#allocation2 + $0x28] sm:$0xff] %v4118
    %4369 = vst [vmem:[#allocation2 + $0x30] sm:$0xff] %v4120
    %4370 = vst [vmem:[#allocation2 + $0x38] sm:$0xff] %v4122
    %4371 = vst [vmem:[#allocation2 + $0x40] sm:$0xff] %v4124
    %4372 = vst [vmem:[#allocation2 + $0x48] sm:$0xff] %v4126
    %4373 = vst [vmem:[#allocation2 + $0x50] sm:$0xff] %v4128
    %4374 = vst [vmem:[#allocation2 + $0x58] sm:$0xff] %v4130
    %4375 = vst [vmem:[#allocation2 + $0x60] sm:$0xff] %v4132
    %4376 = vst [vmem:[#allocation2 + $0x68] sm:$0xff] %v4134
    %4377 = vst [vmem:[#allocation2 + $0x70] sm:$0xff] %v4136
    %4378 = vst [vmem:[#allocation2 + $0x78] sm:$0xff] %v4138
    %4379 = vst [vmem:[#allocation2 + $0x80] sm:$0xff] %v4140
    %4380 = vst [vmem:[#allocation2 + $0x88] sm:$0xff] %v4142
    %4381 = vst [vmem:[#allocation2 + $0x90] sm:$0xff] %v4144
    %4382 = vst [vmem:[#allocation2 + $0x98] sm:$0xff] %v4146
    %4383 = vst [vmem:[#allocation2 + $0xa0] sm:$0xff] %v4148
    %4384 = vst [vmem:[#allocation2 + $0xa8] sm:$0xff] %v4150
    %4385 = vst [vmem:[#allocation2 + $0xb0] sm:$0xff] %v4152
    %4386 = vst [vmem:[#allocation2 + $0xb8] sm:$0xff] %v4154
    %4387 = vst [vmem:[#allocation2 + $0xc0] sm:$0xff] %v4156
    %4388 = vst [vmem:[#allocation2 + $0xc8] sm:$0xff] %v4158
    %4389 = vst [vmem:[#allocation2 + $0xd0] sm:$0xff] %v4160
    %4390 = vst [vmem:[#allocation2 + $0xd8] sm:$0xff] %v4162
    %4391 = vst [vmem:[#allocation2 + $0xe0] sm:$0xff] %v4164
    %4392 = vst [vmem:[#allocation2 + $0xe8] sm:$0xff] %v4166
    %4393 = vst [vmem:[#allocation2 + $0xf0] sm:$0xff] %v4168
    %4394 = vst [vmem:[#allocation2 + $0xf8] sm:$0xff] %v4170
    %4395 = vst [vmem:[#allocation2 + $0x100] sm:$0xff] %v4172
    %4396 = vst [vmem:[#allocation2 + $0x108] sm:$0xff] %v4174
    %4397 = vst [vmem:[#allocation2 + $0x110] sm:$0xff] %v4176
    %4398 = vst [vmem:[#allocation2 + $0x118] sm:$0xff] %v4178
    %4399 = vst [vmem:[#allocation2 + $0x120] sm:$0xff] %v4180
    %4400 = vst [vmem:[#allocation2 + $0x128] sm:$0xff] %v4182
    %4401 = vst [vmem:[#allocation2 + $0x130] sm:$0xff] %v4184
    %4402 = vst [vmem:[#allocation2 + $0x138] sm:$0xff] %v4186
    %4403 = vst [vmem:[#allocation2 + $0x140] sm:$0xff] %v4188
    %4404 = vst [vmem:[#allocation2 + $0x148] sm:$0xff] %v4190
    %4405 = vst [vmem:[#allocation2 + $0x150] sm:$0xff] %v4192
    %4406 = vst [vmem:[#allocation2 + $0x158] sm:$0xff] %v4194
    %4407 = vst [vmem:[#allocation2 + $0x160] sm:$0xff] %v4196
    %4408 = vst [vmem:[#allocation2 + $0x168] sm:$0xff] %v4198
    %4409 = vst [vmem:[#allocation2 + $0x170] sm:$0xff] %v4200
    %4410 = vst [vmem:[#allocation2 + $0x178] sm:$0xff] %v4202
    %4411 = vst [vmem:[#allocation2 + $0x180] sm:$0xff] %v4204
    %4412 = vst [vmem:[#allocation2 + $0x188] sm:$0xff] %v4206
    %4413 = vst [vmem:[#allocation2 + $0x190] sm:$0xff] %v4208
    %4414 = vst [vmem:[#allocation2 + $0x198] sm:$0xff] %v4210
    %4415 = vst [vmem:[#allocation2 + $0x1a0] sm:$0xff] %v4212
    %4416 = vst [vmem:[#allocation2 + $0x1a8] sm:$0xff] %v4214
    %4417 = vst [vmem:[#allocation2 + $0x1b0] sm:$0xff] %v4216
    %4418 = vst [vmem:[#allocation2 + $0x1b8] sm:$0xff] %v4218
    %4419 = vst [vmem:[#allocation2 + $0x1c0] sm:$0xff] %v4220
    %4420 = vst [vmem:[#allocation2 + $0x1c8] sm:$0xff] %v4222
    %4421 = vst [vmem:[#allocation2 + $0x1d0] sm:$0xff] %v4224
    %4422 = vst [vmem:[#allocation2 + $0x1d8] sm:$0xff] %v4226
    %4423 = vst [vmem:[#allocation2 + $0x1e0] sm:$0xff] %v4228
    %4424 = vst [vmem:[#allocation2 + $0x1e8] sm:$0xff] %v4230
    %4425 = vst [vmem:[#allocation2 + $0x1f0] sm:$0xff] %v4232
    %4426 = vst [vmem:[#allocation2 + $0x1f8] sm:$0xff] %v4234
    %4427 = vst [vmem:[#allocation2 + $0x200] sm:$0xff] %v4236
    %4428 = vst [vmem:[#allocation2 + $0x208] sm:$0xff] %v4238
    %4429 = vst [vmem:[#allocation2 + $0x210] sm:$0xff] %v4240
    %4430 = vst [vmem:[#allocation2 + $0x218] sm:$0xff] %v4242
    %4431 = vst [vmem:[#allocation2 + $0x220] sm:$0xff] %v4244
    %4432 = vst [vmem:[#allocation2 + $0x228] sm:$0xff] %v4246
    %4433 = vst [vmem:[#allocation2 + $0x230] sm:$0xff] %v4248
    %4434 = vst [vmem:[#allocation2 + $0x238] sm:$0xff] %v4250
    %4435 = vst [vmem:[#allocation2 + $0x240] sm:$0xff] %v4252
    %4436 = vst [vmem:[#allocation2 + $0x248] sm:$0xff] %v4254
    %4437 = vst [vmem:[#allocation2 + $0x250] sm:$0xff] %v4256
    %4438 = vst [vmem:[#allocation2 + $0x258] sm:$0xff] %v4258
    %4439 = vst [vmem:[#allocation2 + $0x260] sm:$0xff] %v4260
    %4440 = vst [vmem:[#allocation2 + $0x268] sm:$0xff] %v4262
    %4441 = vst [vmem:[#allocation2 + $0x270] sm:$0xff] %v4264
    %4442 = vst [vmem:[#allocation2 + $0x278] sm:$0xff] %v4266
    %4443 = vst [vmem:[#allocation2 + $0x280] sm:$0xff] %v4268
    %4444 = vst [vmem:[#allocation2 + $0x288] sm:$0xff] %v4270
    %4445 = vst [vmem:[#allocation2 + $0x290] sm:$0xff] %v4272
    %4446 = vst [vmem:[#allocation2 + $0x298] sm:$0xff] %v4274
    %4447 = vst [vmem:[#allocation2 + $0x2a0] sm:$0xff] %v4276
    %4448 = vst [vmem:[#allocation2 + $0x2a8] sm:$0xff] %v4278
    %4449 = vst [vmem:[#allocation2 + $0x2b0] sm:$0xff] %v4280
    %4450 = vst [vmem:[#allocation2 + $0x2b8] sm:$0xff] %v4282
    %4451 = vst [vmem:[#allocation2 + $0x2c0] sm:$0xff] %v4284
    %4452 = vst [vmem:[#allocation2 + $0x2c8] sm:$0xff] %v4286
    %4453 = vst [vmem:[#allocation2 + $0x2d0] sm:$0xff] %v4288
    %4454 = vst [vmem:[#allocation2 + $0x2d8] sm:$0xff] %v4290
    %4455 = vst [vmem:[#allocation2 + $0x2e0] sm:$0xff] %v4292
    %4456 = vst [vmem:[#allocation2 + $0x2e8] sm:$0xff] %v4294
    %4457 = vst [vmem:[#allocation2 + $0x2f0] sm:$0xff] %v4296
    %4458 = vst [vmem:[#allocation2 + $0x2f8] sm:$0xff] %v4298
    %4459 = vst [vmem:[#allocation2 + $0x300] sm:$0xff] %v4300
    %4460 = vst [vmem:[#allocation2 + $0x308] sm:$0xff] %v4302
    %4461 = vst [vmem:[#allocation2 + $0x310] sm:$0xff] %v4304
    %4462 = vst [vmem:[#allocation2 + $0x318] sm:$0xff] %v4306
    %4463 = vst [vmem:[#allocation2 + $0x320] sm:$0xff] %v4308
    %4464 = vst [vmem:[#allocation2 + $0x328] sm:$0xff] %v4310
    %4465 = vst [vmem:[#allocation2 + $0x330] sm:$0xff] %v4312
    %4466 = vst [vmem:[#allocation2 + $0x338] sm:$0xff] %v4314
    %4467 = vst [vmem:[#allocation2 + $0x340] sm:$0xff] %v4316
    %4468 = vst [vmem:[#allocation2 + $0x348] sm:$0xff] %v4318
    %4469 = vst [vmem:[#allocation2 + $0x350] sm:$0xff] %v4320
    %4470 = vst [vmem:[#allocation2 + $0x358] sm:$0xff] %v4322
    %4471 = vst [vmem:[#allocation2 + $0x360] sm:$0xff] %v4324
    %4472 = vst [vmem:[#allocation2 + $0x368] sm:$0xff] %v4326
    %4473 = vst [vmem:[#allocation2 + $0x370] sm:$0xff] %v4328
    %4474 = vst [vmem:[#allocation2 + $0x378] sm:$0xff] %v4330
    %4475 = vst [vmem:[#allocation2 + $0x380] sm:$0xff] %v4332
    %4476 = vst [vmem:[#allocation2 + $0x388] sm:$0xff] %v4334
    %4477 = vst [vmem:[#allocation2 + $0x390] sm:$0xff] %v4336
    %4478 = vst [vmem:[#allocation2 + $0x398] sm:$0xff] %v4338
    %4479 = vst [vmem:[#allocation2 + $0x3a0] sm:$0xff] %v4340
    %4480 = vst [vmem:[#allocation2 + $0x3a8] sm:$0xff] %v4342
    %4481 = vst [vmem:[#allocation2 + $0x3b0] sm:$0xff] %v4344
    %4482 = vst [vmem:[#allocation2 + $0x3b8] sm:$0xff] %v4346
    %4483 = vst [vmem:[#allocation2 + $0x3c0] sm:$0xff] %v4348
    %4484 = vst [vmem:[#allocation2 + $0x3c8] sm:$0xff] %v4350
    %4485 = vst [vmem:[#allocation2 + $0x3d0] sm:$0xff] %v4352
    %4486 = vst [vmem:[#allocation2 + $0x3d8] sm:$0xff] %v4354
    %4487 = vst [vmem:[#allocation2 + $0x3e0] sm:$0xff] %v4356
    %4488 = vst [vmem:[#allocation2 + $0x3e8] sm:$0xff] %v4358
    %4489 = vst [vmem:[#allocation2 + $0x3f0] sm:$0xff] %v4360
    %4490 = vst [vmem:[#allocation2 + $0x3f8] sm:$0xff] %v4362
    // Predicated region
    $region30: #{tpu_custom_call.1} parent=1 // pred_check
      _
    $region31: #{tpu_custom_call.1} parent=1 // pred_check_branch
      %4492 = sbr.rel (0) target = $region33
    $region32: #{tpu_custom_call.1} parent=1 // pred_region
      %s4494 = ssub.s32 16384, 16384
      %4495 = vsyncadd [#allocation3], %s4494
      %s4496 = sshll.u32 [#allocation2], 4
      %s4497 = int_to_ptr.vmem [resolvable:$true] %s4496
      %4502 = dma.vmem_to_hbm [thread:$0]  %s4497, 16384, %s7, [#allocation3], 256, 256, 16
    $region33: #{tpu_custom_call.1} parent=1 // pred_fallthru
      _
    // Predicated region
    $region34: #{tpu_custom_call.1} parent=1 // pred_check
      _
    $region35: #{tpu_custom_call.1} parent=1 // pred_check_branch
      %4504 = sbr.rel (0) target = $region37
    $region36: #{tpu_custom_call.1} parent=1 // pred_region
      %4505 = dma.done [#allocation3], 16384
    $region37: #{tpu_custom_call.1} parent=1 // pred_fallthru
      _
    %4506 = vsyncpa [#allocation3], 1

</llo_original>
